<compile_context>
chip_gen: v7x
topology: tpu7x:2x2x1
jax: 0.10.0
libtpu: 0.0.40
codegen_flags: <defaults>
</compile_context>

<pallas_src>
import functools
import math

import jax
import jax.numpy as jnp
from jax import lax
from jax.experimental import pallas as pl
from jax.experimental.pallas import tpu as pltpu

_COMPUTE_DTYPE = jnp.bfloat16       # MXU input dtype; accumulation is f32


def _default_vmem_limit():
    """~75% of physical VMEM (headroom for double-buffering + Mosaic scratch),
    capped at 96 MiB.  v7x (64 MiB) -> 48 MiB; v5e/v6e (128 MiB) -> 96 MiB."""
    try:
        cap = int(pltpu.get_tpu_info().vmem_capacity_bytes)
    except Exception:
        cap = 64 * 1024 * 1024
    return min((cap * 3) // 4, 96 * 1024 * 1024)


_VMEM_LIMIT = _default_vmem_limit()


def _pick_tile(dim, cap):
    """Full-dim tile when small (always layout-legal); otherwise a capped tile."""
    return dim if dim <= cap else cap


# ----------------------------------------------------------------------------
# Kernel 1: fused (optional LayerNorm) + matmul + bias
#   used for patch embedding (apply_ln=False) and the fused K/V/Q projection.
# ----------------------------------------------------------------------------

def _ln_matmul_kernel(x_ref, g_ref, b_ref, w_ref, bias_ref, o_ref, *,
                      eps, apply_ln):
    x = x_ref[...].astype(jnp.float32)
    if apply_ln:
        mean = jnp.mean(x, axis=-1, keepdims=True)
        var = jnp.mean((x - mean) * (x - mean), axis=-1, keepdims=True)
        x = (x - mean) * lax.rsqrt(var + eps)
        x = x * g_ref[...] + b_ref[...]
    acc = jnp.dot(x.astype(_COMPUTE_DTYPE), w_ref[...],
                  preferred_element_type=jnp.float32)
    o_ref[...] = (acc + bias_ref[...]).astype(o_ref.dtype)


def ln_matmul(x2d, gamma, beta, w, bias, *, apply_ln=True, eps=1e-5,
              out_dtype=jnp.float32, tm_cap=512, tn_cap=512,
              full_n_weight_bytes=24 * 1024 * 1024):
    """(optional LN over full rows) then x2d @ w + bias, tiled over (M, N).
    When the full [K, N] weight fits the budget we keep tn = N so the LN of
    each row tile is computed exactly once."""
    M, K = x2d.shape
    N = w.shape[1]
    tm = _pick_tile(M, tm_cap)
    if K * N * jnp.dtype(w.dtype).itemsize <= full_n_weight_bytes:
        tn = N
    else:
        tn = _pick_tile(N, tn_cap)
    grid = (pl.cdiv(M, tm), pl.cdiv(N, tn))
    return pl.pallas_call(
        functools.partial(_ln_matmul_kernel, eps=eps, apply_ln=apply_ln),
        grid=grid,
        in_specs=[
            pl.BlockSpec((tm, K), lambda i, j: (i, 0)),
            pl.BlockSpec((1, K), lambda i, j: (0, 0)),
            pl.BlockSpec((1, K), lambda i, j: (0, 0)),
            pl.BlockSpec((K, tn), lambda i, j: (0, j)),
            pl.BlockSpec((1, tn), lambda i, j: (0, j)),
        ],
        out_specs=pl.BlockSpec((tm, tn), lambda i, j: (i, j)),
        out_shape=jax.ShapeDtypeStruct((M, N), out_dtype),
        compiler_params=pltpu.CompilerParams(
            dimension_semantics=("parallel", "parallel"),
            vmem_limit_bytes=_VMEM_LIMIT),
    )(x2d, gamma, beta, w, bias)


# ----------------------------------------------------------------------------
# Kernel 2: fused attention (all heads of one (batch, q-tile)) + output
#           projection + residual add.
#   kvq layout: [B, 3(K,V,Q), H, S, Dh] bf16.
#   Q-only / KV-only blocks; cross-attention KV swap via index_map.
#   Per-head partial output projections accumulate into an f32 scratch.
# ----------------------------------------------------------------------------

def _attn_kernel(q_ref, kv_ref, xres_ref, wo_ref, bo_ref, o_ref, acc_ref, *,
                 num_heads):
    acc_ref[...] = jnp.zeros_like(acc_ref)
    for h in range(num_heads):                 # static loop; acc bounds liveness
        qh = q_ref[0, 0, h]                    # [tq, Dh] bf16 (scale folded in Wq)
        kh = kv_ref[0, 0, h]                   # [S,  Dh] bf16
        vh = kv_ref[0, 1, h]                   # [S,  Dh] bf16
        s = lax.dot_general(qh, kh, (((1,), (1,)), ((), ())),
                            preferred_element_type=jnp.float32)   # [tq, S]
        m = jnp.max(s, axis=-1, keepdims=True)
        p = jnp.exp(s - m)
        denom = jnp.sum(p, axis=-1, keepdims=True)
        p = p * pl.reciprocal(denom, approx=True)        # divide on the EUP slot
        oh = jnp.dot(p.astype(_COMPUTE_DTYPE), vh,
                     preferred_element_type=jnp.float32)          # [tq, Dh]
        acc_ref[...] += jnp.dot(oh.astype(_COMPUTE_DTYPE), wo_ref[h],
                                preferred_element_type=jnp.float32)
    o_ref[0] = (xres_ref[0].astype(jnp.float32) + acc_ref[...]
                + bo_ref[...]).astype(o_ref.dtype)


def attention_block(kvq, x_res, wo_heads, bo, *, num_heads, cross=False,
                    tq_cap=128):
    """kvq: [B, 3(K,V,Q), H, S, Dh] bf16; x_res: [B, S, D] f32.
    Returns x_res + proj(attention).  cross=True: K/V come from the swapped
    batch half (sketch<->image), expressed purely in the KV index_map."""
    B, _three, H, S, Dh = kvq.shape
    D = H * Dh
    tq = tq_cap if (S > tq_cap and S % tq_cap == 0) else S
    n_q = S // tq
    half = B // 2

    if cross:
        kv_index = lambda b, qi: ((b + half) % B, 0, 0, 0, 0)
    else:
        kv_index = lambda b, qi: (b, 0, 0, 0, 0)

    q_spec = pl.BlockSpec((1, 1, H, tq, Dh), lambda b, qi: (b, 2, 0, qi, 0))
    kv_spec = pl.BlockSpec((1, 2, H, S, Dh), kv_index)
    x_spec = pl.BlockSpec((1, tq, D), lambda b, qi: (b, qi, 0))
    wo_spec = pl.BlockSpec((H, Dh, D), lambda b, qi: (0, 0, 0))
    bo_spec = pl.BlockSpec((1, D), lambda b, qi: (0, 0))

    return pl.pallas_call(
        functools.partial(_attn_kernel, num_heads=num_heads),
        grid=(B, n_q),
        in_specs=[q_spec, kv_spec, x_spec, wo_spec, bo_spec],
        out_specs=x_spec,
        out_shape=jax.ShapeDtypeStruct((B, S, D), jnp.float32),
        scratch_shapes=[pltpu.VMEM((tq, D), jnp.float32)],
        compiler_params=pltpu.CompilerParams(
            dimension_semantics=("parallel", "parallel"),
            vmem_limit_bytes=_VMEM_LIMIT),
    )(kvq, kvq, x_res, wo_heads, bo)


# ----------------------------------------------------------------------------
# Kernel 3: fused FFN  x + (GELU(LN(x) @ W1 + b1) @ W2 + b2)
#   The hidden dim F is chunked via an "arbitrary" grid axis; the live
#   [tm, tf] intermediate is bounded and LN(x) is computed once per row tile
#   (cached in a bf16 scratch).
# ----------------------------------------------------------------------------

def _ffn_kernel(x_ref, g_ref, b_ref, w1_ref, b1_ref, w2_ref, b2_ref, o_ref,
                acc_ref, xn_ref, *, eps):
    f = pl.program_id(1)

    @pl.when(f == 0)
    def _():
        x = x_ref[...].astype(jnp.float32)
        mean = jnp.mean(x, axis=-1, keepdims=True)
        var = jnp.mean((x - mean) * (x - mean), axis=-1, keepdims=True)
        xn = (x - mean) * lax.rsqrt(var + eps)
        xn = xn * g_ref[...] + b_ref[...]
        xn_ref[...] = xn.astype(xn_ref.dtype)
        acc_ref[...] = jnp.zeros_like(acc_ref)

    h = jnp.dot(xn_ref[...], w1_ref[...],
                preferred_element_type=jnp.float32) + b1_ref[...]
    h = jax.nn.gelu(h, approximate=True)
    acc_ref[...] += jnp.dot(h.astype(_COMPUTE_DTYPE), w2_ref[...],
                            preferred_element_type=jnp.float32)

    @pl.when(f == pl.num_programs(1) - 1)
    def _():
        o_ref[...] = (x_ref[...].astype(jnp.float32) + acc_ref[...]
                      + b2_ref[...]).astype(o_ref.dtype)


def ffn_block(x2d, gamma, beta, w1, b1, w2, b2, *, eps=1e-5, tm_cap=512,
              tf_cap=512):
    M, D = x2d.shape
    F = w1.shape[1]
    tm = _pick_tile(M, tm_cap)
    tf = F if F <= tf_cap else tf_cap
    if F % tf != 0:
        tf = F
    n_f = F // tf
    return pl.pallas_call(
        functools.partial(_ffn_kernel, eps=eps),
        grid=(pl.cdiv(M, tm), n_f),
        in_specs=[
            pl.BlockSpec((tm, D), lambda i, f: (i, 0)),
            pl.BlockSpec((1, D), lambda i, f: (0, 0)),
            pl.BlockSpec((1, D), lambda i, f: (0, 0)),
            pl.BlockSpec((D, tf), lambda i, f: (0, f)),
            pl.BlockSpec((1, tf), lambda i, f: (0, f)),
            pl.BlockSpec((tf, D), lambda i, f: (f, 0)),
            pl.BlockSpec((1, D), lambda i, f: (0, 0)),
        ],
        out_specs=pl.BlockSpec((tm, D), lambda i, f: (i, 0)),
        out_shape=jax.ShapeDtypeStruct((M, D), jnp.float32),
        scratch_shapes=[pltpu.VMEM((tm, D), jnp.float32),
                        pltpu.VMEM((tm, D), _COMPUTE_DTYPE)],
        compiler_params=pltpu.CompilerParams(
            dimension_semantics=("parallel", "arbitrary"),
            vmem_limit_bytes=_VMEM_LIMIT),
    )(x2d, gamma, beta, w1, b1, w2, b2)


# ----------------------------------------------------------------------------
# Kernel 4: standalone LayerNorm (only the final encoder LN needs one).
# ----------------------------------------------------------------------------

def _ln_kernel(x_ref, g_ref, b_ref, o_ref, *, eps):
    x = x_ref[...].astype(jnp.float32)
    mean = jnp.mean(x, axis=-1, keepdims=True)
    var = jnp.mean((x - mean) * (x - mean), axis=-1, keepdims=True)
    o_ref[...] = ((x - mean) * lax.rsqrt(var + eps) * g_ref[...]
                  + b_ref[...]).astype(o_ref.dtype)


def layernorm(x2d, gamma, beta, *, eps=1e-5, tm_cap=512):
    M, D = x2d.shape
    tm = _pick_tile(M, tm_cap)
    return pl.pallas_call(
        functools.partial(_ln_kernel, eps=eps),
        grid=(pl.cdiv(M, tm),),
        in_specs=[pl.BlockSpec((tm, D), lambda i: (i, 0)),
                  pl.BlockSpec((1, D), lambda i: (0, 0)),
                  pl.BlockSpec((1, D), lambda i: (0, 0))],
        out_specs=pl.BlockSpec((tm, D), lambda i: (i, 0)),
        out_shape=jax.ShapeDtypeStruct((M, D), jnp.float32),
        compiler_params=pltpu.CompilerParams(
            dimension_semantics=("parallel",),
            vmem_limit_bytes=_VMEM_LIMIT),
    )(x2d, gamma, beta)


# ----------------------------------------------------------------------------
# Parameter init (deterministic, in-script).  Weights bf16, biases/LN f32,
# biases / LN params pre-shaped to (1, N).  The 1/sqrt(Dh) attention scale is
# folded into Wq (and its — zero — bias would be scaled identically).
# ----------------------------------------------------------------------------

def init_block(key, d_model, d_ff, num_heads):
    ks = jax.random.split(key, 6)
    dh = d_model // num_heads
    scale = 1.0 / math.sqrt(dh)
    wk = jax.random.normal(ks[0], (d_model, d_model), jnp.float32) * 0.02
    wv = jax.random.normal(ks[1], (d_model, d_model), jnp.float32) * 0.02
    wq = jax.random.normal(ks[2], (d_model, d_model), jnp.float32) * 0.02 * scale
    wo = jax.random.normal(ks[3], (d_model, d_model), jnp.float32) * 0.02
    return {
        "ln1_g": jnp.ones((1, d_model), jnp.float32),
        "ln1_b": jnp.zeros((1, d_model), jnp.float32),
        # fused projection, column order (K, V, Q) so the KV pair is a single
        # leading-axis block and Q is the trailing block in [B,3,H,S,Dh].
        "wkvq": jnp.concatenate([wk, wv, wq], axis=1).astype(_COMPUTE_DTYPE),
        "bkvq": jnp.zeros((1, 3 * d_model), jnp.float32),
        "wo": wo.reshape(num_heads, dh, d_model).astype(_COMPUTE_DTYPE),
        "bo": jnp.zeros((1, d_model), jnp.float32),
        "ln2_g": jnp.ones((1, d_model), jnp.float32),
        "ln2_b": jnp.zeros((1, d_model), jnp.float32),
        "w1": (jax.random.normal(ks[4], (d_model, d_ff), jnp.float32)
               * 0.02).astype(_COMPUTE_DTYPE),
        "b1": jnp.zeros((1, d_ff), jnp.float32),
        "w2": (jax.random.normal(ks[5], (d_ff, d_model), jnp.float32)
               * 0.02).astype(_COMPUTE_DTYPE),
        "b2": jnp.zeros((1, d_model), jnp.float32),
    }


def init_params(key, *, in_chans, patch, d_model, d_ff, n_self, n_cross,
                num_heads, num_patches):
    ks = jax.random.split(key, 4 + n_self + n_cross)
    k_patch = in_chans * patch * patch
    return {
        "patch_w": (jax.random.normal(ks[0], (k_patch, d_model), jnp.float32)
                    * 0.02).astype(_COMPUTE_DTYPE),
        "patch_b": jnp.zeros((1, d_model), jnp.float32),
        "patch_ln_g": jnp.ones((1, k_patch), jnp.float32),   # dummy (apply_ln=False)
        "patch_ln_b": jnp.zeros((1, k_patch), jnp.float32),
        "cls": (jax.random.normal(ks[1], (1, 1, d_model), jnp.float32) * 0.02),
        "pos": (jax.random.normal(ks[2], (1, num_patches + 1, d_model),
                                  jnp.float32) * 0.02),
        "sa_blocks": [init_block(ks[4 + i], d_model, d_ff, num_heads)
                      for i in range(n_self)],
        "ca_blocks": [init_block(ks[4 + n_self + i], d_model, d_ff, num_heads)
                      for i in range(n_cross)],
        "ln_f_g": jnp.ones((1, d_model), jnp.float32),
        "ln_f_b": jnp.zeros((1, d_model), jnp.float32),
    }


# ----------------------------------------------------------------------------
# Model forward (glue in JAX, heavy compute in the three fused Pallas kernels)
# ----------------------------------------------------------------------------

def patch_embed(x_nchw, patch, params):
    B, C, H, W = x_nchw.shape
    hp, wp = H // patch, W // patch
    x = x_nchw.reshape(B, C, hp, patch, wp, patch)
    x = x.transpose(0, 2, 4, 1, 3, 5).reshape(B * hp * wp, C * patch * patch)
    y = ln_matmul(x, params["patch_ln_g"], params["patch_ln_b"],
                  params["patch_w"], params["patch_b"], apply_ln=False,
                  out_dtype=_COMPUTE_DTYPE)          # bf16 activations to HBM
    return y.reshape(B, hp * wp, -1)


def encoder_block(x, p, num_heads, *, cross=False):
    """Pre-LN transformer block.  cross=True: K/V taken from the swapped batch
    half (sketch<->image) via BlockSpec addressing inside attention_block."""
    B, S, D = x.shape
    H = num_heads
    Dh = D // H
    kvq = ln_matmul(x.reshape(B * S, D), p["ln1_g"], p["ln1_b"],
                    p["wkvq"], p["bkvq"], apply_ln=True,
                    out_dtype=_COMPUTE_DTYPE)        # [B*S, 3D] bf16
    # head-major layout [B, 3(K,V,Q), H, S, Dh] (one XLA relayout pass, bf16)
    kvq = kvq.reshape(B, S, 3, H, Dh).transpose(0, 2, 3, 1, 4)
    x = attention_block(kvq, x, p["wo"], p["bo"],
                        num_heads=num_heads, cross=cross)
    x = ffn_block(x.reshape(B * S, D), p["ln2_g"], p["ln2_b"],
                  p["w1"], p["b1"], p["w2"], p["b2"]).reshape(B, S, D)
    return x


def self_attention_module(params, x_nchw, *, patch, num_heads):
    """Returns (sa_feature [B, S, D], final_tokens, inds)."""
    tokens = patch_embed(x_nchw, patch, params)
    B, N, D = tokens.shape
    cls = jnp.broadcast_to(params["cls"], (B, 1, D)).astype(jnp.float32)
    x = jnp.concatenate([cls, tokens.astype(jnp.float32)], axis=1) + params["pos"]
    for blk in params["sa_blocks"]:
        x = encoder_block(x, blk, num_heads, cross=False)
    x = layernorm(x.reshape(B * (N + 1), D),
                  params["ln_f_g"], params["ln_f_b"]).reshape(B, N + 1, D)

    # TODO(synk): original token-selection rule unknown; rank patch tokens by
    # L2 norm and keep the top half (argsort stays in plain JAX).
    patch_tokens = x[:, 1:]
    scores = jnp.sqrt(jnp.sum(patch_tokens * patch_tokens, axis=-1))
    inds = jnp.argsort(-scores, axis=-1)[:, : max(1, N // 2)]
    final_tokens = jnp.take_along_axis(patch_tokens, inds[..., None], axis=1)
    return x, final_tokens, inds


def cross_attention_module(params, x, *, num_heads):
    for blk in params["ca_blocks"]:
        x = encoder_block(x, blk, num_heads, cross=True)
    return x


def model_forward(params, sk, im, *, patch, num_heads, stage="train"):
    if stage == "train":
        sk_im = jnp.concatenate([sk, im], axis=0)
        sa_feature, _final_tokens, _inds = self_attention_module(
            params, sk_im, patch=patch, num_heads=num_heads)
        ca_feature = cross_attention_module(params, sa_feature,
                                            num_heads=num_heads)
        cls_feature = ca_feature[:, 0]
        return cls_feature
    else:
        sa_feature, _final_tokens, inds = self_attention_module(
            params, sk, patch=patch, num_heads=num_heads)
        return sa_feature, inds


# ----------------------------------------------------------------------------
# Main
# ----------------------------------------------------------------------------

if __name__ == "__main__":
    # small config implied by the module: args.d_model, args.head, args.number,
    # args.d_ff
    B, C, H, W = 2, 3, 16, 16
    PATCH = 8
    D_MODEL = 32
    HEADS = 4
    D_FF = 64
    N_SELF = 1      # encoder depth inside SelfAttention
    N_CROSS = 1     # args.number
    NUM_PATCHES = (H // PATCH) * (W // PATCH)

    key = jax.random.PRNGKey(0)
    k_sk, k_im = jax.random.split(key)
    sk = jax.random.normal(k_sk, (B, C, H, W), dtype=jnp.float32)
    im = jax.random.normal(k_im, (B, C, H, W), dtype=jnp.float32)

    params = init_params(jax.random.PRNGKey(42),
                         in_chans=C, patch=PATCH, d_model=D_MODEL,
                         d_ff=D_FF, n_self=N_SELF, n_cross=N_CROSS,
                         num_heads=HEADS, num_patches=NUM_PATCHES)

    fwd = jax.jit(functools.partial(model_forward, patch=PATCH,
                                    num_heads=HEADS, stage="train"))
    cls_feature = fwd(params, sk, im)
    cls_feature = jax.block_until_ready(cls_feature)
    assert cls_feature.shape == (2 * B, D_MODEL)
    assert bool(jnp.all(jnp.isfinite(cls_feature)))
    print("KERNEL_OK")
</pallas_src>

<mosaic_0001>
module attributes {stable_mosaic.version = 11 : i64} {
  func.func @_ln_matmul_kernel(%arg0: i32, %arg1: i32, %arg2: memref<16x192xf32, #tpu.memory_space<vmem>>, %arg3: memref<1x192xf32, #tpu.memory_space<vmem>>, %arg4: memref<1x192xf32, #tpu.memory_space<vmem>>, %arg5: memref<192x32xbf16, #tpu.memory_space<vmem>>, %arg6: memref<1x32xf32, #tpu.memory_space<vmem>>, %arg7: memref<16x32xbf16, #tpu.memory_space<vmem>>) attributes {dimension_semantics = [#tpu.dimension_semantics<parallel>, #tpu.dimension_semantics<parallel>], iteration_bounds = array<i64: 1, 1>, scalar_prefetch = 0 : i64, scratch_operands = 0 : i64, tpu.core_type = #tpu.core_type<tc>, window_params = [{transform_indices = @transform_0, window_bounds = array<i64: 16, 192>}, {pipeline_mode = #tpu.pipeline_mode<synchronous>, transform_indices = @transform_1, window_bounds = array<i64: 1, 192>}, {pipeline_mode = #tpu.pipeline_mode<synchronous>, transform_indices = @transform_2, window_bounds = array<i64: 1, 192>}, {transform_indices = @transform_3, window_bounds = array<i64: 192, 32>}, {transform_indices = @transform_4, window_bounds = array<i64: 1, 32>}, {transform_indices = @transform_5, window_bounds = array<i64: 16, 32>}]} {
    %c0 = arith.constant 0 : index
    %c0_0 = arith.constant 0 : index
    %0 = vector.load %arg2[%c0, %c0_0] : memref<16x192xf32, #tpu.memory_space<vmem>>, vector<16x192xf32>
    %1 = arith.truncf %0 : vector<16x192xf32> to vector<16x192xbf16>
    %c0_1 = arith.constant 0 : index
    %c0_2 = arith.constant 0 : index
    %2 = vector.load %arg5[%c0_1, %c0_2] : memref<192x32xbf16, #tpu.memory_space<vmem>>, vector<192x32xbf16>
    %cst = arith.constant dense<0.000000e+00> : vector<16x32xf32>
    %3 = tpu.matmul %1, %2, %cst {dimension_numbers = #tpu.dot_dimension_numbers<[1], [0], [0], [1], [0, 0, 1, 1], [], []>} : vector<16x192xbf16>, vector<192x32xbf16>, vector<16x32xf32> -> vector<16x32xf32>
    %c0_3 = arith.constant 0 : index
    %c0_4 = arith.constant 0 : index
    %4 = vector.load %arg6[%c0_3, %c0_4] : memref<1x32xf32, #tpu.memory_space<vmem>>, vector<1x32xf32>
    %5 = vector.broadcast %4 : vector<1x32xf32> to vector<16x32xf32>
    %6 = arith.addf %3, %5 : vector<16x32xf32>
    %7 = arith.truncf %6 : vector<16x32xf32> to vector<16x32xbf16>
    %c0_5 = arith.constant 0 : index
    %c0_6 = arith.constant 0 : index
    %8 = vector.load %arg7[%c0_5, %c0_6] : memref<16x32xbf16, #tpu.memory_space<vmem>>, vector<16x32xbf16>
    tpu.vector_store %arg7[%c0_5, %c0_6], %7 {strides = array<i32>} : memref<16x32xbf16, #tpu.memory_space<vmem>>, vector<16x32xbf16>,
    return
  }
  func.func @transform_0(%arg0: i32, %arg1: i32) -> (i32, i32) {
    %c0_i32 = arith.constant 0 : i32
    %c0_i32_0 = arith.constant 0 : i32
    return %arg0, %c0_i32 : i32, i32
  }
  func.func @transform_1(%arg0: i32, %arg1: i32) -> (i32, i32) {
    %c0_i32 = arith.constant 0 : i32
    %c0_i32_0 = arith.constant 0 : i32
    %c0_i32_1 = arith.constant 0 : i32
    return %c0_i32, %c0_i32_0 : i32, i32
  }
  func.func @transform_2(%arg0: i32, %arg1: i32) -> (i32, i32) {
    %c0_i32 = arith.constant 0 : i32
    %c0_i32_0 = arith.constant 0 : i32
    %c0_i32_1 = arith.constant 0 : i32
    return %c0_i32, %c0_i32_0 : i32, i32
  }
  func.func @transform_3(%arg0: i32, %arg1: i32) -> (i32, i32) {
    %c0_i32 = arith.constant 0 : i32
    %c0_i32_0 = arith.constant 0 : i32
    return %c0_i32, %arg1 : i32, i32
  }
  func.func @transform_4(%arg0: i32, %arg1: i32) -> (i32, i32) {
    %c0_i32 = arith.constant 0 : i32
    %c0_i32_0 = arith.constant 0 : i32
    return %c0_i32, %arg1 : i32, i32
  }
  func.func @transform_5(%arg0: i32, %arg1: i32) -> (i32, i32) {
    %c0_i32 = arith.constant 0 : i32
    return %arg0, %arg1 : i32, i32
  }
}

module attributes {stable_mosaic.version = 11 : i64} {
  func.func @_ln_matmul_kernel(%arg0: i32, %arg1: i32, %arg2: memref<20x32xf32, #tpu.memory_space<vmem>>, %arg3: memref<1x32xf32, #tpu.memory_space<vmem>>, %arg4: memref<1x32xf32, #tpu.memory_space<vmem>>, %arg5: memref<32x96xbf16, #tpu.memory_space<vmem>>, %arg6: memref<1x96xf32, #tpu.memory_space<vmem>>, %arg7: memref<20x96xbf16, #tpu.memory_space<vmem>>) attributes {dimension_semantics = [#tpu.dimension_semantics<parallel>, #tpu.dimension_semantics<parallel>], iteration_bounds = array<i64: 1, 1>, scalar_prefetch = 0 : i64, scratch_operands = 0 : i64, tpu.core_type = #tpu.core_type<tc>, window_params = [{transform_indices = @transform_0, window_bounds = array<i64: 20, 32>}, {pipeline_mode = #tpu.pipeline_mode<synchronous>, transform_indices = @transform_1, window_bounds = array<i64: 1, 32>}, {pipeline_mode = #tpu.pipeline_mode<synchronous>, transform_indices = @transform_2, window_bounds = array<i64: 1, 32>}, {transform_indices = @transform_3, window_bounds = array<i64: 32, 96>}, {transform_indices = @transform_4, window_bounds = array<i64: 1, 96>}, {transform_indices = @transform_5, window_bounds = array<i64: 20, 96>}]} {
    %c0 = arith.constant 0 : index
    %c0_0 = arith.constant 0 : index
    %0 = vector.load %arg2[%c0, %c0_0] : memref<20x32xf32, #tpu.memory_space<vmem>>, vector<20x32xf32>
    %cst = arith.constant dense<0.000000e+00> : vector<20xf32>
    %1 = vector.multi_reduction <add>, %0, %cst [1] : vector<20x32xf32> to vector<20xf32>
    %2 = vector.shape_cast %1 : vector<20xf32> to vector<20x1xf32>
    %cst_1 = arith.constant 3.200000e+01 : f32
    %3 = vector.broadcast %cst_1 : f32 to vector<20x1xf32>
    %4 = arith.divf %2, %3 : vector<20x1xf32>
    %5 = vector.broadcast %4 : vector<20x1xf32> to vector<20x32xf32>
    %6 = arith.subf %0, %5 : vector<20x32xf32>
    %7 = vector.broadcast %4 : vector<20x1xf32> to vector<20x32xf32>
    %8 = arith.subf %0, %7 : vector<20x32xf32>
    %9 = arith.mulf %6, %8 : vector<20x32xf32>
    %cst_2 = arith.constant dense<0.000000e+00> : vector<20xf32>
    %10 = vector.multi_reduction <add>, %9, %cst_2 [1] : vector<20x32xf32> to vector<20xf32>
    %11 = vector.shape_cast %10 : vector<20xf32> to vector<20x1xf32>
    %cst_3 = arith.constant 3.200000e+01 : f32
    %12 = vector.broadcast %cst_3 : f32 to vector<20x1xf32>
    %13 = arith.divf %11, %12 : vector<20x1xf32>
    %14 = vector.broadcast %4 : vector<20x1xf32> to vector<20x32xf32>
    %15 = arith.subf %0, %14 : vector<20x32xf32>
    %cst_4 = arith.constant 9.99999974E-6 : f32
    %16 = vector.broadcast %cst_4 : f32 to vector<20x1xf32>
    %17 = arith.addf %13, %16 : vector<20x1xf32>
    %18 = math.rsqrt %17 : vector<20x1xf32>
    %19 = vector.broadcast %18 : vector<20x1xf32> to vector<20x32xf32>
    %20 = arith.mulf %15, %19 : vector<20x32xf32>
    %c0_5 = arith.constant 0 : index
    %c0_6 = arith.constant 0 : index
    %21 = vector.load %arg3[%c0_5, %c0_6] : memref<1x32xf32, #tpu.memory_space<vmem>>, vector<1x32xf32>
    %22 = vector.broadcast %21 : vector<1x32xf32> to vector<20x32xf32>
    %23 = arith.mulf %20, %22 : vector<20x32xf32>
    %c0_7 = arith.constant 0 : index
    %c0_8 = arith.constant 0 : index
    %24 = vector.load %arg4[%c0_7, %c0_8] : memref<1x32xf32, #tpu.memory_space<vmem>>, vector<1x32xf32>
    %25 = vector.broadcast %24 : vector<1x32xf32> to vector<20x32xf32>
    %26 = arith.addf %23, %25 : vector<20x32xf32>
    %27 = arith.truncf %26 : vector<20x32xf32> to vector<20x32xbf16>
    %c0_9 = arith.constant 0 : index
    %c0_10 = arith.constant 0 : index
    %28 = vector.load %arg5[%c0_9, %c0_10] : memref<32x96xbf16, #tpu.memory_space<vmem>>, vector<32x96xbf16>
    %cst_11 = arith.constant dense<0.000000e+00> : vector<20x96xf32>
    %29 = tpu.matmul %27, %28, %cst_11 {dimension_numbers = #tpu.dot_dimension_numbers<[1], [0], [0], [1], [0, 0, 1, 1], [], []>} : vector<20x32xbf16>, vector<32x96xbf16>, vector<20x96xf32> -> vector<20x96xf32>
    %c0_12 = arith.constant 0 : index
    %c0_13 = arith.constant 0 : index
    %30 = vector.load %arg6[%c0_12, %c0_13] : memref<1x96xf32, #tpu.memory_space<vmem>>, vector<1x96xf32>
    %31 = vector.broadcast %30 : vector<1x96xf32> to vector<20x96xf32>
    %32 = arith.addf %29, %31 : vector<20x96xf32>
    %33 = arith.truncf %32 : vector<20x96xf32> to vector<20x96xbf16>
    %c0_14 = arith.constant 0 : index
    %c0_15 = arith.constant 0 : index
    %34 = vector.load %arg7[%c0_14, %c0_15] : memref<20x96xbf16, #tpu.memory_space<vmem>>, vector<20x96xbf16>
    tpu.vector_store %arg7[%c0_14, %c0_15], %33 {strides = array<i32>} : memref<20x96xbf16, #tpu.memory_space<vmem>>, vector<20x96xbf16>,
    return
  }
  func.func @transform_0(%arg0: i32, %arg1: i32) -> (i32, i32) {
    %c0_i32 = arith.constant 0 : i32
    %c0_i32_0 = arith.constant 0 : i32
    return %arg0, %c0_i32 : i32, i32
  }
  func.func @transform_1(%arg0: i32, %arg1: i32) -> (i32, i32) {
    %c0_i32 = arith.constant 0 : i32
    %c0_i32_0 = arith.constant 0 : i32
    %c0_i32_1 = arith.constant 0 : i32
    return %c0_i32, %c0_i32_0 : i32, i32
  }
  func.func @transform_2(%arg0: i32, %arg1: i32) -> (i32, i32) {
    %c0_i32 = arith.constant 0 : i32
    %c0_i32_0 = arith.constant 0 : i32
    %c0_i32_1 = arith.constant 0 : i32
    return %c0_i32, %c0_i32_0 : i32, i32
  }
  func.func @transform_3(%arg0: i32, %arg1: i32) -> (i32, i32) {
    %c0_i32 = arith.constant 0 : i32
    %c0_i32_0 = arith.constant 0 : i32
    return %c0_i32, %arg1 : i32, i32
  }
  func.func @transform_4(%arg0: i32, %arg1: i32) -> (i32, i32) {
    %c0_i32 = arith.constant 0 : i32
    %c0_i32_0 = arith.constant 0 : i32
    return %c0_i32, %arg1 : i32, i32
  }
  func.func @transform_5(%arg0: i32, %arg1: i32) -> (i32, i32) {
    %c0_i32 = arith.constant 0 : i32
    return %arg0, %arg1 : i32, i32
  }
}

module attributes {stable_mosaic.version = 11 : i64} {
  func.func @_ffn_kernel(%arg0: i32, %arg1: i32, %arg2: memref<20x32xf32, #tpu.memory_space<vmem>>, %arg3: memref<1x32xf32, #tpu.memory_space<vmem>>, %arg4: memref<1x32xf32, #tpu.memory_space<vmem>>, %arg5: memref<32x64xbf16, #tpu.memory_space<vmem>>, %arg6: memref<1x64xf32, #tpu.memory_space<vmem>>, %arg7: memref<64x32xbf16, #tpu.memory_space<vmem>>, %arg8: memref<1x32xf32, #tpu.memory_space<vmem>>, %arg9: memref<20x32xf32, #tpu.memory_space<vmem>>, %arg10: memref<20x32xf32, #tpu.memory_space<vmem>>, %arg11: memref<20x32xbf16, #tpu.memory_space<vmem>>) attributes {dimension_semantics = [#tpu.dimension_semantics<parallel>, #tpu.dimension_semantics<arbitrary>], iteration_bounds = array<i64: 1, 1>, scalar_prefetch = 0 : i64, scratch_operands = 2 : i64, tpu.core_type = #tpu.core_type<tc>, window_params = [{transform_indices = @transform_0, window_bounds = array<i64: 20, 32>}, {pipeline_mode = #tpu.pipeline_mode<synchronous>, transform_indices = @transform_1, window_bounds = array<i64: 1, 32>}, {pipeline_mode = #tpu.pipeline_mode<synchronous>, transform_indices = @transform_2, window_bounds = array<i64: 1, 32>}, {transform_indices = @transform_3, window_bounds = array<i64: 32, 64>}, {transform_indices = @transform_4, window_bounds = array<i64: 1, 64>}, {transform_indices = @transform_5, window_bounds = array<i64: 64, 32>}, {pipeline_mode = #tpu.pipeline_mode<synchronous>, transform_indices = @transform_6, window_bounds = array<i64: 1, 32>}, {transform_indices = @transform_7, window_bounds = array<i64: 20, 32>}]} {
    %c0_i32 = arith.constant 0 : i32
    %0 = arith.cmpi eq, %arg1, %c0_i32 : i32
    %1 = arith.extui %0 : i1 to i32
    %c0_i32_0 = arith.constant 0 : i32
    %2 = arith.cmpi ne, %1, %c0_i32_0 : i32
    scf.if %2 {
      %c0_19 = arith.constant 0 : index
      %c0_20 = arith.constant 0 : index
      %31 = vector.load %arg2[%c0_19, %c0_20] : memref<20x32xf32, #tpu.memory_space<vmem>>, vector<20x32xf32>
      %cst_21 = arith.constant dense<0.000000e+00> : vector<20xf32>
      %32 = vector.multi_reduction <add>, %31, %cst_21 [1] : vector<20x32xf32> to vector<20xf32>
      %33 = vector.shape_cast %32 : vector<20xf32> to vector<20x1xf32>
      %cst_22 = arith.constant 3.200000e+01 : f32
      %34 = vector.broadcast %cst_22 : f32 to vector<20x1xf32>
      %35 = arith.divf %33, %34 : vector<20x1xf32>
      %36 = vector.broadcast %35 : vector<20x1xf32> to vector<20x32xf32>
      %37 = arith.subf %31, %36 : vector<20x32xf32>
      %38 = vector.broadcast %35 : vector<20x1xf32> to vector<20x32xf32>
      %39 = arith.subf %31, %38 : vector<20x32xf32>
      %40 = arith.mulf %37, %39 : vector<20x32xf32>
      %cst_23 = arith.constant dense<0.000000e+00> : vector<20xf32>
      %41 = vector.multi_reduction <add>, %40, %cst_23 [1] : vector<20x32xf32> to vector<20xf32>
      %42 = vector.shape_cast %41 : vector<20xf32> to vector<20x1xf32>
      %cst_24 = arith.constant 3.200000e+01 : f32
      %43 = vector.broadcast %cst_24 : f32 to vector<20x1xf32>
      %44 = arith.divf %42, %43 : vector<20x1xf32>
      %45 = vector.broadcast %35 : vector<20x1xf32> to vector<20x32xf32>
      %46 = arith.subf %31, %45 : vector<20x32xf32>
      %cst_25 = arith.constant 9.99999974E-6 : f32
      %47 = vector.broadcast %cst_25 : f32 to vector<20x1xf32>
      %48 = arith.addf %44, %47 : vector<20x1xf32>
      %49 = math.rsqrt %48 : vector<20x1xf32>
      %50 = vector.broadcast %49 : vector<20x1xf32> to vector<20x32xf32>
      %51 = arith.mulf %46, %50 : vector<20x32xf32>
      %c0_26 = arith.constant 0 : index
      %c0_27 = arith.constant 0 : index
      %52 = vector.load %arg3[%c0_26, %c0_27] : memref<1x32xf32, #tpu.memory_space<vmem>>, vector<1x32xf32>
      %53 = vector.broadcast %52 : vector<1x32xf32> to vector<20x32xf32>
      %54 = arith.mulf %51, %53 : vector<20x32xf32>
      %c0_28 = arith.constant 0 : index
      %c0_29 = arith.constant 0 : index
      %55 = vector.load %arg4[%c0_28, %c0_29] : memref<1x32xf32, #tpu.memory_space<vmem>>, vector<1x32xf32>
      %56 = vector.broadcast %55 : vector<1x32xf32> to vector<20x32xf32>
      %57 = arith.addf %54, %56 : vector<20x32xf32>
      %58 = arith.truncf %57 : vector<20x32xf32> to vector<20x32xbf16>
      %c0_30 = arith.constant 0 : index
      %c0_31 = arith.constant 0 : index
      %59 = vector.load %arg11[%c0_30, %c0_31] : memref<20x32xbf16, #tpu.memory_space<vmem>>, vector<20x32xbf16>
      tpu.vector_store %arg11[%c0_30, %c0_31], %58 {strides = array<i32>} : memref<20x32xbf16, #tpu.memory_space<vmem>>, vector<20x32xbf16>,
      %cst_32 = arith.constant 0.000000e+00 : f32
      %60 = vector.broadcast %cst_32 : f32 to vector<20x32xf32>
      %c0_33 = arith.constant 0 : index
      %c0_34 = arith.constant 0 : index
      %61 = vector.load %arg10[%c0_33, %c0_34] : memref<20x32xf32, #tpu.memory_space<vmem>>, vector<20x32xf32>
      tpu.vector_store %arg10[%c0_33, %c0_34], %60 {strides = array<i32>} : memref<20x32xf32, #tpu.memory_space<vmem>>, vector<20x32xf32>,
    } else {
    }
    %c0 = arith.constant 0 : index
    %c0_1 = arith.constant 0 : index
    %3 = vector.load %arg11[%c0, %c0_1] : memref<20x32xbf16, #tpu.memory_space<vmem>>, vector<20x32xbf16>
    %c0_2 = arith.constant 0 : index
    %c0_3 = arith.constant 0 : index
    %4 = vector.load %arg5[%c0_2, %c0_3] : memref<32x64xbf16, #tpu.memory_space<vmem>>, vector<32x64xbf16>
    %cst = arith.constant dense<0.000000e+00> : vector<20x64xf32>
    %5 = tpu.matmul %3, %4, %cst {dimension_numbers = #tpu.dot_dimension_numbers<[1], [0], [0], [1], [0, 0, 1, 1], [], []>} : vector<20x32xbf16>, vector<32x64xbf16>, vector<20x64xf32> -> vector<20x64xf32>
    %c0_4 = arith.constant 0 : index
    %c0_5 = arith.constant 0 : index
    %6 = vector.load %arg6[%c0_4, %c0_5] : memref<1x64xf32, #tpu.memory_space<vmem>>, vector<1x64xf32>
    %7 = vector.broadcast %6 : vector<1x64xf32> to vector<20x64xf32>
    %8 = arith.addf %5, %7 : vector<20x64xf32>
    %9 = arith.mulf %8, %8 : vector<20x64xf32>
    %10 = arith.mulf %8, %9 : vector<20x64xf32>
    %cst_6 = arith.constant 4.471500e-02 : f32
    %11 = vector.broadcast %cst_6 : f32 to vector<20x64xf32>
    %12 = arith.mulf %11, %10 : vector<20x64xf32>
    %13 = arith.addf %8, %12 : vector<20x64xf32>
    %cst_7 = arith.constant 0.797884583 : f32
    %14 = vector.broadcast %cst_7 : f32 to vector<20x64xf32>
    %15 = arith.mulf %14, %13 : vector<20x64xf32>
    %16 = math.tanh %15 : vector<20x64xf32>
    %cst_8 = arith.constant 1.000000e+00 : f32
    %17 = vector.broadcast %cst_8 : f32 to vector<20x64xf32>
    %18 = arith.addf %17, %16 : vector<20x64xf32>
    %cst_9 = arith.constant 5.000000e-01 : f32
    %19 = vector.broadcast %cst_9 : f32 to vector<20x64xf32>
    %20 = arith.mulf %19, %18 : vector<20x64xf32>
    %21 = arith.mulf %8, %20 : vector<20x64xf32>
    %c0_10 = arith.constant 0 : index
    %c0_11 = arith.constant 0 : index
    %22 = vector.load %arg10[%c0_10, %c0_11] : memref<20x32xf32, #tpu.memory_space<vmem>>, vector<20x32xf32>
    %23 = arith.truncf %21 : vector<20x64xf32> to vector<20x64xbf16>
    %c0_12 = arith.constant 0 : index
    %c0_13 = arith.constant 0 : index
    %24 = vector.load %arg7[%c0_12, %c0_13] : memref<64x32xbf16, #tpu.memory_space<vmem>>, vector<64x32xbf16>
    %cst_14 = arith.constant dense<0.000000e+00> : vector<20x32xf32>
    %25 = tpu.matmul %23, %24, %cst_14 {dimension_numbers = #tpu.dot_dimension_numbers<[1], [0], [0], [1], [0, 0, 1, 1], [], []>} : vector<20x64xbf16>, vector<64x32xbf16>, vector<20x32xf32> -> vector<20x32xf32>
    %26 = arith.addf %22, %25 : vector<20x32xf32>
    %c0_15 = arith.constant 0 : index
    %c0_16 = arith.constant 0 : index
    %27 = vector.load %arg10[%c0_15, %c0_16] : memref<20x32xf32, #tpu.memory_space<vmem>>, vector<20x32xf32>
    tpu.vector_store %arg10[%c0_15, %c0_16], %26 {strides = array<i32>} : memref<20x32xf32, #tpu.memory_space<vmem>>, vector<20x32xf32>,
    %c0_i32_17 = arith.constant 0 : i32
    %28 = arith.cmpi eq, %arg1, %c0_i32_17 : i32
    %29 = arith.extui %28 : i1 to i32
    %c0_i32_18 = arith.constant 0 : i32
    %30 = arith.cmpi ne, %29, %c0_i32_18 : i32
    scf.if %30 {
      %c0_19 = arith.constant 0 : index
      %c0_20 = arith.constant 0 : index
      %31 = vector.load %arg2[%c0_19, %c0_20] : memref<20x32xf32, #tpu.memory_space<vmem>>, vector<20x32xf32>
      %c0_21 = arith.constant 0 : index
      %c0_22 = arith.constant 0 : index
      %32 = vector.load %arg10[%c0_21, %c0_22] : memref<20x32xf32, #tpu.memory_space<vmem>>, vector<20x32xf32>
      %33 = arith.addf %31, %32 : vector<20x32xf32>
      %c0_23 = arith.constant 0 : index
      %c0_24 = arith.constant 0 : index
      %34 = vector.load %arg8[%c0_23, %c0_24] : memref<1x32xf32, #tpu.memory_space<vmem>>, vector<1x32xf32>
      %35 = vector.broadcast %34 : vector<1x32xf32> to vector<20x32xf32>
      %36 = arith.addf %33, %35 : vector<20x32xf32>
      %c0_25 = arith.constant 0 : index
      %c0_26 = arith.constant 0 : index
      %37 = vector.load %arg9[%c0_25, %c0_26] : memref<20x32xf32, #tpu.memory_space<vmem>>, vector<20x32xf32>
      tpu.vector_store %arg9[%c0_25, %c0_26], %36 {strides = array<i32>} : memref<20x32xf32, #tpu.memory_space<vmem>>, vector<20x32xf32>,
    } else {
    }
    return
  }
  func.func @transform_0(%arg0: i32, %arg1: i32) -> (i32, i32) {
    %c0_i32 = arith.constant 0 : i32
    %c0_i32_0 = arith.constant 0 : i32
    return %arg0, %c0_i32 : i32, i32
  }
  func.func @transform_1(%arg0: i32, %arg1: i32) -> (i32, i32) {
    %c0_i32 = arith.constant 0 : i32
    %c0_i32_0 = arith.constant 0 : i32
    %c0_i32_1 = arith.constant 0 : i32
    return %c0_i32, %c0_i32_0 : i32, i32
  }
  func.func @transform_2(%arg0: i32, %arg1: i32) -> (i32, i32) {
    %c0_i32 = arith.constant 0 : i32
    %c0_i32_0 = arith.constant 0 : i32
    %c0_i32_1 = arith.constant 0 : i32
    return %c0_i32, %c0_i32_0 : i32, i32
  }
  func.func @transform_3(%arg0: i32, %arg1: i32) -> (i32, i32) {
    %c0_i32 = arith.constant 0 : i32
    %c0_i32_0 = arith.constant 0 : i32
    return %c0_i32, %arg1 : i32, i32
  }
  func.func @transform_4(%arg0: i32, %arg1: i32) -> (i32, i32) {
    %c0_i32 = arith.constant 0 : i32
    %c0_i32_0 = arith.constant 0 : i32
    return %c0_i32, %arg1 : i32, i32
  }
  func.func @transform_5(%arg0: i32, %arg1: i32) -> (i32, i32) {
    %c0_i32 = arith.constant 0 : i32
    %c0_i32_0 = arith.constant 0 : i32
    return %arg1, %c0_i32 : i32, i32
  }
  func.func @transform_6(%arg0: i32, %arg1: i32) -> (i32, i32) {
    %c0_i32 = arith.constant 0 : i32
    %c0_i32_0 = arith.constant 0 : i32
    %c0_i32_1 = arith.constant 0 : i32
    return %c0_i32, %c0_i32_0 : i32, i32
  }
  func.func @transform_7(%arg0: i32, %arg1: i32) -> (i32, i32) {
    %c0_i32 = arith.constant 0 : i32
    %c0_i32_0 = arith.constant 0 : i32
    return %arg0, %c0_i32 : i32, i32
  }
}

module attributes {stable_mosaic.version = 11 : i64} {
  func.func @_attn_kernel(%arg0: i32, %arg1: i32, %arg2: memref<1x1x4x5x8xbf16, #tpu.memory_space<vmem>>, %arg3: memref<1x2x4x5x8xbf16, #tpu.memory_space<vmem>>, %arg4: memref<1x5x32xf32, #tpu.memory_space<vmem>>, %arg5: memref<4x8x32xbf16, #tpu.memory_space<vmem>>, %arg6: memref<1x32xf32, #tpu.memory_space<vmem>>, %arg7: memref<1x5x32xf32, #tpu.memory_space<vmem>>, %arg8: memref<5x32xf32, #tpu.memory_space<vmem>>) attributes {dimension_semantics = [#tpu.dimension_semantics<parallel>, #tpu.dimension_semantics<parallel>], iteration_bounds = array<i64: 4, 1>, scalar_prefetch = 0 : i64, scratch_operands = 1 : i64, tpu.core_type = #tpu.core_type<tc>, window_params = [{transform_indices = @transform_0, window_bounds = array<i64: 1, 1, 4, 5, 8>}, {transform_indices = @transform_1, window_bounds = array<i64: 1, 2, 4, 5, 8>}, {transform_indices = @transform_2, window_bounds = array<i64: 1, 5, 32>}, {pipeline_mode = #tpu.pipeline_mode<synchronous>, transform_indices = @transform_3, window_bounds = array<i64: 4, 8, 32>}, {pipeline_mode = #tpu.pipeline_mode<synchronous>, transform_indices = @transform_4, window_bounds = array<i64: 1, 32>}, {transform_indices = @transform_5, window_bounds = array<i64: 1, 5, 32>}]} {
    %cst = arith.constant 0.000000e+00 : f32
    %0 = vector.broadcast %cst : f32 to vector<5x32xf32>
    %c0 = arith.constant 0 : index
    %c0_0 = arith.constant 0 : index
    %1 = vector.load %arg8[%c0, %c0_0] : memref<5x32xf32, #tpu.memory_space<vmem>>, vector<5x32xf32>
    tpu.vector_store %arg8[%c0, %c0_0], %0 {strides = array<i32>} : memref<5x32xf32, #tpu.memory_space<vmem>>, vector<5x32xf32>,
    %c0_1 = arith.constant 0 : index
    %c0_2 = arith.constant 0 : index
    %c0_3 = arith.constant 0 : index
    %c0_4 = arith.constant 0 : index
    %c0_5 = arith.constant 0 : index
    %2 = vector.load %arg2[%c0_1, %c0_2, %c0_3, %c0_4, %c0_5] : memref<1x1x4x5x8xbf16, #tpu.memory_space<vmem>>, vector<1x1x1x5x8xbf16>
    %3 = vector.shape_cast %2 : vector<1x1x1x5x8xbf16> to vector<5x8xbf16>
    %c0_6 = arith.constant 0 : index
    %c0_7 = arith.constant 0 : index
    %c0_8 = arith.constant 0 : index
    %c0_9 = arith.constant 0 : index
    %c0_10 = arith.constant 0 : index
    %4 = vector.load %arg3[%c0_6, %c0_7, %c0_8, %c0_9, %c0_10] : memref<1x2x4x5x8xbf16, #tpu.memory_space<vmem>>, vector<1x1x1x5x8xbf16>
    %5 = vector.shape_cast %4 : vector<1x1x1x5x8xbf16> to vector<5x8xbf16>
    %c0_11 = arith.constant 0 : index
    %c1 = arith.constant 1 : index
    %c0_12 = arith.constant 0 : index
    %c0_13 = arith.constant 0 : index
    %c0_14 = arith.constant 0 : index
    %6 = vector.load %arg3[%c0_11, %c1, %c0_12, %c0_13, %c0_14] : memref<1x2x4x5x8xbf16, #tpu.memory_space<vmem>>, vector<1x1x1x5x8xbf16>
    %7 = vector.shape_cast %6 : vector<1x1x1x5x8xbf16> to vector<5x8xbf16>
    %cst_15 = arith.constant dense<0.000000e+00> : vector<5x5xf32>
    %8 = tpu.matmul %3, %5, %cst_15 {dimension_numbers = #tpu.dot_dimension_numbers<[1], [1], [0], [0], [0, 0, 1, 0], [], []>} : vector<5x8xbf16>, vector<5x8xbf16>, vector<5x5xf32> -> vector<5x5xf32>
    %cst_16 = arith.constant dense<0xFF800000> : vector<5xf32>
    %9 = vector.multi_reduction <maximumf>, %8, %cst_16 [1] : vector<5x5xf32> to vector<5xf32>
    %10 = vector.shape_cast %9 : vector<5xf32> to vector<5x1xf32>
    %11 = vector.broadcast %10 : vector<5x1xf32> to vector<5x5xf32>
    %12 = arith.subf %8, %11 : vector<5x5xf32>
    %13 = math.exp %12 : vector<5x5xf32>
    %cst_17 = arith.constant dense<0.000000e+00> : vector<5xf32>
    %14 = vector.multi_reduction <add>, %13, %cst_17 [1] : vector<5x5xf32> to vector<5xf32>
    %15 = vector.shape_cast %14 : vector<5xf32> to vector<5x1xf32>
    %16 = tpu.reciprocal %15 {approx = true} : vector<5x1xf32> -> vector<5x1xf32>
    %17 = vector.broadcast %16 : vector<5x1xf32> to vector<5x5xf32>
    %18 = arith.mulf %13, %17 : vector<5x5xf32>
    %19 = arith.truncf %18 : vector<5x5xf32> to vector<5x5xbf16>
    %cst_18 = arith.constant dense<0.000000e+00> : vector<5x8xf32>
    %20 = tpu.matmul %19, %7, %cst_18 {dimension_numbers = #tpu.dot_dimension_numbers<[1], [0], [0], [1], [0, 0, 1, 1], [], []>} : vector<5x5xbf16>, vector<5x8xbf16>, vector<5x8xf32> -> vector<5x8xf32>
    %c0_19 = arith.constant 0 : index
    %c0_20 = arith.constant 0 : index
    %21 = vector.load %arg8[%c0_19, %c0_20] : memref<5x32xf32, #tpu.memory_space<vmem>>, vector<5x32xf32>
    %22 = arith.truncf %20 : vector<5x8xf32> to vector<5x8xbf16>
    %c0_21 = arith.constant 0 : index
    %c0_22 = arith.constant 0 : index
    %c0_23 = arith.constant 0 : index
    %23 = vector.load %arg5[%c0_21, %c0_22, %c0_23] : memref<4x8x32xbf16, #tpu.memory_space<vmem>>, vector<1x8x32xbf16>
    %24 = vector.shape_cast %23 : vector<1x8x32xbf16> to vector<8x32xbf16>
    %cst_24 = arith.constant dense<0.000000e+00> : vector<5x32xf32>
    %25 = tpu.matmul %22, %24, %cst_24 {dimension_numbers = #tpu.dot_dimension_numbers<[1], [0], [0], [1], [0, 0, 1, 1], [], []>} : vector<5x8xbf16>, vector<8x32xbf16>, vector<5x32xf32> -> vector<5x32xf32>
    %26 = arith.addf %21, %25 : vector<5x32xf32>
    %c0_25 = arith.constant 0 : index
    %c0_26 = arith.constant 0 : index
    %27 = vector.load %arg8[%c0_25, %c0_26] : memref<5x32xf32, #tpu.memory_space<vmem>>, vector<5x32xf32>
    tpu.vector_store %arg8[%c0_25, %c0_26], %26 {strides = array<i32>} : memref<5x32xf32, #tpu.memory_space<vmem>>, vector<5x32xf32>,
    %c0_27 = arith.constant 0 : index
    %c0_28 = arith.constant 0 : index
    %c1_29 = arith.constant 1 : index
    %c0_30 = arith.constant 0 : index
    %c0_31 = arith.constant 0 : index
    %28 = vector.load %arg2[%c0_27, %c0_28, %c1_29, %c0_30, %c0_31] : memref<1x1x4x5x8xbf16, #tpu.memory_space<vmem>>, vector<1x1x1x5x8xbf16>
    %29 = vector.shape_cast %28 : vector<1x1x1x5x8xbf16> to vector<5x8xbf16>
    %c0_32 = arith.constant 0 : index
    %c0_33 = arith.constant 0 : index
    %c1_34 = arith.constant 1 : index
    %c0_35 = arith.constant 0 : index
    %c0_36 = arith.constant 0 : index
    %30 = vector.load %arg3[%c0_32, %c0_33, %c1_34, %c0_35, %c0_36] : memref<1x2x4x5x8xbf16, #tpu.memory_space<vmem>>, vector<1x1x1x5x8xbf16>
    %31 = vector.shape_cast %30 : vector<1x1x1x5x8xbf16> to vector<5x8xbf16>
    %c0_37 = arith.constant 0 : index
    %c1_38 = arith.constant 1 : index
    %c1_39 = arith.constant 1 : index
    %c0_40 = arith.constant 0 : index
    %c0_41 = arith.constant 0 : index
    %32 = vector.load %arg3[%c0_37, %c1_38, %c1_39, %c0_40, %c0_41] : memref<1x2x4x5x8xbf16, #tpu.memory_space<vmem>>, vector<1x1x1x5x8xbf16>
    %33 = vector.shape_cast %32 : vector<1x1x1x5x8xbf16> to vector<5x8xbf16>
    %cst_42 = arith.constant dense<0.000000e+00> : vector<5x5xf32>
    %34 = tpu.matmul %29, %31, %cst_42 {dimension_numbers = #tpu.dot_dimension_numbers<[1], [1], [0], [0], [0, 0, 1, 0], [], []>} : vector<5x8xbf16>, vector<5x8xbf16>, vector<5x5xf32> -> vector<5x5xf32>
    %cst_43 = arith.constant dense<0xFF800000> : vector<5xf32>
    %35 = vector.multi_reduction <maximumf>, %34, %cst_43 [1] : vector<5x5xf32> to vector<5xf32>
    %36 = vector.shape_cast %35 : vector<5xf32> to vector<5x1xf32>
    %37 = vector.broadcast %36 : vector<5x1xf32> to vector<5x5xf32>
    %38 = arith.subf %34, %37 : vector<5x5xf32>
    %39 = math.exp %38 : vector<5x5xf32>
    %cst_44 = arith.constant dense<0.000000e+00> : vector<5xf32>
    %40 = vector.multi_reduction <add>, %39, %cst_44 [1] : vector<5x5xf32> to vector<5xf32>
    %41 = vector.shape_cast %40 : vector<5xf32> to vector<5x1xf32>
    %42 = tpu.reciprocal %41 {approx = true} : vector<5x1xf32> -> vector<5x1xf32>
    %43 = vector.broadcast %42 : vector<5x1xf32> to vector<5x5xf32>
    %44 = arith.mulf %39, %43 : vector<5x5xf32>
    %45 = arith.truncf %44 : vector<5x5xf32> to vector<5x5xbf16>
    %cst_45 = arith.constant dense<0.000000e+00> : vector<5x8xf32>
    %46 = tpu.matmul %45, %33, %cst_45 {dimension_numbers = #tpu.dot_dimension_numbers<[1], [0], [0], [1], [0, 0, 1, 1], [], []>} : vector<5x5xbf16>, vector<5x8xbf16>, vector<5x8xf32> -> vector<5x8xf32>
    %c0_46 = arith.constant 0 : index
    %c0_47 = arith.constant 0 : index
    %47 = vector.load %arg8[%c0_46, %c0_47] : memref<5x32xf32, #tpu.memory_space<vmem>>, vector<5x32xf32>
    %48 = arith.truncf %46 : vector<5x8xf32> to vector<5x8xbf16>
    %c1_48 = arith.constant 1 : index
    %c0_49 = arith.constant 0 : index
    %c0_50 = arith.constant 0 : index
    %49 = vector.load %arg5[%c1_48, %c0_49, %c0_50] : memref<4x8x32xbf16, #tpu.memory_space<vmem>>, vector<1x8x32xbf16>
    %50 = vector.shape_cast %49 : vector<1x8x32xbf16> to vector<8x32xbf16>
    %cst_51 = arith.constant dense<0.000000e+00> : vector<5x32xf32>
    %51 = tpu.matmul %48, %50, %cst_51 {dimension_numbers = #tpu.dot_dimension_numbers<[1], [0], [0], [1], [0, 0, 1, 1], [], []>} : vector<5x8xbf16>, vector<8x32xbf16>, vector<5x32xf32> -> vector<5x32xf32>
    %52 = arith.addf %47, %51 : vector<5x32xf32>
    %c0_52 = arith.constant 0 : index
    %c0_53 = arith.constant 0 : index
    %53 = vector.load %arg8[%c0_52, %c0_53] : memref<5x32xf32, #tpu.memory_space<vmem>>, vector<5x32xf32>
    tpu.vector_store %arg8[%c0_52, %c0_53], %52 {strides = array<i32>} : memref<5x32xf32, #tpu.memory_space<vmem>>, vector<5x32xf32>,
    %c0_54 = arith.constant 0 : index
    %c0_55 = arith.constant 0 : index
    %c2 = arith.constant 2 : index
    %c0_56 = arith.constant 0 : index
    %c0_57 = arith.constant 0 : index
    %54 = vector.load %arg2[%c0_54, %c0_55, %c2, %c0_56, %c0_57] : memref<1x1x4x5x8xbf16, #tpu.memory_space<vmem>>, vector<1x1x1x5x8xbf16>
    %55 = vector.shape_cast %54 : vector<1x1x1x5x8xbf16> to vector<5x8xbf16>
    %c0_58 = arith.constant 0 : index
    %c0_59 = arith.constant 0 : index
    %c2_60 = arith.constant 2 : index
    %c0_61 = arith.constant 0 : index
    %c0_62 = arith.constant 0 : index
    %56 = vector.load %arg3[%c0_58, %c0_59, %c2_60, %c0_61, %c0_62] : memref<1x2x4x5x8xbf16, #tpu.memory_space<vmem>>, vector<1x1x1x5x8xbf16>
    %57 = vector.shape_cast %56 : vector<1x1x1x5x8xbf16> to vector<5x8xbf16>
    %c0_63 = arith.constant 0 : index
    %c1_64 = arith.constant 1 : index
    %c2_65 = arith.constant 2 : index
    %c0_66 = arith.constant 0 : index
    %c0_67 = arith.constant 0 : index
    %58 = vector.load %arg3[%c0_63, %c1_64, %c2_65, %c0_66, %c0_67] : memref<1x2x4x5x8xbf16, #tpu.memory_space<vmem>>, vector<1x1x1x5x8xbf16>
    %59 = vector.shape_cast %58 : vector<1x1x1x5x8xbf16> to vector<5x8xbf16>
    %cst_68 = arith.constant dense<0.000000e+00> : vector<5x5xf32>
    %60 = tpu.matmul %55, %57, %cst_68 {dimension_numbers = #tpu.dot_dimension_numbers<[1], [1], [0], [0], [0, 0, 1, 0], [], []>} : vector<5x8xbf16>, vector<5x8xbf16>, vector<5x5xf32> -> vector<5x5xf32>
    %cst_69 = arith.constant dense<0xFF800000> : vector<5xf32>
    %61 = vector.multi_reduction <maximumf>, %60, %cst_69 [1] : vector<5x5xf32> to vector<5xf32>
    %62 = vector.shape_cast %61 : vector<5xf32> to vector<5x1xf32>
    %63 = vector.broadcast %62 : vector<5x1xf32> to vector<5x5xf32>
    %64 = arith.subf %60, %63 : vector<5x5xf32>
    %65 = math.exp %64 : vector<5x5xf32>
    %cst_70 = arith.constant dense<0.000000e+00> : vector<5xf32>
    %66 = vector.multi_reduction <add>, %65, %cst_70 [1] : vector<5x5xf32> to vector<5xf32>
    %67 = vector.shape_cast %66 : vector<5xf32> to vector<5x1xf32>
    %68 = tpu.reciprocal %67 {approx = true} : vector<5x1xf32> -> vector<5x1xf32>
    %69 = vector.broadcast %68 : vector<5x1xf32> to vector<5x5xf32>
    %70 = arith.mulf %65, %69 : vector<5x5xf32>
    %71 = arith.truncf %70 : vector<5x5xf32> to vector<5x5xbf16>
    %cst_71 = arith.constant dense<0.000000e+00> : vector<5x8xf32>
    %72 = tpu.matmul %71, %59, %cst_71 {dimension_numbers = #tpu.dot_dimension_numbers<[1], [0], [0], [1], [0, 0, 1, 1], [], []>} : vector<5x5xbf16>, vector<5x8xbf16>, vector<5x8xf32> -> vector<5x8xf32>
    %c0_72 = arith.constant 0 : index
    %c0_73 = arith.constant 0 : index
    %73 = vector.load %arg8[%c0_72, %c0_73] : memref<5x32xf32, #tpu.memory_space<vmem>>, vector<5x32xf32>
    %74 = arith.truncf %72 : vector<5x8xf32> to vector<5x8xbf16>
    %c2_74 = arith.constant 2 : index
    %c0_75 = arith.constant 0 : index
    %c0_76 = arith.constant 0 : index
    %75 = vector.load %arg5[%c2_74, %c0_75, %c0_76] : memref<4x8x32xbf16, #tpu.memory_space<vmem>>, vector<1x8x32xbf16>
    %76 = vector.shape_cast %75 : vector<1x8x32xbf16> to vector<8x32xbf16>
    %cst_77 = arith.constant dense<0.000000e+00> : vector<5x32xf32>
    %77 = tpu.matmul %74, %76, %cst_77 {dimension_numbers = #tpu.dot_dimension_numbers<[1], [0], [0], [1], [0, 0, 1, 1], [], []>} : vector<5x8xbf16>, vector<8x32xbf16>, vector<5x32xf32> -> vector<5x32xf32>
    %78 = arith.addf %73, %77 : vector<5x32xf32>
    %c0_78 = arith.constant 0 : index
    %c0_79 = arith.constant 0 : index
    %79 = vector.load %arg8[%c0_78, %c0_79] : memref<5x32xf32, #tpu.memory_space<vmem>>, vector<5x32xf32>
    tpu.vector_store %arg8[%c0_78, %c0_79], %78 {strides = array<i32>} : memref<5x32xf32, #tpu.memory_space<vmem>>, vector<5x32xf32>,
    %c0_80 = arith.constant 0 : index
    %c0_81 = arith.constant 0 : index
    %c3 = arith.constant 3 : index
    %c0_82 = arith.constant 0 : index
    %c0_83 = arith.constant 0 : index
    %80 = vector.load %arg2[%c0_80, %c0_81, %c3, %c0_82, %c0_83] : memref<1x1x4x5x8xbf16, #tpu.memory_space<vmem>>, vector<1x1x1x5x8xbf16>
    %81 = vector.shape_cast %80 : vector<1x1x1x5x8xbf16> to vector<5x8xbf16>
    %c0_84 = arith.constant 0 : index
    %c0_85 = arith.constant 0 : index
    %c3_86 = arith.constant 3 : index
    %c0_87 = arith.constant 0 : index
    %c0_88 = arith.constant 0 : index
    %82 = vector.load %arg3[%c0_84, %c0_85, %c3_86, %c0_87, %c0_88] : memref<1x2x4x5x8xbf16, #tpu.memory_space<vmem>>, vector<1x1x1x5x8xbf16>
    %83 = vector.shape_cast %82 : vector<1x1x1x5x8xbf16> to vector<5x8xbf16>
    %c0_89 = arith.constant 0 : index
    %c1_90 = arith.constant 1 : index
    %c3_91 = arith.constant 3 : index
    %c0_92 = arith.constant 0 : index
    %c0_93 = arith.constant 0 : index
    %84 = vector.load %arg3[%c0_89, %c1_90, %c3_91, %c0_92, %c0_93] : memref<1x2x4x5x8xbf16, #tpu.memory_space<vmem>>, vector<1x1x1x5x8xbf16>
    %85 = vector.shape_cast %84 : vector<1x1x1x5x8xbf16> to vector<5x8xbf16>
    %cst_94 = arith.constant dense<0.000000e+00> : vector<5x5xf32>
    %86 = tpu.matmul %81, %83, %cst_94 {dimension_numbers = #tpu.dot_dimension_numbers<[1], [1], [0], [0], [0, 0, 1, 0], [], []>} : vector<5x8xbf16>, vector<5x8xbf16>, vector<5x5xf32> -> vector<5x5xf32>
    %cst_95 = arith.constant dense<0xFF800000> : vector<5xf32>
    %87 = vector.multi_reduction <maximumf>, %86, %cst_95 [1] : vector<5x5xf32> to vector<5xf32>
    %88 = vector.shape_cast %87 : vector<5xf32> to vector<5x1xf32>
    %89 = vector.broadcast %88 : vector<5x1xf32> to vector<5x5xf32>
    %90 = arith.subf %86, %89 : vector<5x5xf32>
    %91 = math.exp %90 : vector<5x5xf32>
    %cst_96 = arith.constant dense<0.000000e+00> : vector<5xf32>
    %92 = vector.multi_reduction <add>, %91, %cst_96 [1] : vector<5x5xf32> to vector<5xf32>
    %93 = vector.shape_cast %92 : vector<5xf32> to vector<5x1xf32>
    %94 = tpu.reciprocal %93 {approx = true} : vector<5x1xf32> -> vector<5x1xf32>
    %95 = vector.broadcast %94 : vector<5x1xf32> to vector<5x5xf32>
    %96 = arith.mulf %91, %95 : vector<5x5xf32>
    %97 = arith.truncf %96 : vector<5x5xf32> to vector<5x5xbf16>
    %cst_97 = arith.constant dense<0.000000e+00> : vector<5x8xf32>
    %98 = tpu.matmul %97, %85, %cst_97 {dimension_numbers = #tpu.dot_dimension_numbers<[1], [0], [0], [1], [0, 0, 1, 1], [], []>} : vector<5x5xbf16>, vector<5x8xbf16>, vector<5x8xf32> -> vector<5x8xf32>
    %c0_98 = arith.constant 0 : index
    %c0_99 = arith.constant 0 : index
    %99 = vector.load %arg8[%c0_98, %c0_99] : memref<5x32xf32, #tpu.memory_space<vmem>>, vector<5x32xf32>
    %100 = arith.truncf %98 : vector<5x8xf32> to vector<5x8xbf16>
    %c3_100 = arith.constant 3 : index
    %c0_101 = arith.constant 0 : index
    %c0_102 = arith.constant 0 : index
    %101 = vector.load %arg5[%c3_100, %c0_101, %c0_102] : memref<4x8x32xbf16, #tpu.memory_space<vmem>>, vector<1x8x32xbf16>
    %102 = vector.shape_cast %101 : vector<1x8x32xbf16> to vector<8x32xbf16>
    %cst_103 = arith.constant dense<0.000000e+00> : vector<5x32xf32>
    %103 = tpu.matmul %100, %102, %cst_103 {dimension_numbers = #tpu.dot_dimension_numbers<[1], [0], [0], [1], [0, 0, 1, 1], [], []>} : vector<5x8xbf16>, vector<8x32xbf16>, vector<5x32xf32> -> vector<5x32xf32>
    %104 = arith.addf %99, %103 : vector<5x32xf32>
    %c0_104 = arith.constant 0 : index
    %c0_105 = arith.constant 0 : index
    %105 = vector.load %arg8[%c0_104, %c0_105] : memref<5x32xf32, #tpu.memory_space<vmem>>, vector<5x32xf32>
    tpu.vector_store %arg8[%c0_104, %c0_105], %104 {strides = array<i32>} : memref<5x32xf32, #tpu.memory_space<vmem>>, vector<5x32xf32>,
    %c0_106 = arith.constant 0 : index
    %c0_107 = arith.constant 0 : index
    %c0_108 = arith.constant 0 : index
    %106 = vector.load %arg4[%c0_106, %c0_107, %c0_108] : memref<1x5x32xf32, #tpu.memory_space<vmem>>, vector<1x5x32xf32>
    %107 = vector.shape_cast %106 : vector<1x5x32xf32> to vector<5x32xf32>
    %c0_109 = arith.constant 0 : index
    %c0_110 = arith.constant 0 : index
    %108 = vector.load %arg8[%c0_109, %c0_110] : memref<5x32xf32, #tpu.memory_space<vmem>>, vector<5x32xf32>
    %109 = arith.addf %107, %108 : vector<5x32xf32>
    %c0_111 = arith.constant 0 : index
    %c0_112 = arith.constant 0 : index
    %110 = vector.load %arg6[%c0_111, %c0_112] : memref<1x32xf32, #tpu.memory_space<vmem>>, vector<1x32xf32>
    %111 = vector.broadcast %110 : vector<1x32xf32> to vector<5x32xf32>
    %112 = arith.addf %109, %111 : vector<5x32xf32>
    %c0_113 = arith.constant 0 : index
    %c0_114 = arith.constant 0 : index
    %c0_115 = arith.constant 0 : index
    %113 = vector.load %arg7[%c0_113, %c0_114, %c0_115] : memref<1x5x32xf32, #tpu.memory_space<vmem>>, vector<1x5x32xf32>
    %114 = vector.shape_cast %113 : vector<1x5x32xf32> to vector<5x32xf32>
    %115 = vector.shape_cast %112 : vector<5x32xf32> to vector<1x5x32xf32>
    tpu.vector_store %arg7[%c0_113, %c0_114, %c0_115], %115 {strides = array<i32>} : memref<1x5x32xf32, #tpu.memory_space<vmem>>, vector<1x5x32xf32>,
    return
  }
  func.func @transform_0(%arg0: i32, %arg1: i32) -> (i32, i32, i32, i32, i32) {
    %c2_i32 = arith.constant 2 : i32
    %c0_i32 = arith.constant 0 : i32
    %c0_i32_0 = arith.constant 0 : i32
    %c0_i32_1 = arith.constant 0 : i32
    return %arg0, %c2_i32, %c0_i32, %arg1, %c0_i32_0 : i32, i32, i32, i32, i32
  }
  func.func @transform_1(%arg0: i32, %arg1: i32) -> (i32, i32, i32, i32, i32) {
    %c0_i32 = arith.constant 0 : i32
    %c0_i32_0 = arith.constant 0 : i32
    %c0_i32_1 = arith.constant 0 : i32
    %c0_i32_2 = arith.constant 0 : i32
    %c0_i32_3 = arith.constant 0 : i32
    return %arg0, %c0_i32, %c0_i32_0, %c0_i32_1, %c0_i32_2 : i32, i32, i32, i32, i32
  }
  func.func @transform_2(%arg0: i32, %arg1: i32) -> (i32, i32, i32) {
    %c0_i32 = arith.constant 0 : i32
    %c0_i32_0 = arith.constant 0 : i32
    return %arg0, %arg1, %c0_i32 : i32, i32, i32
  }
  func.func @transform_3(%arg0: i32, %arg1: i32) -> (i32, i32, i32) {
    %c0_i32 = arith.constant 0 : i32
    %c0_i32_0 = arith.constant 0 : i32
    %c0_i32_1 = arith.constant 0 : i32
    %c0_i32_2 = arith.constant 0 : i32
    return %c0_i32, %c0_i32_0, %c0_i32_1 : i32, i32, i32
  }
  func.func @transform_4(%arg0: i32, %arg1: i32) -> (i32, i32) {
    %c0_i32 = arith.constant 0 : i32
    %c0_i32_0 = arith.constant 0 : i32
    %c0_i32_1 = arith.constant 0 : i32
    return %c0_i32, %c0_i32_0 : i32, i32
  }
  func.func @transform_5(%arg0: i32, %arg1: i32) -> (i32, i32, i32) {
    %c0_i32 = arith.constant 0 : i32
    %c0_i32_0 = arith.constant 0 : i32
    return %arg0, %arg1, %c0_i32 : i32, i32, i32
  }
}

module attributes {stable_mosaic.version = 11 : i64} {
  func.func @_ln_kernel(%arg0: i32, %arg1: memref<20x32xf32, #tpu.memory_space<vmem>>, %arg2: memref<1x32xf32, #tpu.memory_space<vmem>>, %arg3: memref<1x32xf32, #tpu.memory_space<vmem>>, %arg4: memref<20x32xf32, #tpu.memory_space<vmem>>) attributes {dimension_semantics = [#tpu.dimension_semantics<parallel>], iteration_bounds = array<i64: 1>, scalar_prefetch = 0 : i64, scratch_operands = 0 : i64, tpu.core_type = #tpu.core_type<tc>, window_params = [{transform_indices = @transform_0, window_bounds = array<i64: 20, 32>}, {pipeline_mode = #tpu.pipeline_mode<synchronous>, transform_indices = @transform_1, window_bounds = array<i64: 1, 32>}, {pipeline_mode = #tpu.pipeline_mode<synchronous>, transform_indices = @transform_2, window_bounds = array<i64: 1, 32>}, {transform_indices = @transform_3, window_bounds = array<i64: 20, 32>}]} {
    %c0 = arith.constant 0 : index
    %c0_0 = arith.constant 0 : index
    %0 = vector.load %arg1[%c0, %c0_0] : memref<20x32xf32, #tpu.memory_space<vmem>>, vector<20x32xf32>
    %cst = arith.constant dense<0.000000e+00> : vector<20xf32>
    %1 = vector.multi_reduction <add>, %0, %cst [1] : vector<20x32xf32> to vector<20xf32>
    %2 = vector.shape_cast %1 : vector<20xf32> to vector<20x1xf32>
    %cst_1 = arith.constant 3.200000e+01 : f32
    %3 = vector.broadcast %cst_1 : f32 to vector<20x1xf32>
    %4 = arith.divf %2, %3 : vector<20x1xf32>
    %5 = vector.broadcast %4 : vector<20x1xf32> to vector<20x32xf32>
    %6 = arith.subf %0, %5 : vector<20x32xf32>
    %7 = vector.broadcast %4 : vector<20x1xf32> to vector<20x32xf32>
    %8 = arith.subf %0, %7 : vector<20x32xf32>
    %9 = arith.mulf %6, %8 : vector<20x32xf32>
    %cst_2 = arith.constant dense<0.000000e+00> : vector<20xf32>
    %10 = vector.multi_reduction <add>, %9, %cst_2 [1] : vector<20x32xf32> to vector<20xf32>
    %11 = vector.shape_cast %10 : vector<20xf32> to vector<20x1xf32>
    %cst_3 = arith.constant 3.200000e+01 : f32
    %12 = vector.broadcast %cst_3 : f32 to vector<20x1xf32>
    %13 = arith.divf %11, %12 : vector<20x1xf32>
    %14 = vector.broadcast %4 : vector<20x1xf32> to vector<20x32xf32>
    %15 = arith.subf %0, %14 : vector<20x32xf32>
    %cst_4 = arith.constant 9.99999974E-6 : f32
    %16 = vector.broadcast %cst_4 : f32 to vector<20x1xf32>
    %17 = arith.addf %13, %16 : vector<20x1xf32>
    %18 = math.rsqrt %17 : vector<20x1xf32>
    %19 = vector.broadcast %18 : vector<20x1xf32> to vector<20x32xf32>
    %20 = arith.mulf %15, %19 : vector<20x32xf32>
    %c0_5 = arith.constant 0 : index
    %c0_6 = arith.constant 0 : index
    %21 = vector.load %arg2[%c0_5, %c0_6] : memref<1x32xf32, #tpu.memory_space<vmem>>, vector<1x32xf32>
    %22 = vector.broadcast %21 : vector<1x32xf32> to vector<20x32xf32>
    %23 = arith.mulf %20, %22 : vector<20x32xf32>
    %c0_7 = arith.constant 0 : index
    %c0_8 = arith.constant 0 : index
    %24 = vector.load %arg3[%c0_7, %c0_8] : memref<1x32xf32, #tpu.memory_space<vmem>>, vector<1x32xf32>
    %25 = vector.broadcast %24 : vector<1x32xf32> to vector<20x32xf32>
    %26 = arith.addf %23, %25 : vector<20x32xf32>
    %c0_9 = arith.constant 0 : index
    %c0_10 = arith.constant 0 : index
    %27 = vector.load %arg4[%c0_9, %c0_10] : memref<20x32xf32, #tpu.memory_space<vmem>>, vector<20x32xf32>
    tpu.vector_store %arg4[%c0_9, %c0_10], %26 {strides = array<i32>} : memref<20x32xf32, #tpu.memory_space<vmem>>, vector<20x32xf32>,
    return
  }
  func.func @transform_0(%arg0: i32) -> (i32, i32) {
    %c0_i32 = arith.constant 0 : i32
    %c0_i32_0 = arith.constant 0 : i32
    return %arg0, %c0_i32 : i32, i32
  }
  func.func @transform_1(%arg0: i32) -> (i32, i32) {
    %c0_i32 = arith.constant 0 : i32
    %c0_i32_0 = arith.constant 0 : i32
    %c0_i32_1 = arith.constant 0 : i32
    return %c0_i32, %c0_i32_0 : i32, i32
  }
  func.func @transform_2(%arg0: i32) -> (i32, i32) {
    %c0_i32 = arith.constant 0 : i32
    %c0_i32_0 = arith.constant 0 : i32
    %c0_i32_1 = arith.constant 0 : i32
    return %c0_i32, %c0_i32_0 : i32, i32
  }
  func.func @transform_3(%arg0: i32) -> (i32, i32) {
    %c0_i32 = arith.constant 0 : i32
    %c0_i32_0 = arith.constant 0 : i32
    return %arg0, %c0_i32 : i32, i32
  }
}

module attributes {stable_mosaic.version = 11 : i64} {
  func.func @_attn_kernel(%arg0: i32, %arg1: i32, %arg2: memref<1x1x4x5x8xbf16, #tpu.memory_space<vmem>>, %arg3: memref<1x2x4x5x8xbf16, #tpu.memory_space<vmem>>, %arg4: memref<1x5x32xf32, #tpu.memory_space<vmem>>, %arg5: memref<4x8x32xbf16, #tpu.memory_space<vmem>>, %arg6: memref<1x32xf32, #tpu.memory_space<vmem>>, %arg7: memref<1x5x32xf32, #tpu.memory_space<vmem>>, %arg8: memref<5x32xf32, #tpu.memory_space<vmem>>) attributes {dimension_semantics = [#tpu.dimension_semantics<parallel>, #tpu.dimension_semantics<parallel>], iteration_bounds = array<i64: 4, 1>, scalar_prefetch = 0 : i64, scratch_operands = 1 : i64, tpu.core_type = #tpu.core_type<tc>, window_params = [{transform_indices = @transform_0, window_bounds = array<i64: 1, 1, 4, 5, 8>}, {transform_indices = @transform_1, window_bounds = array<i64: 1, 2, 4, 5, 8>}, {transform_indices = @transform_2, window_bounds = array<i64: 1, 5, 32>}, {pipeline_mode = #tpu.pipeline_mode<synchronous>, transform_indices = @transform_3, window_bounds = array<i64: 4, 8, 32>}, {pipeline_mode = #tpu.pipeline_mode<synchronous>, transform_indices = @transform_4, window_bounds = array<i64: 1, 32>}, {transform_indices = @transform_5, window_bounds = array<i64: 1, 5, 32>}]} {
    %cst = arith.constant 0.000000e+00 : f32
    %0 = vector.broadcast %cst : f32 to vector<5x32xf32>
    %c0 = arith.constant 0 : index
    %c0_0 = arith.constant 0 : index
    %1 = vector.load %arg8[%c0, %c0_0] : memref<5x32xf32, #tpu.memory_space<vmem>>, vector<5x32xf32>
    tpu.vector_store %arg8[%c0, %c0_0], %0 {strides = array<i32>} : memref<5x32xf32, #tpu.memory_space<vmem>>, vector<5x32xf32>,
    %c0_1 = arith.constant 0 : index
    %c0_2 = arith.constant 0 : index
    %c0_3 = arith.constant 0 : index
    %c0_4 = arith.constant 0 : index
    %c0_5 = arith.constant 0 : index
    %2 = vector.load %arg2[%c0_1, %c0_2, %c0_3, %c0_4, %c0_5] : memref<1x1x4x5x8xbf16, #tpu.memory_space<vmem>>, vector<1x1x1x5x8xbf16>
    %3 = vector.shape_cast %2 : vector<1x1x1x5x8xbf16> to vector<5x8xbf16>
    %c0_6 = arith.constant 0 : index
    %c0_7 = arith.constant 0 : index
    %c0_8 = arith.constant 0 : index
    %c0_9 = arith.constant 0 : index
    %c0_10 = arith.constant 0 : index
    %4 = vector.load %arg3[%c0_6, %c0_7, %c0_8, %c0_9, %c0_10] : memref<1x2x4x5x8xbf16, #tpu.memory_space<vmem>>, vector<1x1x1x5x8xbf16>
    %5 = vector.shape_cast %4 : vector<1x1x1x5x8xbf16> to vector<5x8xbf16>
    %c0_11 = arith.constant 0 : index
    %c1 = arith.constant 1 : index
    %c0_12 = arith.constant 0 : index
    %c0_13 = arith.constant 0 : index
    %c0_14 = arith.constant 0 : index
    %6 = vector.load %arg3[%c0_11, %c1, %c0_12, %c0_13, %c0_14] : memref<1x2x4x5x8xbf16, #tpu.memory_space<vmem>>, vector<1x1x1x5x8xbf16>
    %7 = vector.shape_cast %6 : vector<1x1x1x5x8xbf16> to vector<5x8xbf16>
    %cst_15 = arith.constant dense<0.000000e+00> : vector<5x5xf32>
    %8 = tpu.matmul %3, %5, %cst_15 {dimension_numbers = #tpu.dot_dimension_numbers<[1], [1], [0], [0], [0, 0, 1, 0], [], []>} : vector<5x8xbf16>, vector<5x8xbf16>, vector<5x5xf32> -> vector<5x5xf32>
    %cst_16 = arith.constant dense<0xFF800000> : vector<5xf32>
    %9 = vector.multi_reduction <maximumf>, %8, %cst_16 [1] : vector<5x5xf32> to vector<5xf32>
    %10 = vector.shape_cast %9 : vector<5xf32> to vector<5x1xf32>
    %11 = vector.broadcast %10 : vector<5x1xf32> to vector<5x5xf32>
    %12 = arith.subf %8, %11 : vector<5x5xf32>
    %13 = math.exp %12 : vector<5x5xf32>
    %cst_17 = arith.constant dense<0.000000e+00> : vector<5xf32>
    %14 = vector.multi_reduction <add>, %13, %cst_17 [1] : vector<5x5xf32> to vector<5xf32>
    %15 = vector.shape_cast %14 : vector<5xf32> to vector<5x1xf32>
    %16 = tpu.reciprocal %15 {approx = true} : vector<5x1xf32> -> vector<5x1xf32>
    %17 = vector.broadcast %16 : vector<5x1xf32> to vector<5x5xf32>
    %18 = arith.mulf %13, %17 : vector<5x5xf32>
    %19 = arith.truncf %18 : vector<5x5xf32> to vector<5x5xbf16>
    %cst_18 = arith.constant dense<0.000000e+00> : vector<5x8xf32>
    %20 = tpu.matmul %19, %7, %cst_18 {dimension_numbers = #tpu.dot_dimension_numbers<[1], [0], [0], [1], [0, 0, 1, 1], [], []>} : vector<5x5xbf16>, vector<5x8xbf16>, vector<5x8xf32> -> vector<5x8xf32>
    %c0_19 = arith.constant 0 : index
    %c0_20 = arith.constant 0 : index
    %21 = vector.load %arg8[%c0_19, %c0_20] : memref<5x32xf32, #tpu.memory_space<vmem>>, vector<5x32xf32>
    %22 = arith.truncf %20 : vector<5x8xf32> to vector<5x8xbf16>
    %c0_21 = arith.constant 0 : index
    %c0_22 = arith.constant 0 : index
    %c0_23 = arith.constant 0 : index
    %23 = vector.load %arg5[%c0_21, %c0_22, %c0_23] : memref<4x8x32xbf16, #tpu.memory_space<vmem>>, vector<1x8x32xbf16>
    %24 = vector.shape_cast %23 : vector<1x8x32xbf16> to vector<8x32xbf16>
    %cst_24 = arith.constant dense<0.000000e+00> : vector<5x32xf32>
    %25 = tpu.matmul %22, %24, %cst_24 {dimension_numbers = #tpu.dot_dimension_numbers<[1], [0], [0], [1], [0, 0, 1, 1], [], []>} : vector<5x8xbf16>, vector<8x32xbf16>, vector<5x32xf32> -> vector<5x32xf32>
    %26 = arith.addf %21, %25 : vector<5x32xf32>
    %c0_25 = arith.constant 0 : index
    %c0_26 = arith.constant 0 : index
    %27 = vector.load %arg8[%c0_25, %c0_26] : memref<5x32xf32, #tpu.memory_space<vmem>>, vector<5x32xf32>
    tpu.vector_store %arg8[%c0_25, %c0_26], %26 {strides = array<i32>} : memref<5x32xf32, #tpu.memory_space<vmem>>, vector<5x32xf32>,
    %c0_27 = arith.constant 0 : index
    %c0_28 = arith.constant 0 : index
    %c1_29 = arith.constant 1 : index
    %c0_30 = arith.constant 0 : index
    %c0_31 = arith.constant 0 : index
    %28 = vector.load %arg2[%c0_27, %c0_28, %c1_29, %c0_30, %c0_31] : memref<1x1x4x5x8xbf16, #tpu.memory_space<vmem>>, vector<1x1x1x5x8xbf16>
    %29 = vector.shape_cast %28 : vector<1x1x1x5x8xbf16> to vector<5x8xbf16>
    %c0_32 = arith.constant 0 : index
    %c0_33 = arith.constant 0 : index
    %c1_34 = arith.constant 1 : index
    %c0_35 = arith.constant 0 : index
    %c0_36 = arith.constant 0 : index
    %30 = vector.load %arg3[%c0_32, %c0_33, %c1_34, %c0_35, %c0_36] : memref<1x2x4x5x8xbf16, #tpu.memory_space<vmem>>, vector<1x1x1x5x8xbf16>
    %31 = vector.shape_cast %30 : vector<1x1x1x5x8xbf16> to vector<5x8xbf16>
    %c0_37 = arith.constant 0 : index
    %c1_38 = arith.constant 1 : index
    %c1_39 = arith.constant 1 : index
    %c0_40 = arith.constant 0 : index
    %c0_41 = arith.constant 0 : index
    %32 = vector.load %arg3[%c0_37, %c1_38, %c1_39, %c0_40, %c0_41] : memref<1x2x4x5x8xbf16, #tpu.memory_space<vmem>>, vector<1x1x1x5x8xbf16>
    %33 = vector.shape_cast %32 : vector<1x1x1x5x8xbf16> to vector<5x8xbf16>
    %cst_42 = arith.constant dense<0.000000e+00> : vector<5x5xf32>
    %34 = tpu.matmul %29, %31, %cst_42 {dimension_numbers = #tpu.dot_dimension_numbers<[1], [1], [0], [0], [0, 0, 1, 0], [], []>} : vector<5x8xbf16>, vector<5x8xbf16>, vector<5x5xf32> -> vector<5x5xf32>
    %cst_43 = arith.constant dense<0xFF800000> : vector<5xf32>
    %35 = vector.multi_reduction <maximumf>, %34, %cst_43 [1] : vector<5x5xf32> to vector<5xf32>
    %36 = vector.shape_cast %35 : vector<5xf32> to vector<5x1xf32>
    %37 = vector.broadcast %36 : vector<5x1xf32> to vector<5x5xf32>
    %38 = arith.subf %34, %37 : vector<5x5xf32>
    %39 = math.exp %38 : vector<5x5xf32>
    %cst_44 = arith.constant dense<0.000000e+00> : vector<5xf32>
    %40 = vector.multi_reduction <add>, %39, %cst_44 [1] : vector<5x5xf32> to vector<5xf32>
    %41 = vector.shape_cast %40 : vector<5xf32> to vector<5x1xf32>
    %42 = tpu.reciprocal %41 {approx = true} : vector<5x1xf32> -> vector<5x1xf32>
    %43 = vector.broadcast %42 : vector<5x1xf32> to vector<5x5xf32>
    %44 = arith.mulf %39, %43 : vector<5x5xf32>
    %45 = arith.truncf %44 : vector<5x5xf32> to vector<5x5xbf16>
    %cst_45 = arith.constant dense<0.000000e+00> : vector<5x8xf32>
    %46 = tpu.matmul %45, %33, %cst_45 {dimension_numbers = #tpu.dot_dimension_numbers<[1], [0], [0], [1], [0, 0, 1, 1], [], []>} : vector<5x5xbf16>, vector<5x8xbf16>, vector<5x8xf32> -> vector<5x8xf32>
    %c0_46 = arith.constant 0 : index
    %c0_47 = arith.constant 0 : index
    %47 = vector.load %arg8[%c0_46, %c0_47] : memref<5x32xf32, #tpu.memory_space<vmem>>, vector<5x32xf32>
    %48 = arith.truncf %46 : vector<5x8xf32> to vector<5x8xbf16>
    %c1_48 = arith.constant 1 : index
    %c0_49 = arith.constant 0 : index
    %c0_50 = arith.constant 0 : index
    %49 = vector.load %arg5[%c1_48, %c0_49, %c0_50] : memref<4x8x32xbf16, #tpu.memory_space<vmem>>, vector<1x8x32xbf16>
    %50 = vector.shape_cast %49 : vector<1x8x32xbf16> to vector<8x32xbf16>
    %cst_51 = arith.constant dense<0.000000e+00> : vector<5x32xf32>
    %51 = tpu.matmul %48, %50, %cst_51 {dimension_numbers = #tpu.dot_dimension_numbers<[1], [0], [0], [1], [0, 0, 1, 1], [], []>} : vector<5x8xbf16>, vector<8x32xbf16>, vector<5x32xf32> -> vector<5x32xf32>
    %52 = arith.addf %47, %51 : vector<5x32xf32>
    %c0_52 = arith.constant 0 : index
    %c0_53 = arith.constant 0 : index
    %53 = vector.load %arg8[%c0_52, %c0_53] : memref<5x32xf32, #tpu.memory_space<vmem>>, vector<5x32xf32>
    tpu.vector_store %arg8[%c0_52, %c0_53], %52 {strides = array<i32>} : memref<5x32xf32, #tpu.memory_space<vmem>>, vector<5x32xf32>,
    %c0_54 = arith.constant 0 : index
    %c0_55 = arith.constant 0 : index
    %c2 = arith.constant 2 : index
    %c0_56 = arith.constant 0 : index
    %c0_57 = arith.constant 0 : index
    %54 = vector.load %arg2[%c0_54, %c0_55, %c2, %c0_56, %c0_57] : memref<1x1x4x5x8xbf16, #tpu.memory_space<vmem>>, vector<1x1x1x5x8xbf16>
    %55 = vector.shape_cast %54 : vector<1x1x1x5x8xbf16> to vector<5x8xbf16>
    %c0_58 = arith.constant 0 : index
    %c0_59 = arith.constant 0 : index
    %c2_60 = arith.constant 2 : index
    %c0_61 = arith.constant 0 : index
    %c0_62 = arith.constant 0 : index
    %56 = vector.load %arg3[%c0_58, %c0_59, %c2_60, %c0_61, %c0_62] : memref<1x2x4x5x8xbf16, #tpu.memory_space<vmem>>, vector<1x1x1x5x8xbf16>
    %57 = vector.shape_cast %56 : vector<1x1x1x5x8xbf16> to vector<5x8xbf16>
    %c0_63 = arith.constant 0 : index
    %c1_64 = arith.constant 1 : index
    %c2_65 = arith.constant 2 : index
    %c0_66 = arith.constant 0 : index
    %c0_67 = arith.constant 0 : index
    %58 = vector.load %arg3[%c0_63, %c1_64, %c2_65, %c0_66, %c0_67] : memref<1x2x4x5x8xbf16, #tpu.memory_space<vmem>>, vector<1x1x1x5x8xbf16>
    %59 = vector.shape_cast %58 : vector<1x1x1x5x8xbf16> to vector<5x8xbf16>
    %cst_68 = arith.constant dense<0.000000e+00> : vector<5x5xf32>
    %60 = tpu.matmul %55, %57, %cst_68 {dimension_numbers = #tpu.dot_dimension_numbers<[1], [1], [0], [0], [0, 0, 1, 0], [], []>} : vector<5x8xbf16>, vector<5x8xbf16>, vector<5x5xf32> -> vector<5x5xf32>
    %cst_69 = arith.constant dense<0xFF800000> : vector<5xf32>
    %61 = vector.multi_reduction <maximumf>, %60, %cst_69 [1] : vector<5x5xf32> to vector<5xf32>
    %62 = vector.shape_cast %61 : vector<5xf32> to vector<5x1xf32>
    %63 = vector.broadcast %62 : vector<5x1xf32> to vector<5x5xf32>
    %64 = arith.subf %60, %63 : vector<5x5xf32>
    %65 = math.exp %64 : vector<5x5xf32>
    %cst_70 = arith.constant dense<0.000000e+00> : vector<5xf32>
    %66 = vector.multi_reduction <add>, %65, %cst_70 [1] : vector<5x5xf32> to vector<5xf32>
    %67 = vector.shape_cast %66 : vector<5xf32> to vector<5x1xf32>
    %68 = tpu.reciprocal %67 {approx = true} : vector<5x1xf32> -> vector<5x1xf32>
    %69 = vector.broadcast %68 : vector<5x1xf32> to vector<5x5xf32>
    %70 = arith.mulf %65, %69 : vector<5x5xf32>
    %71 = arith.truncf %70 : vector<5x5xf32> to vector<5x5xbf16>
    %cst_71 = arith.constant dense<0.000000e+00> : vector<5x8xf32>
    %72 = tpu.matmul %71, %59, %cst_71 {dimension_numbers = #tpu.dot_dimension_numbers<[1], [0], [0], [1], [0, 0, 1, 1], [], []>} : vector<5x5xbf16>, vector<5x8xbf16>, vector<5x8xf32> -> vector<5x8xf32>
    %c0_72 = arith.constant 0 : index
    %c0_73 = arith.constant 0 : index
    %73 = vector.load %arg8[%c0_72, %c0_73] : memref<5x32xf32, #tpu.memory_space<vmem>>, vector<5x32xf32>
    %74 = arith.truncf %72 : vector<5x8xf32> to vector<5x8xbf16>
    %c2_74 = arith.constant 2 : index
    %c0_75 = arith.constant 0 : index
    %c0_76 = arith.constant 0 : index
    %75 = vector.load %arg5[%c2_74, %c0_75, %c0_76] : memref<4x8x32xbf16, #tpu.memory_space<vmem>>, vector<1x8x32xbf16>
    %76 = vector.shape_cast %75 : vector<1x8x32xbf16> to vector<8x32xbf16>
    %cst_77 = arith.constant dense<0.000000e+00> : vector<5x32xf32>
    %77 = tpu.matmul %74, %76, %cst_77 {dimension_numbers = #tpu.dot_dimension_numbers<[1], [0], [0], [1], [0, 0, 1, 1], [], []>} : vector<5x8xbf16>, vector<8x32xbf16>, vector<5x32xf32> -> vector<5x32xf32>
    %78 = arith.addf %73, %77 : vector<5x32xf32>
    %c0_78 = arith.constant 0 : index
    %c0_79 = arith.constant 0 : index
    %79 = vector.load %arg8[%c0_78, %c0_79] : memref<5x32xf32, #tpu.memory_space<vmem>>, vector<5x32xf32>
    tpu.vector_store %arg8[%c0_78, %c0_79], %78 {strides = array<i32>} : memref<5x32xf32, #tpu.memory_space<vmem>>, vector<5x32xf32>,
    %c0_80 = arith.constant 0 : index
    %c0_81 = arith.constant 0 : index
    %c3 = arith.constant 3 : index
    %c0_82 = arith.constant 0 : index
    %c0_83 = arith.constant 0 : index
    %80 = vector.load %arg2[%c0_80, %c0_81, %c3, %c0_82, %c0_83] : memref<1x1x4x5x8xbf16, #tpu.memory_space<vmem>>, vector<1x1x1x5x8xbf16>
    %81 = vector.shape_cast %80 : vector<1x1x1x5x8xbf16> to vector<5x8xbf16>
    %c0_84 = arith.constant 0 : index
    %c0_85 = arith.constant 0 : index
    %c3_86 = arith.constant 3 : index
    %c0_87 = arith.constant 0 : index
    %c0_88 = arith.constant 0 : index
    %82 = vector.load %arg3[%c0_84, %c0_85, %c3_86, %c0_87, %c0_88] : memref<1x2x4x5x8xbf16, #tpu.memory_space<vmem>>, vector<1x1x1x5x8xbf16>
    %83 = vector.shape_cast %82 : vector<1x1x1x5x8xbf16> to vector<5x8xbf16>
    %c0_89 = arith.constant 0 : index
    %c1_90 = arith.constant 1 : index
    %c3_91 = arith.constant 3 : index
    %c0_92 = arith.constant 0 : index
    %c0_93 = arith.constant 0 : index
    %84 = vector.load %arg3[%c0_89, %c1_90, %c3_91, %c0_92, %c0_93] : memref<1x2x4x5x8xbf16, #tpu.memory_space<vmem>>, vector<1x1x1x5x8xbf16>
    %85 = vector.shape_cast %84 : vector<1x1x1x5x8xbf16> to vector<5x8xbf16>
    %cst_94 = arith.constant dense<0.000000e+00> : vector<5x5xf32>
    %86 = tpu.matmul %81, %83, %cst_94 {dimension_numbers = #tpu.dot_dimension_numbers<[1], [1], [0], [0], [0, 0, 1, 0], [], []>} : vector<5x8xbf16>, vector<5x8xbf16>, vector<5x5xf32> -> vector<5x5xf32>
    %cst_95 = arith.constant dense<0xFF800000> : vector<5xf32>
    %87 = vector.multi_reduction <maximumf>, %86, %cst_95 [1] : vector<5x5xf32> to vector<5xf32>
    %88 = vector.shape_cast %87 : vector<5xf32> to vector<5x1xf32>
    %89 = vector.broadcast %88 : vector<5x1xf32> to vector<5x5xf32>
    %90 = arith.subf %86, %89 : vector<5x5xf32>
    %91 = math.exp %90 : vector<5x5xf32>
    %cst_96 = arith.constant dense<0.000000e+00> : vector<5xf32>
    %92 = vector.multi_reduction <add>, %91, %cst_96 [1] : vector<5x5xf32> to vector<5xf32>
    %93 = vector.shape_cast %92 : vector<5xf32> to vector<5x1xf32>
    %94 = tpu.reciprocal %93 {approx = true} : vector<5x1xf32> -> vector<5x1xf32>
    %95 = vector.broadcast %94 : vector<5x1xf32> to vector<5x5xf32>
    %96 = arith.mulf %91, %95 : vector<5x5xf32>
    %97 = arith.truncf %96 : vector<5x5xf32> to vector<5x5xbf16>
    %cst_97 = arith.constant dense<0.000000e+00> : vector<5x8xf32>
    %98 = tpu.matmul %97, %85, %cst_97 {dimension_numbers = #tpu.dot_dimension_numbers<[1], [0], [0], [1], [0, 0, 1, 1], [], []>} : vector<5x5xbf16>, vector<5x8xbf16>, vector<5x8xf32> -> vector<5x8xf32>
    %c0_98 = arith.constant 0 : index
    %c0_99 = arith.constant 0 : index
    %99 = vector.load %arg8[%c0_98, %c0_99] : memref<5x32xf32, #tpu.memory_space<vmem>>, vector<5x32xf32>
    %100 = arith.truncf %98 : vector<5x8xf32> to vector<5x8xbf16>
    %c3_100 = arith.constant 3 : index
    %c0_101 = arith.constant 0 : index
    %c0_102 = arith.constant 0 : index
    %101 = vector.load %arg5[%c3_100, %c0_101, %c0_102] : memref<4x8x32xbf16, #tpu.memory_space<vmem>>, vector<1x8x32xbf16>
    %102 = vector.shape_cast %101 : vector<1x8x32xbf16> to vector<8x32xbf16>
    %cst_103 = arith.constant dense<0.000000e+00> : vector<5x32xf32>
    %103 = tpu.matmul %100, %102, %cst_103 {dimension_numbers = #tpu.dot_dimension_numbers<[1], [0], [0], [1], [0, 0, 1, 1], [], []>} : vector<5x8xbf16>, vector<8x32xbf16>, vector<5x32xf32> -> vector<5x32xf32>
    %104 = arith.addf %99, %103 : vector<5x32xf32>
    %c0_104 = arith.constant 0 : index
    %c0_105 = arith.constant 0 : index
    %105 = vector.load %arg8[%c0_104, %c0_105] : memref<5x32xf32, #tpu.memory_space<vmem>>, vector<5x32xf32>
    tpu.vector_store %arg8[%c0_104, %c0_105], %104 {strides = array<i32>} : memref<5x32xf32, #tpu.memory_space<vmem>>, vector<5x32xf32>,
    %c0_106 = arith.constant 0 : index
    %c0_107 = arith.constant 0 : index
    %c0_108 = arith.constant 0 : index
    %106 = vector.load %arg4[%c0_106, %c0_107, %c0_108] : memref<1x5x32xf32, #tpu.memory_space<vmem>>, vector<1x5x32xf32>
    %107 = vector.shape_cast %106 : vector<1x5x32xf32> to vector<5x32xf32>
    %c0_109 = arith.constant 0 : index
    %c0_110 = arith.constant 0 : index
    %108 = vector.load %arg8[%c0_109, %c0_110] : memref<5x32xf32, #tpu.memory_space<vmem>>, vector<5x32xf32>
    %109 = arith.addf %107, %108 : vector<5x32xf32>
    %c0_111 = arith.constant 0 : index
    %c0_112 = arith.constant 0 : index
    %110 = vector.load %arg6[%c0_111, %c0_112] : memref<1x32xf32, #tpu.memory_space<vmem>>, vector<1x32xf32>
    %111 = vector.broadcast %110 : vector<1x32xf32> to vector<5x32xf32>
    %112 = arith.addf %109, %111 : vector<5x32xf32>
    %c0_113 = arith.constant 0 : index
    %c0_114 = arith.constant 0 : index
    %c0_115 = arith.constant 0 : index
    %113 = vector.load %arg7[%c0_113, %c0_114, %c0_115] : memref<1x5x32xf32, #tpu.memory_space<vmem>>, vector<1x5x32xf32>
    %114 = vector.shape_cast %113 : vector<1x5x32xf32> to vector<5x32xf32>
    %115 = vector.shape_cast %112 : vector<5x32xf32> to vector<1x5x32xf32>
    tpu.vector_store %arg7[%c0_113, %c0_114, %c0_115], %115 {strides = array<i32>} : memref<1x5x32xf32, #tpu.memory_space<vmem>>, vector<1x5x32xf32>,
    return
  }
  func.func @transform_0(%arg0: i32, %arg1: i32) -> (i32, i32, i32, i32, i32) {
    %c2_i32 = arith.constant 2 : i32
    %c0_i32 = arith.constant 0 : i32
    %c0_i32_0 = arith.constant 0 : i32
    %c0_i32_1 = arith.constant 0 : i32
    return %arg0, %c2_i32, %c0_i32, %arg1, %c0_i32_0 : i32, i32, i32, i32, i32
  }
  func.func @transform_1(%arg0: i32, %arg1: i32) -> (i32, i32, i32, i32, i32) {
    %c2_i32 = arith.constant 2 : i32
    %0 = arith.addi %arg0, %c2_i32 : i32
    %c4_i32 = arith.constant 4 : i32
    %c0_i32 = arith.constant 0 : i32
    %1 = arith.cmpi eq, %c4_i32, %c0_i32 : i32
    %c1_i32 = arith.constant 1 : i32
    %2 = arith.select %1, %c1_i32, %c4_i32 : i32
    %3 = arith.remsi %0, %2 : i32
    %c0_i32_0 = arith.constant 0 : i32
    %4 = arith.cmpi ne, %3, %c0_i32_0 : i32
    %c0_i32_1 = arith.constant 0 : i32
    %5 = arith.cmpi slt, %3, %c0_i32_1 : i32
    %c0_i32_2 = arith.constant 0 : i32
    %6 = arith.cmpi slt, %2, %c0_i32_2 : i32
    %7 = arith.xori %5, %6 : i1
    %8 = arith.andi %7, %4 : i1
    %9 = arith.addi %3, %2 : i32
    %10 = arith.select %8, %9, %3 : i32
    %c0_i32_3 = arith.constant 0 : i32
    %c0_i32_4 = arith.constant 0 : i32
    %c0_i32_5 = arith.constant 0 : i32
    %c0_i32_6 = arith.constant 0 : i32
    %c0_i32_7 = arith.constant 0 : i32
    return %10, %c0_i32_3, %c0_i32_4, %c0_i32_5, %c0_i32_6 : i32, i32, i32, i32, i32
  }
  func.func @transform_2(%arg0: i32, %arg1: i32) -> (i32, i32, i32) {
    %c0_i32 = arith.constant 0 : i32
    %c0_i32_0 = arith.constant 0 : i32
    return %arg0, %arg1, %c0_i32 : i32, i32, i32
  }
  func.func @transform_3(%arg0: i32, %arg1: i32) -> (i32, i32, i32) {
    %c0_i32 = arith.constant 0 : i32
    %c0_i32_0 = arith.constant 0 : i32
    %c0_i32_1 = arith.constant 0 : i32
    %c0_i32_2 = arith.constant 0 : i32
    return %c0_i32, %c0_i32_0, %c0_i32_1 : i32, i32, i32
  }
  func.func @transform_4(%arg0: i32, %arg1: i32) -> (i32, i32) {
    %c0_i32 = arith.constant 0 : i32
    %c0_i32_0 = arith.constant 0 : i32
    %c0_i32_1 = arith.constant 0 : i32
    return %c0_i32, %c0_i32_0 : i32, i32
  }
  func.func @transform_5(%arg0: i32, %arg1: i32) -> (i32, i32, i32) {
    %c0_i32 = arith.constant 0 : i32
    %c0_i32_0 = arith.constant 0 : i32
    return %arg0, %arg1, %c0_i32 : i32, i32, i32
  }
}

</mosaic_0001>

<llo_original>
// kernel: model_forward.8
$region0: #{model_forward.8}
  #allocation0 [shape = 'u32[]', space=smem, size = 0x4, offset = 0x4, fixed_abs, tag = 'smem constant byte address 0x4 - core index']
  #allocation1 [shape = 'u32[144,128]{1,0:T(1,128)}', space=vmem, size = 0x12000, scoped, tag = 'internal scratch']
  %s0 = inlined_call_operand.vmem [shape: f32[16,192], index: 0, kind: input, shape index: {}]
  %s1 = inlined_call_operand.vmem [shape: f32[1,192], index: 1, kind: input, shape index: {}]
  %s2 = inlined_call_operand.vmem [shape: f32[1,192], index: 2, kind: input, shape index: {}]
  %s3 = inlined_call_operand.vmem [shape: bf16[192,32], index: 3, kind: input, shape index: {}]
  %s4 = inlined_call_operand.vmem [shape: f32[1,32], index: 4, kind: input, shape index: {}]
  %s5 = inlined_call_operand.vmem [shape: bf16[16,32], index: 5, kind: output, shape index: {}]
  %s6 = sld [smem:[#allocation0]]
  $region30: #{model_forward.8} parent=0
    _
  %s8 = ssub.s32 1, %s6
  %s9 = scalar_select 0, %s8, %s6
  // Predicated region
  $region2: #{model_forward.8} parent=0 // pred_check
    _
  $region3: #{model_forward.8} parent=0 // pred_check_branch
    %11 = sbr.rel (0) target = $region5
  $region4: #{model_forward.8} parent=0 // pred_region
    _
  $region5: #{model_forward.8} parent=0 // pred_fallthru
    _
  // Predicated region
  $region6: #{model_forward.8} parent=0 // pred_check
    _
  $region7: #{model_forward.8} parent=0 // pred_check_branch
    %13 = sbr.rel (0) target = $region9
  $region8: #{model_forward.8} parent=0 // pred_region
    _
  $region9: #{model_forward.8} parent=0 // pred_fallthru
    _
  // Predicated region
  $region10: #{model_forward.8} parent=0 // pred_check
    _
  $region11: #{model_forward.8} parent=0 // pred_check_branch
    %15 = sbr.rel (0) target = $region13
  $region12: #{model_forward.8} parent=0 // pred_region
    _
  $region13: #{model_forward.8} parent=0 // pred_fallthru
    _
  // Predicated region
  $region14: #{model_forward.8} parent=0 // pred_check
    _
  $region15: #{model_forward.8} parent=0 // pred_check_branch
    %17 = sbr.rel (0) target = $region17
  $region16: #{model_forward.8} parent=0 // pred_region
    _
  $region17: #{model_forward.8} parent=0 // pred_fallthru
    _
  // Predicated region
  $region18: #{model_forward.8} parent=0 // pred_check
    _
  $region19: #{model_forward.8} parent=0 // pred_check_branch
    %19 = sbr.rel (0) target = $region21
  $region20: #{model_forward.8} parent=0 // pred_region
    _
  $region21: #{model_forward.8} parent=0 // pred_fallthru
    _
  %v21 = vld [vmem:[%s0] sm:$0xff]
  %v22 = vld [vmem:[%s0 + $0x8] sm:$0xff]
  %v23 = vld [vmem:[%s0 + $0x10] sm:$0xff]
  %v24 = vld [vmem:[%s0 + $0x18] sm:$0xff]
  %v25 = vpack.c.bf16 %v23, %v21
  %v26 = vpack.c.bf16 %v24, %v22
  %v27 = vld [vmem:[%s3] sm:$0xf]
  %v28 = vld [vmem:[%s3 + $0x4] sm:$0xf]
  %v29 = vld [vmem:[%s3 + $0x8] sm:$0xf]
  %v30 = vld [vmem:[%s3 + $0xc] sm:$0xf]
  %v31 = vld [vmem:[%s3 + $0x10] sm:$0xf]
  %v32 = vld [vmem:[%s3 + $0x14] sm:$0xf]
  %v33 = vld [vmem:[%s3 + $0x18] sm:$0xf]
  %v34 = vld [vmem:[%s3 + $0x1c] sm:$0xf]
  %v35 = vld [vmem:[%s3 + $0x20] sm:$0xf]
  %v36 = vld [vmem:[%s3 + $0x24] sm:$0xf]
  %v37 = vld [vmem:[%s3 + $0x28] sm:$0xf]
  %v38 = vld [vmem:[%s3 + $0x2c] sm:$0xf]
  %v39 = vld [vmem:[%s3 + $0x30] sm:$0xf]
  %v40 = vld [vmem:[%s3 + $0x34] sm:$0xf]
  %v41 = vld [vmem:[%s3 + $0x38] sm:$0xf]
  %v42 = vld [vmem:[%s3 + $0x3c] sm:$0xf]
  %v43 = vld [vmem:[%s3 + $0x40] sm:$0xf]
  %v44 = vld [vmem:[%s3 + $0x44] sm:$0xf]
  %v45 = vld [vmem:[%s3 + $0x48] sm:$0xf]
  %v46 = vld [vmem:[%s3 + $0x4c] sm:$0xf]
  %v47 = vld [vmem:[%s3 + $0x50] sm:$0xf]
  %v48 = vld [vmem:[%s3 + $0x54] sm:$0xf]
  %v49 = vld [vmem:[%s3 + $0x58] sm:$0xf]
  %v50 = vld [vmem:[%s3 + $0x5c] sm:$0xf]
  %v51 = vld [vmem:[%s4] sm:$0x1]
  %v53 = vlaneseq
  %v54 = vshrl.u32 %v53, 7
  %v55 = vsub.s32 0, %v54
  %v56 = vrot.slane %v51, %v55
  %v82 = vunpack.c.l.b16 %v27
  %v83 = vunpack.c.l.b16 %v28
  %v84 = vunpack.c.l.b16 %v29
  %v85 = vunpack.c.l.b16 %v30
  %v86 = vunpack.c.l.b16 %v31
  %v87 = vunpack.c.l.b16 %v32
  %v88 = vunpack.c.l.b16 %v33
  %v89 = vunpack.c.l.b16 %v34
  %v90 = vunpack.c.l.b16 %v35
  %v91 = vunpack.c.l.b16 %v36
  %v92 = vunpack.c.l.b16 %v37
  %v93 = vunpack.c.l.b16 %v38
  %v94 = vunpack.c.l.b16 %v39
  %v95 = vunpack.c.l.b16 %v40
  %v96 = vunpack.c.l.b16 %v41
  %v97 = vunpack.c.l.b16 %v42
  %v98 = vunpack.c.l.b16 %v43
  %v99 = vunpack.c.l.b16 %v44
  %v100 = vunpack.c.l.b16 %v45
  %v101 = vunpack.c.l.b16 %v46
  %v102 = vunpack.c.l.b16 %v47
  %v103 = vunpack.c.l.b16 %v48
  %v104 = vunpack.c.l.b16 %v49
  %v105 = vunpack.c.l.b16 %v50
  %v106 = vpack.c.b16 %v83, %v82
  %v107 = vpack.c.b16 %v85, %v84
  %v108 = vpack.c.b16 %v87, %v86
  %v109 = vpack.c.b16 %v89, %v88
  %v110 = vpack.c.b16 %v91, %v90
  %v111 = vpack.c.b16 %v93, %v92
  %v112 = vpack.c.b16 %v95, %v94
  %v113 = vpack.c.b16 %v97, %v96
  %v114 = vpack.c.b16 %v99, %v98
  %v115 = vpack.c.b16 %v101, %v100
  %v116 = vpack.c.b16 %v103, %v102
  %v117 = vpack.c.b16 %v105, %v104
  %vm130 = vcmask 523264
  %v132 = vsel %vm130, %v26, 0
  %134 = vmatprep.subr.bf16.mxu0 0
  %135 = vmatpush1.bf16.msra.mxu0 %v106
  %136 = vmatprep.subr.bf16.mxu0 0
  %137 = vmatpush1.bf16.msra.mxu0 %v107
  %138 = vmatprep.subr.bf16.mxu0 0
  %139 = vmatpush1.bf16.msra.mxu0 %v108
  %140 = vmatprep.subr.bf16.mxu0 0
  %141 = vmatpush1.bf16.msra.mxu0 %v109
  %142 = vmatprep.subr.bf16.mxu0 0
  %143 = vmatpush1.bf16.msra.mxu0 %v110
  %144 = vmatprep.subr.bf16.mxu0 0
  %145 = vmatpush1.bf16.msra.mxu0 %v111
  %146 = vmatprep.subr.bf16.mxu0 0
  %147 = vmatpush1.bf16.msra.mxu0 %v112
  %148 = vmatprep.subr.bf16.mxu0 0
  %149 = vmatpush1.bf16.msra.mxu0 %v113
  %150 = vmatprep.subr.bf16.mxu0 0
  %151 = vmatpush1.bf16.msra.mxu0 %v114
  %152 = vmatprep.subr.bf16.mxu0 0
  %153 = vmatpush1.bf16.msra.mxu0 %v115
  %154 = vmatprep.subr.bf16.mxu0 0
  %155 = vmatpush1.bf16.msra.mxu0 %v116
  %156 = vmatprep.subr.bf16.mxu0 0
  %157 = vmatpush1.bf16.msra.mxu0 %v117
  %158 = vmatprep.subr.bf16.mxu0 0
  %159 = vmatpush1.bf16.msra.mxu0 0
  %160 = vmatprep.subr.bf16.mxu0 0
  %161 = vmatpush1.bf16.msra.mxu0 0
  %162 = vmatprep.subr.bf16.mxu0 0
  %163 = vmatpush1.bf16.msra.mxu0 0
  %164 = vmatprep.subr.bf16.mxu0 0
  %165 = vmatpush1.bf16.msra.mxu0 0
  %166 = vmatprep.mubr.bf16.mxu0 %v132
  %167 = vmatmul.mubr.bf16.gmra.mrb[0].mxu0 %v25
  %v168 = vpop.f32.mrb[0].mxu0
  %v169 = vadd.f32 %v56, %v168
  %v170 = vpop.f32.mrb[0].mxu0
  %v171 = vpop.f32.mrb[0].mxu0
  %v172 = vadd.f32 %v56, %v171
  %v173 = vpop.f32.mrb[0].mxu0
  %174 = vdwg.mxu0
  %v175 = vpack.c.bf16 %v172, %v169
  %v177 = vunpack.c.l.b16 %v175
  %v178 = vunpack.c.h.b16 %v175
  %v179 = vpack.c.b16 %v177, %v177
  %v180 = vpack.c.b16 %v178, %v178
  %vm183 = vcmask 257024
  %184 = vst.msk [vmem:[%s5] sm:$0xf] %vm183, %v179
  %185 = vst.msk [vmem:[%s5 + $0x4] sm:$0xf] %vm183, %v180
  // Predicated region
  $region22: #{model_forward.8} parent=0 // pred_check
    _
  $region23: #{model_forward.8} parent=0 // pred_check_branch
    %187 = sbr.rel (0) target = $region25
  $region24: #{model_forward.8} parent=0 // pred_region
    _
  $region25: #{model_forward.8} parent=0 // pred_fallthru
    _
  // Predicated region
  $region26: #{model_forward.8} parent=0 // pred_check
    _
  $region27: #{model_forward.8} parent=0 // pred_check_branch
    %189 = sbr.rel (0) target = $region29
  $region28: #{model_forward.8} parent=0 // pred_region
    _
  $region29: #{model_forward.8} parent=0 // pred_fallthru
    _

// kernel: model_forward.9
$region0: #{model_forward.9}
  #allocation0 [shape = 'u32[]', space=smem, size = 0x4, offset = 0x4, fixed_abs, tag = 'smem constant byte address 0x4 - core index']
  #allocation1 [shape = 'u32[144,128]{1,0:T(1,128)}', space=vmem, size = 0x12000, scoped, tag = 'internal scratch']
  %s0 = inlined_call_operand.vmem [shape: f32[20,32], index: 0, kind: input, shape index: {}]
  %s1 = inlined_call_operand.vmem [shape: f32[1,32], index: 1, kind: input, shape index: {}]
  %s2 = inlined_call_operand.vmem [shape: f32[1,32], index: 2, kind: input, shape index: {}]
  %s3 = inlined_call_operand.vmem [shape: bf16[32,96], index: 3, kind: input, shape index: {}]
  %s4 = inlined_call_operand.vmem [shape: f32[1,96], index: 4, kind: input, shape index: {}]
  %s5 = inlined_call_operand.vmem [shape: bf16[20,96], index: 5, kind: output, shape index: {}]
  %s6 = sld [smem:[#allocation0]]
  $region30: #{model_forward.9} parent=0
    _
  %s8 = ssub.s32 1, %s6
  %s9 = scalar_select 0, %s8, %s6
  // Predicated region
  $region2: #{model_forward.9} parent=0 // pred_check
    _
  $region3: #{model_forward.9} parent=0 // pred_check_branch
    %11 = sbr.rel (0) target = $region5
  $region4: #{model_forward.9} parent=0 // pred_region
    _
  $region5: #{model_forward.9} parent=0 // pred_fallthru
    _
  // Predicated region
  $region6: #{model_forward.9} parent=0 // pred_check
    _
  $region7: #{model_forward.9} parent=0 // pred_check_branch
    %13 = sbr.rel (0) target = $region9
  $region8: #{model_forward.9} parent=0 // pred_region
    _
  $region9: #{model_forward.9} parent=0 // pred_fallthru
    _
  // Predicated region
  $region10: #{model_forward.9} parent=0 // pred_check
    _
  $region11: #{model_forward.9} parent=0 // pred_check_branch
    %15 = sbr.rel (0) target = $region13
  $region12: #{model_forward.9} parent=0 // pred_region
    _
  $region13: #{model_forward.9} parent=0 // pred_fallthru
    _
  // Predicated region
  $region14: #{model_forward.9} parent=0 // pred_check
    _
  $region15: #{model_forward.9} parent=0 // pred_check_branch
    %17 = sbr.rel (0) target = $region17
  $region16: #{model_forward.9} parent=0 // pred_region
    _
  $region17: #{model_forward.9} parent=0 // pred_fallthru
    _
  // Predicated region
  $region18: #{model_forward.9} parent=0 // pred_check
    _
  $region19: #{model_forward.9} parent=0 // pred_check_branch
    %19 = sbr.rel (0) target = $region21
  $region20: #{model_forward.9} parent=0 // pred_region
    _
  $region21: #{model_forward.9} parent=0 // pred_fallthru
    _
  %v21 = vld [vmem:[%s0] sm:$0xff]
  %v22 = vld [vmem:[%s0 + $0x8] sm:$0xff]
  %v23 = vld [vmem:[%s0 + $0x10] sm:$0xf]
  %vm24 = vcmask 261120
  %v25 = vsel %vm24, %v21, 0.0
  %26 = vadd.xlane.f32.xlu0 %v25
  %v27 = vpop.xlane.xlu0 %26
  %v28 = vsel %vm24, %v22, 0.0
  %29 = vadd.xlane.f32.xlu0 %v28
  %v30 = vpop.xlane.xlu0 %29
  %vm31 = vcmask 257024
  %v32 = vsel %vm31, %v23, 0.0
  %33 = vadd.xlane.f32.xlu0 %v32
  %v34 = vpop.xlane.xlu0 %33
  %v35 = vrcp.pop 32.0
  %v36 = vmul.f32 %v27, %v35
  %v37 = vmul.f32 %v30, %v35
  %v38 = vmul.f32 %v34, %v35
  %v39 = vsub.f32 %v21, %v36
  %v40 = vsub.f32 %v22, %v37
  %v41 = vsub.f32 %v23, %v38
  %v42 = vmul.f32 %v39, %v39
  %v43 = vmul.f32 %v40, %v40
  %v44 = vmul.f32 %v41, %v41
  %v45 = vsel %vm24, %v42, 0.0
  %46 = vadd.xlane.f32.xlu0 %v45
  %v47 = vpop.xlane.xlu0 %46
  %v48 = vsel %vm24, %v43, 0.0
  %49 = vadd.xlane.f32.xlu0 %v48
  %v50 = vpop.xlane.xlu0 %49
  %v51 = vsel %vm31, %v44, 0.0
  %52 = vadd.xlane.f32.xlu0 %v51
  %v53 = vpop.xlane.xlu0 %52
  %v54 = vmul.f32 %v47, %v35
  %v55 = vmul.f32 %v50, %v35
  %v56 = vmul.f32 %v53, %v35
  %v57 = vadd.f32 %v54, 1e-05
  %v58 = vadd.f32 %v55, 1e-05
  %v59 = vadd.f32 %v56, 1e-05
  %v60 = vrsqrt.pop %v57
  %v61 = vrsqrt.pop %v58
  %v62 = vrsqrt.pop %v59
  %v63 = vmul.f32 %v39, %v60
  %v64 = vmul.f32 %v40, %v61
  %v65 = vmul.f32 %v41, %v62
  %v66 = vld [vmem:[%s1] sm:$0x1]
  %v68 = vlaneseq
  %v69 = vshrl.u32 %v68, 7
  %v70 = vsub.s32 0, %v69
  %v71 = vrot.slane %v66, %v70
  %v73 = vmul.f32 %v63, %v71
  %v74 = vmul.f32 %v64, %v71
  %v75 = vmul.f32 %v65, %v71
  %v76 = vld [vmem:[%s2] sm:$0x1]
  %v78 = vlaneseq
  %v79 = vshrl.u32 %v78, 7
  %v80 = vsub.s32 0, %v79
  %v81 = vrot.slane %v76, %v80
  %v83 = vadd.f32 %v73, %v81
  %v84 = vadd.f32 %v74, %v81
  %v85 = vadd.f32 %v75, %v81
  %v86 = vpack.c.bf16 %v84, %v83
  %v87 = vpack.c.bf16 %v85, %v85
  %v88 = vld [vmem:[%s3] sm:$0xf]
  %v89 = vld [vmem:[%s3 + $0x4] sm:$0xf]
  %v90 = vld [vmem:[%s3 + $0x8] sm:$0xf]
  %v91 = vld [vmem:[%s3 + $0xc] sm:$0xf]
  %v92 = vld [vmem:[%s4] sm:$0x1]
  %v94 = vlaneseq
  %v95 = vshrl.u32 %v94, 7
  %v96 = vsub.s32 0, %v95
  %v97 = vrot.slane %v92, %v96
  %v103 = vunpack.c.l.b16 %v88
  %v104 = vunpack.c.l.b16 %v89
  %v105 = vunpack.c.l.b16 %v90
  %v106 = vunpack.c.l.b16 %v91
  %v107 = vpack.c.b16 %v104, %v103
  %v108 = vpack.c.b16 %v106, %v105
  %v112 = vsel %vm24, %v86, 0
  %v115 = vsel %vm24, %v87, 0
  %117 = vmatprep.subr.bf16.mxu0 0
  %118 = vmatpush1.bf16.msra.mxu0 %v107
  %119 = vmatprep.subr.bf16.mxu0 0
  %120 = vmatpush1.bf16.msra.mxu0 %v108
  %121 = vmatprep.subr.bf16.mxu0 0
  %122 = vmatpush1.bf16.msra.mxu0 0
  %123 = vmatprep.subr.bf16.mxu0 0
  %124 = vmatpush1.bf16.msra.mxu0 0
  %125 = vmatprep.subr.bf16.mxu0 0
  %126 = vmatpush1.bf16.msra.mxu0 0
  %127 = vmatprep.subr.bf16.mxu0 0
  %128 = vmatpush1.bf16.msra.mxu0 0
  %129 = vmatprep.subr.bf16.mxu0 0
  %130 = vmatpush1.bf16.msra.mxu0 0
  %131 = vmatprep.subr.bf16.mxu0 0
  %132 = vmatpush1.bf16.msra.mxu0 0
  %133 = vmatprep.subr.bf16.mxu0 0
  %134 = vmatpush1.bf16.msra.mxu0 0
  %135 = vmatprep.subr.bf16.mxu0 0
  %136 = vmatpush1.bf16.msra.mxu0 0
  %137 = vmatprep.subr.bf16.mxu0 0
  %138 = vmatpush1.bf16.msra.mxu0 0
  %139 = vmatprep.subr.bf16.mxu0 0
  %140 = vmatpush1.bf16.msra.mxu0 0
  %141 = vmatprep.subr.bf16.mxu0 0
  %142 = vmatpush1.bf16.msra.mxu0 0
  %143 = vmatprep.subr.bf16.mxu0 0
  %144 = vmatpush1.bf16.msra.mxu0 0
  %145 = vmatprep.subr.bf16.mxu0 0
  %146 = vmatpush1.bf16.msra.mxu0 0
  %147 = vmatprep.subr.bf16.mxu0 0
  %148 = vmatpush1.bf16.msra.mxu0 0
  %149 = vmatprep.mubr.bf16.mxu0 0
  %150 = vmatmul.mubr.bf16.gmra.mrb[0].mxu0 %v112
  %v151 = vpop.f32.mrb[0].mxu0
  %v152 = vadd.f32 %v97, %v151
  %v153 = vpop.f32.mrb[0].mxu0
  %v154 = vpop.f32.mrb[0].mxu0
  %v155 = vadd.f32 %v97, %v154
  %v156 = vpop.f32.mrb[0].mxu0
  %157 = vmatprep.mubr.bf16.mxu0 0
  %158 = vmatmul.mubr.bf16.gmra.mrb[0].mxu0 %v115
  %v159 = vpop.f32.mrb[0].mxu0
  %v160 = vadd.f32 %v97, %v159
  %v161 = vpop.f32.mrb[0].mxu0
  %v162 = vpop.f32.mrb[0].mxu0
  %v163 = vpop.f32.mrb[0].mxu0
  %164 = vdwg.mxu0
  %v165 = vpack.c.bf16 %v155, %v152
  %v166 = vpack.c.bf16 %v160, %v160
  %v169 = vunpack.c.l.b16 %v165
  %v170 = vunpack.c.h.b16 %v165
  %v171 = vunpack.c.l.b16 %v166
  %v172 = vpack.c.b16 %v169, %v169
  %v173 = vpack.c.b16 %v170, %v170
  %v174 = vpack.c.b16 %v171, %v171
  %vm178 = vcmask 781312
  %179 = vst.msk [vmem:[%s5] sm:$0xf] %vm178, %v172
  %180 = vst.msk [vmem:[%s5 + $0x4] sm:$0xf] %vm178, %v173
  %vm181 = vcmask 779264
  %182 = vst.msk [vmem:[%s5 + $0x8] sm:$0x3] %vm181, %v174
  // Predicated region
  $region22: #{model_forward.9} parent=0 // pred_check
    _
  $region23: #{model_forward.9} parent=0 // pred_check_branch
    %184 = sbr.rel (0) target = $region25
  $region24: #{model_forward.9} parent=0 // pred_region
    _
  $region25: #{model_forward.9} parent=0 // pred_fallthru
    _
  // Predicated region
  $region26: #{model_forward.9} parent=0 // pred_check
    _
  $region27: #{model_forward.9} parent=0 // pred_check_branch
    %186 = sbr.rel (0) target = $region29
  $region28: #{model_forward.9} parent=0 // pred_region
    _
  $region29: #{model_forward.9} parent=0 // pred_fallthru
    _

// kernel: model_forward.11
$region0: #{model_forward.11}
  #allocation0 [shape = 'u32[]', space=smem, size = 0x4, offset = 0x4, fixed_abs, tag = 'smem constant byte address 0x4 - core index']
  #allocation1 [shape = 'u32[144,128]{1,0:T(1,128)}', space=vmem, size = 0x12000, scoped, tag = 'internal scratch']
  #allocation2 [shape = 'f32[20,32]{1,0:T(8,128)}', space=vmem, size = 0x3000, scoped, tag = 'scratch operand']
  #allocation3 [shape = 'bf16[20,32]{1,0:T(8,128)(2,1)}', space=vmem, size = 0x1800, scoped, tag = 'scratch operand']
  %s0 = inlined_call_operand.vmem [shape: f32[20,32], index: 0, kind: input, shape index: {}]
  %s1 = inlined_call_operand.vmem [shape: f32[1,32], index: 1, kind: input, shape index: {}]
  %s2 = inlined_call_operand.vmem [shape: f32[1,32], index: 2, kind: input, shape index: {}]
  %s3 = inlined_call_operand.vmem [shape: bf16[32,64], index: 3, kind: input, shape index: {}]
  %s4 = inlined_call_operand.vmem [shape: f32[1,64], index: 4, kind: input, shape index: {}]
  %s5 = inlined_call_operand.vmem [shape: bf16[64,32], index: 5, kind: input, shape index: {}]
  %s6 = inlined_call_operand.vmem [shape: f32[1,32], index: 6, kind: input, shape index: {}]
  %s7 = inlined_call_operand.vmem [shape: f32[20,32], index: 7, kind: output, shape index: {}]
  %s8 = sld [smem:[#allocation0]]
  $region46: #{model_forward.11} parent=0
    _
  %s10 = ssub.s32 1, %s8
  %s11 = scalar_select 0, %s10, %s8
  // Predicated region
  $region2: #{model_forward.11} parent=0 // pred_check
    _
  $region3: #{model_forward.11} parent=0 // pred_check_branch
    %13 = sbr.rel (0) target = $region5
  $region4: #{model_forward.11} parent=0 // pred_region
    _
  $region5: #{model_forward.11} parent=0 // pred_fallthru
    _
  // Predicated region
  $region6: #{model_forward.11} parent=0 // pred_check
    _
  $region7: #{model_forward.11} parent=0 // pred_check_branch
    %15 = sbr.rel (0) target = $region9
  $region8: #{model_forward.11} parent=0 // pred_region
    _
  $region9: #{model_forward.11} parent=0 // pred_fallthru
    _
  // Predicated region
  $region10: #{model_forward.11} parent=0 // pred_check
    _
  $region11: #{model_forward.11} parent=0 // pred_check_branch
    %17 = sbr.rel (0) target = $region13
  $region12: #{model_forward.11} parent=0 // pred_region
    _
  $region13: #{model_forward.11} parent=0 // pred_fallthru
    _
  // Predicated region
  $region14: #{model_forward.11} parent=0 // pred_check
    _
  $region15: #{model_forward.11} parent=0 // pred_check_branch
    %19 = sbr.rel (0) target = $region17
  $region16: #{model_forward.11} parent=0 // pred_region
    _
  $region17: #{model_forward.11} parent=0 // pred_fallthru
    _
  // Predicated region
  $region18: #{model_forward.11} parent=0 // pred_check
    _
  $region19: #{model_forward.11} parent=0 // pred_check_branch
    %21 = sbr.rel (0) target = $region21
  $region20: #{model_forward.11} parent=0 // pred_region
    _
  $region21: #{model_forward.11} parent=0 // pred_fallthru
    _
  // Predicated region
  $region22: #{model_forward.11} parent=0 // pred_check
    _
  $region23: #{model_forward.11} parent=0 // pred_check_branch
    %23 = sbr.rel (0) target = $region25
  $region24: #{model_forward.11} parent=0 // pred_region
    _
  $region25: #{model_forward.11} parent=0 // pred_fallthru
    _
  // Predicated region
  $region26: #{model_forward.11} parent=0 // pred_check
    _
  $region27: #{model_forward.11} parent=0 // pred_check_branch
    %25 = sbr.rel (0) target = $region29
  $region28: #{model_forward.11} parent=0 // pred_region
    _
  $region29: #{model_forward.11} parent=0 // pred_fallthru
    _
  %p27 = scmp.eq.s32.totalorder 0, 0
  // Predicated region
  $region30: #{model_forward.11} parent=0 // pred_check
    %p28 = pneg %p27
  $region31: #{model_forward.11} parent=0 // pred_check_branch
    %30 = sbr.rel (%p28) target = $region33
  $region32: #{model_forward.11} parent=0 // pred_region
    %v31 = vld [vmem:[%s0] sm:$0xff]
    %v32 = vld [vmem:[%s0 + $0x8] sm:$0xff]
    %v33 = vld [vmem:[%s0 + $0x10] sm:$0xf]
    %vm34 = vcmask 261120
    %v35 = vsel %vm34, %v31, 0.0
    %36 = vadd.xlane.f32.xlu0 %v35
    %v37 = vpop.xlane.xlu0 %36
    %v38 = vsel %vm34, %v32, 0.0
    %39 = vadd.xlane.f32.xlu0 %v38
    %v40 = vpop.xlane.xlu0 %39
    %vm41 = vcmask 257024
    %v42 = vsel %vm41, %v33, 0.0
    %43 = vadd.xlane.f32.xlu0 %v42
    %v44 = vpop.xlane.xlu0 %43
    %v45 = vrcp.pop 32.0
    %v46 = vmul.f32 %v37, %v45
    %v47 = vmul.f32 %v40, %v45
    %v48 = vmul.f32 %v44, %v45
    %v49 = vsub.f32 %v31, %v46
    %v50 = vsub.f32 %v32, %v47
    %v51 = vsub.f32 %v33, %v48
    %v52 = vmul.f32 %v49, %v49
    %v53 = vmul.f32 %v50, %v50
    %v54 = vmul.f32 %v51, %v51
    %v55 = vsel %vm34, %v52, 0.0
    %56 = vadd.xlane.f32.xlu0 %v55
    %v57 = vpop.xlane.xlu0 %56
    %v58 = vsel %vm34, %v53, 0.0
    %59 = vadd.xlane.f32.xlu0 %v58
    %v60 = vpop.xlane.xlu0 %59
    %v61 = vsel %vm41, %v54, 0.0
    %62 = vadd.xlane.f32.xlu0 %v61
    %v63 = vpop.xlane.xlu0 %62
    %v64 = vmul.f32 %v57, %v45
    %v65 = vmul.f32 %v60, %v45
    %v66 = vmul.f32 %v63, %v45
    %v67 = vadd.f32 %v64, 1e-05
    %v68 = vadd.f32 %v65, 1e-05
    %v69 = vadd.f32 %v66, 1e-05
    %v70 = vrsqrt.pop %v67
    %v71 = vrsqrt.pop %v68
    %v72 = vrsqrt.pop %v69
    %v73 = vmul.f32 %v49, %v70
    %v74 = vmul.f32 %v50, %v71
    %v75 = vmul.f32 %v51, %v72
    %v76 = vld [vmem:[%s1] sm:$0x1]
    %v78 = vlaneseq
    %v79 = vshrl.u32 %v78, 7
    %v80 = vsub.s32 0, %v79
    %v81 = vrot.slane %v76, %v80
    %v83 = vmul.f32 %v73, %v81
    %v84 = vmul.f32 %v74, %v81
    %v85 = vmul.f32 %v75, %v81
    %v86 = vld [vmem:[%s2] sm:$0x1]
    %v88 = vlaneseq
    %v89 = vshrl.u32 %v88, 7
    %v90 = vsub.s32 0, %v89
    %v91 = vrot.slane %v86, %v90
    %v93 = vadd.f32 %v83, %v91
    %v94 = vadd.f32 %v84, %v91
    %v95 = vadd.f32 %v85, %v91
    %v96 = vpack.c.bf16 %v94, %v93
    %v97 = vpack.c.bf16 %v95, %v95
    %v100 = vunpack.c.l.b16 %v96
    %v101 = vunpack.c.h.b16 %v96
    %v102 = vunpack.c.l.b16 %v97
    %v103 = vpack.c.b16 %v100, %v100
    %v104 = vpack.c.b16 %v101, %v101
    %v105 = vpack.c.b16 %v102, %v102
    %109 = vst.msk [vmem:[#allocation3] sm:$0xf] %vm41, %v103
    %110 = vst.msk [vmem:[#allocation3 + $0x4] sm:$0xf] %vm41, %v104
    %vm111 = vcmask 254976
    %112 = vst.msk [vmem:[#allocation3 + $0x8] sm:$0x3] %vm111, %v105
    %113 = vst.msk [vmem:[#allocation2] sm:$0xff] %vm34, 0.0
    %114 = vst.msk [vmem:[#allocation2 + $0x8] sm:$0xff] %vm34, 0.0
    %115 = vst.msk [vmem:[#allocation2 + $0x10] sm:$0xf] %vm41, 0.0
  $region33: #{model_forward.11} parent=0 // pred_fallthru
    _
  %v116 = vld [vmem:[#allocation3] sm:$0xf]
  %v117 = vld [vmem:[#allocation3 + $0x4] sm:$0xf]
  %v118 = vld [vmem:[#allocation3 + $0x8] sm:$0x3]
  %v119 = vld [vmem:[%s3] sm:$0xf]
  %v120 = vld [vmem:[%s3 + $0x4] sm:$0xf]
  %v121 = vld [vmem:[%s3 + $0x8] sm:$0xf]
  %v122 = vld [vmem:[%s3 + $0xc] sm:$0xf]
  %v123 = vld [vmem:[%s4] sm:$0x1]
  %v125 = vlaneseq
  %v126 = vshrl.u32 %v125, 7
  %v127 = vsub.s32 0, %v126
  %v128 = vrot.slane %v123, %v127
  %v133 = vunpack.c.l.b16 %v116
  %v134 = vunpack.c.l.b16 %v117
  %v135 = vunpack.c.l.b16 %v118
  %v136 = vpack.c.b16 %v134, %v133
  %v137 = vpack.c.b16 %v135, %v135
  %v142 = vunpack.c.l.b16 %v119
  %v143 = vunpack.c.l.b16 %v120
  %v144 = vunpack.c.l.b16 %v121
  %v145 = vunpack.c.l.b16 %v122
  %v146 = vpack.c.b16 %v143, %v142
  %v147 = vpack.c.b16 %v145, %v144
  %vm150 = vcmask 261120
  %v152 = vsel %vm150, %v136, 0
  %v155 = vsel %vm150, %v137, 0
  %157 = vmatprep.subr.bf16.mxu0 0
  %158 = vmatpush1.bf16.msra.mxu0 %v146
  %159 = vmatprep.subr.bf16.mxu0 0
  %160 = vmatpush1.bf16.msra.mxu0 %v147
  %161 = vmatprep.subr.bf16.mxu0 0
  %162 = vmatpush1.bf16.msra.mxu0 0
  %163 = vmatprep.subr.bf16.mxu0 0
  %164 = vmatpush1.bf16.msra.mxu0 0
  %165 = vmatprep.subr.bf16.mxu0 0
  %166 = vmatpush1.bf16.msra.mxu0 0
  %167 = vmatprep.subr.bf16.mxu0 0
  %168 = vmatpush1.bf16.msra.mxu0 0
  %169 = vmatprep.subr.bf16.mxu0 0
  %170 = vmatpush1.bf16.msra.mxu0 0
  %171 = vmatprep.subr.bf16.mxu0 0
  %172 = vmatpush1.bf16.msra.mxu0 0
  %173 = vmatprep.subr.bf16.mxu0 0
  %174 = vmatpush1.bf16.msra.mxu0 0
  %175 = vmatprep.subr.bf16.mxu0 0
  %176 = vmatpush1.bf16.msra.mxu0 0
  %177 = vmatprep.subr.bf16.mxu0 0
  %178 = vmatpush1.bf16.msra.mxu0 0
  %179 = vmatprep.subr.bf16.mxu0 0
  %180 = vmatpush1.bf16.msra.mxu0 0
  %181 = vmatprep.subr.bf16.mxu0 0
  %182 = vmatpush1.bf16.msra.mxu0 0
  %183 = vmatprep.subr.bf16.mxu0 0
  %184 = vmatpush1.bf16.msra.mxu0 0
  %185 = vmatprep.subr.bf16.mxu0 0
  %186 = vmatpush1.bf16.msra.mxu0 0
  %187 = vmatprep.subr.bf16.mxu0 0
  %188 = vmatpush1.bf16.msra.mxu0 0
  %189 = vmatprep.mubr.bf16.mxu0 0
  %190 = vmatmul.mubr.bf16.gmra.mrb[0].mxu0 %v152
  %v191 = vpop.f32.mrb[0].mxu0
  %v192 = vadd.f32 %v128, %v191
  %v193 = vpop.f32.mrb[0].mxu0
  %v194 = vpop.f32.mrb[0].mxu0
  %v195 = vadd.f32 %v128, %v194
  %v196 = vpop.f32.mrb[0].mxu0
  %197 = vmatprep.mubr.bf16.mxu0 0
  %198 = vmatmul.mubr.bf16.gmra.mrb[0].mxu0 %v155
  %v199 = vpop.f32.mrb[0].mxu0
  %v200 = vadd.f32 %v128, %v199
  %v201 = vpop.f32.mrb[0].mxu0
  %v202 = vpop.f32.mrb[0].mxu0
  %v203 = vpop.f32.mrb[0].mxu0
  %204 = vdwg.mxu0
  %v205 = vmul.f32 %v192, %v192
  %v206 = vmul.f32 %v195, %v195
  %v207 = vmul.f32 %v200, %v200
  %v208 = vmul.f32 %v192, %v205
  %v209 = vmul.f32 %v195, %v206
  %v210 = vmul.f32 %v200, %v207
  %v211 = vmul.f32 %v208, 0.044715
  %v212 = vmul.f32 %v209, 0.044715
  %v213 = vmul.f32 %v210, 0.044715
  %v214 = vadd.f32 %v192, %v211
  %v215 = vadd.f32 %v195, %v212
  %v216 = vadd.f32 %v200, %v213
  %v217 = vmul.f32 %v214, 0.7978846
  %v218 = vmul.f32 %v215, 0.7978846
  %v219 = vmul.f32 %v216, 0.7978846
  %v220 = vtanh.pop %v217
  %v221 = vtanh.pop %v218
  %v222 = vtanh.pop %v219
  %v223 = vadd.f32 %v220, 1.0
  %v224 = vadd.f32 %v221, 1.0
  %v225 = vadd.f32 %v222, 1.0
  %v226 = vmul.f32 %v223, 0.5
  %v227 = vmul.f32 %v224, 0.5
  %v228 = vmul.f32 %v225, 0.5
  %v229 = vmul.f32 %v192, %v226
  %v230 = vmul.f32 %v195, %v227
  %v231 = vmul.f32 %v200, %v228
  %v232 = vld [vmem:[#allocation2] sm:$0xff]
  %v233 = vld [vmem:[#allocation2 + $0x8] sm:$0xff]
  %v234 = vld [vmem:[#allocation2 + $0x10] sm:$0xf]
  %v235 = vpack.c.bf16 %v230, %v229
  %v236 = vpack.c.bf16 %v231, %v231
  %v237 = vld [vmem:[%s5] sm:$0xf]
  %v238 = vld [vmem:[%s5 + $0x4] sm:$0xf]
  %v239 = vld [vmem:[%s5 + $0x8] sm:$0xf]
  %v240 = vld [vmem:[%s5 + $0xc] sm:$0xf]
  %v241 = vld [vmem:[%s5 + $0x10] sm:$0xf]
  %v242 = vld [vmem:[%s5 + $0x14] sm:$0xf]
  %v243 = vld [vmem:[%s5 + $0x18] sm:$0xf]
  %v244 = vld [vmem:[%s5 + $0x1c] sm:$0xf]
  %v253 = vunpack.c.l.b16 %v237
  %v254 = vunpack.c.l.b16 %v238
  %v255 = vunpack.c.l.b16 %v239
  %v256 = vunpack.c.l.b16 %v240
  %v257 = vunpack.c.l.b16 %v241
  %v258 = vunpack.c.l.b16 %v242
  %v259 = vunpack.c.l.b16 %v243
  %v260 = vunpack.c.l.b16 %v244
  %v261 = vpack.c.b16 %v254, %v253
  %v262 = vpack.c.b16 %v256, %v255
  %v263 = vpack.c.b16 %v258, %v257
  %v264 = vpack.c.b16 %v260, %v259
  %vm269 = vcmask 523264
  %v271 = vsel %vm269, %v235, 0
  %v274 = vsel %vm269, %v236, 0
  %276 = vmatprep.subr.bf16.mxu0 0
  %277 = vmatpush1.bf16.msra.mxu0 %v261
  %278 = vmatprep.subr.bf16.mxu0 0
  %279 = vmatpush1.bf16.msra.mxu0 %v262
  %280 = vmatprep.subr.bf16.mxu0 0
  %281 = vmatpush1.bf16.msra.mxu0 %v263
  %282 = vmatprep.subr.bf16.mxu0 0
  %283 = vmatpush1.bf16.msra.mxu0 %v264
  %284 = vmatprep.subr.bf16.mxu0 0
  %285 = vmatpush1.bf16.msra.mxu0 0
  %286 = vmatprep.subr.bf16.mxu0 0
  %287 = vmatpush1.bf16.msra.mxu0 0
  %288 = vmatprep.subr.bf16.mxu0 0
  %289 = vmatpush1.bf16.msra.mxu0 0
  %290 = vmatprep.subr.bf16.mxu0 0
  %291 = vmatpush1.bf16.msra.mxu0 0
  %292 = vmatprep.subr.bf16.mxu0 0
  %293 = vmatpush1.bf16.msra.mxu0 0
  %294 = vmatprep.subr.bf16.mxu0 0
  %295 = vmatpush1.bf16.msra.mxu0 0
  %296 = vmatprep.subr.bf16.mxu0 0
  %297 = vmatpush1.bf16.msra.mxu0 0
  %298 = vmatprep.subr.bf16.mxu0 0
  %299 = vmatpush1.bf16.msra.mxu0 0
  %300 = vmatprep.subr.bf16.mxu0 0
  %301 = vmatpush1.bf16.msra.mxu0 0
  %302 = vmatprep.subr.bf16.mxu0 0
  %303 = vmatpush1.bf16.msra.mxu0 0
  %304 = vmatprep.subr.bf16.mxu0 0
  %305 = vmatpush1.bf16.msra.mxu0 0
  %306 = vmatprep.subr.bf16.mxu0 0
  %307 = vmatpush1.bf16.msra.mxu0 0
  %308 = vmatprep.mubr.bf16.mxu0 0
  %309 = vmatmul.mubr.bf16.gmra.mrb[0].mxu0 %v271
  %v310 = vpop.f32.mrb[0].mxu0
  %v311 = vadd.f32 0.0, %v310
  %v312 = vpop.f32.mrb[0].mxu0
  %v313 = vpop.f32.mrb[0].mxu0
  %v314 = vadd.f32 0.0, %v313
  %v315 = vpop.f32.mrb[0].mxu0
  %316 = vmatprep.mubr.bf16.mxu0 0
  %317 = vmatmul.mubr.bf16.gmra.mrb[0].mxu0 %v274
  %v318 = vpop.f32.mrb[0].mxu0
  %v319 = vadd.f32 0.0, %v318
  %v320 = vpop.f32.mrb[0].mxu0
  %v321 = vpop.f32.mrb[0].mxu0
  %v322 = vpop.f32.mrb[0].mxu0
  %323 = vdwg.mxu0
  %v324 = vadd.f32 %v232, %v311
  %v325 = vadd.f32 %v233, %v314
  %v326 = vadd.f32 %v234, %v319
  %327 = vst.msk [vmem:[#allocation2] sm:$0xff] %vm150, %v324
  %328 = vst.msk [vmem:[#allocation2 + $0x8] sm:$0xff] %vm150, %v325
  %vm329 = vcmask 257024
  %330 = vst.msk [vmem:[#allocation2 + $0x10] sm:$0xf] %vm329, %v326
  // Predicated region
  $region34: #{model_forward.11} parent=0 // pred_check
    %p331 = pneg %p27
  $region35: #{model_forward.11} parent=0 // pred_check_branch
    %333 = sbr.rel (%p331) target = $region37
  $region36: #{model_forward.11} parent=0 // pred_region
    %v334 = vld [vmem:[%s0] sm:$0xff]
    %v335 = vld [vmem:[%s0 + $0x8] sm:$0xff]
    %v336 = vld [vmem:[%s0 + $0x10] sm:$0xf]
    %v337 = vld [vmem:[#allocation2] sm:$0xff]
    %v338 = vld [vmem:[#allocation2 + $0x8] sm:$0xff]
    %v339 = vld [vmem:[#allocation2 + $0x10] sm:$0xf]
    %v340 = vadd.f32 %v334, %v337
    %v341 = vadd.f32 %v335, %v338
    %v342 = vadd.f32 %v336, %v339
    %v343 = vld [vmem:[%s6] sm:$0x1]
    %v345 = vlaneseq
    %v346 = vshrl.u32 %v345, 7
    %v347 = vsub.s32 0, %v346
    %v348 = vrot.slane %v343, %v347
    %v350 = vadd.f32 %v340, %v348
    %v351 = vadd.f32 %v341, %v348
    %v352 = vadd.f32 %v342, %v348
    %353 = vst.msk [vmem:[%s7] sm:$0xff] %vm150, %v350
    %354 = vst.msk [vmem:[%s7 + $0x8] sm:$0xff] %vm150, %v351
    %355 = vst.msk [vmem:[%s7 + $0x10] sm:$0xf] %vm329, %v352
  $region37: #{model_forward.11} parent=0 // pred_fallthru
    _
  // Predicated region
  $region38: #{model_forward.11} parent=0 // pred_check
    _
  $region39: #{model_forward.11} parent=0 // pred_check_branch
    %357 = sbr.rel (0) target = $region41
  $region40: #{model_forward.11} parent=0 // pred_region
    _
  $region41: #{model_forward.11} parent=0 // pred_fallthru
    _
  // Predicated region
  $region42: #{model_forward.11} parent=0 // pred_check
    _
  $region43: #{model_forward.11} parent=0 // pred_check_branch
    %359 = sbr.rel (0) target = $region45
  $region44: #{model_forward.11} parent=0 // pred_region
    _
  $region45: #{model_forward.11} parent=0 // pred_fallthru
    _

// kernel: model_forward.10
$region0: #{model_forward.10}
  #allocation0 [shape = 'u32[]', space=smem, size = 0x4, offset = 0x4, fixed_abs, tag = 'smem constant byte address 0x4 - core index']
  #allocation1 [shape = 'u32[144,128]{1,0:T(1,128)}', space=vmem, size = 0x12000, scoped, tag = 'internal scratch']
  #allocation2 [shape = 'f32[5,32]{1,0:T(8,128)}', space=vmem, size = 0x1000, scoped, tag = 'scratch operand']
  %s0 = inlined_call_operand.vmem [shape: bf16[4,3,4,5,8], index: 0, kind: input, shape index: {}, may-alias: {0,1}]
  %s1 = inlined_call_operand.vmem [shape: bf16[4,3,4,5,8], index: 1, kind: input, shape index: {}, may-alias: {0,1}]
  %s2 = inlined_call_operand.vmem [shape: f32[4,5,32], index: 2, kind: input, shape index: {}]
  %s3 = inlined_call_operand.vmem [shape: bf16[4,8,32], index: 3, kind: input, shape index: {}]
  %s4 = inlined_call_operand.vmem [shape: f32[1,32], index: 4, kind: input, shape index: {}]
  %s5 = inlined_call_operand.vmem [shape: f32[4,5,32], index: 5, kind: output, shape index: {}]
  %s6 = sld [smem:[#allocation0]]
  $region53: #{model_forward.10} parent=0
    _
  %s8 = ssub.s32 1, %s6
  %s9 = scalar_select 0, %s8, %s6
  loop: start=0, step=1, limit=6
  $region2: #{model_forward.10} parent=0 // loop_pre_header
    _
  $region3: #{model_forward.10} parent=0 // loop_header
    %s11 = sphi 0, %s15
    %p12 = scmp.ge.s32.totalorder %s11, 6
    %s18 = sphi 0, %s30
    %s19 = sphi 0, %s26
    %s20 = sphi 0, %s18
    %s21 = sphi 0, %s19
    %s22 = sphi 0, %s20
    %s23 = sphi 0, %s21
    %s35 = sphi 0, %s37
    %s38 = sphi 0, %s35
    %s39 = sphi 0, %s38
    %s55 = sphi 0, %s39
    %s61 = sphi 0, %s63
    %s64 = sphi 0, %s61
    %s65 = sphi 0, %s64
    %s81 = sphi 0, %s65
    %s89 = sphi 0, %s91
    %s92 = sphi 0, %s89
    %s93 = sphi 0, %s92
    %s109 = sphi 0, %s93
    %s113 = sphi 0, %s113
    %s115 = sphi 0, %s113
    %s116 = sphi 0, %s115
    %s130 = sphi 0, %s116
    %s134 = sphi 0, %s134
    %s136 = sphi 0, %s134
    %s137 = sphi 0, %s136
    %s151 = sphi 0, %s137
    %s159 = sphi 0, %s161
    %s162 = sphi 0, %s159
    %s163 = sphi 0, %s162
    %s179 = sphi 0, %s163
  $region4: #{model_forward.10} parent=0 // loop_header_branch
    %14 = sbr.rel (%p12) target = $region8
  $region5: #{model_forward.10} parent=0 // loop_body
    %s16 = ssub.s32 %s11, 1
    %s17 = ssub.s32 %s11, 2
    %s24 = sadd.s32 1, %s19
    %p25 = scmp.ge.s32.totalorder %s24, 1
    %s26 = scalar_select %p25, 0, %s24
    %s27 = sadd.s32 1, %s18
    %s28 = scalar_select %p25, %s27, %s18
    %p29 = scmp.ge.s32.totalorder %s28, 4
    %s30 = scalar_select %p29, 0, %s28
    %s31 = ssub.s32 %s18, %s30
    %s32 = ssub.s32 %s19, %s26
    %s33 = sor.u32 %s31, %s32
    %p34 = scmp.eq.s32.totalorder %s33, 0
    %s36 = sadd.s32 %s35, 1
    %s37 = scalar_select %p34, %s35, %s36
    %p40 = pneg %p34
    %p41 = scmp.eq.s32.totalorder %s11, 3
    %p42 = por %p40, %p41
    %p43 = scmp.ne.s32.totalorder %s35, %s38
    %p44 = scmp.eq.s32.totalorder %s11, 0
    %p45 = por %p43, %p44
    %p46 = scmp.ne.s32.totalorder %s35, %s38
    %p47 = scmp.eq.s32.totalorder %s16, 3
    %p48 = por %p46, %p47
    %p49 = scmp.ne.s32.totalorder %s38, %s39
    %p50 = scmp.eq.s32.totalorder %s16, 0
    %p51 = por %p49, %p50
    %p52 = scmp.ne.s32.totalorder %s38, %s39
    %p53 = scmp.eq.s32.totalorder %s17, 3
    %p54 = por %p52, %p53
    %p56 = scmp.ne.s32.totalorder %s39, %s55
    %p57 = scmp.eq.s32.totalorder %s17, 0
    %p58 = por %p56, %p57
    %s59 = ssub.s32 %s18, %s30
    %p60 = scmp.eq.s32.totalorder %s59, 0
    %s62 = sadd.s32 %s61, 1
    %s63 = scalar_select %p60, %s61, %s62
    %p66 = pneg %p60
    %p67 = scmp.eq.s32.totalorder %s11, 3
    %p68 = por %p66, %p67
    %p69 = scmp.ne.s32.totalorder %s61, %s64
    %p70 = scmp.eq.s32.totalorder %s11, 0
    %p71 = por %p69, %p70
    %p72 = scmp.ne.s32.totalorder %s61, %s64
    %p73 = scmp.eq.s32.totalorder %s16, 3
    %p74 = por %p72, %p73
    %p75 = scmp.ne.s32.totalorder %s64, %s65
    %p76 = scmp.eq.s32.totalorder %s16, 0
    %p77 = por %p75, %p76
    %p78 = scmp.ne.s32.totalorder %s64, %s65
    %p79 = scmp.eq.s32.totalorder %s17, 3
    %p80 = por %p78, %p79
    %p82 = scmp.ne.s32.totalorder %s65, %s81
    %p83 = scmp.eq.s32.totalorder %s17, 0
    %p84 = por %p82, %p83
    %s85 = ssub.s32 %s18, %s30
    %s86 = ssub.s32 %s19, %s26
    %s87 = sor.u32 %s85, %s86
    %p88 = scmp.eq.s32.totalorder %s87, 0
    %s90 = sadd.s32 %s89, 1
    %s91 = scalar_select %p88, %s89, %s90
    %p94 = pneg %p88
    %p95 = scmp.eq.s32.totalorder %s11, 3
    %p96 = por %p94, %p95
    %p97 = scmp.ne.s32.totalorder %s89, %s92
    %p98 = scmp.eq.s32.totalorder %s11, 0
    %p99 = por %p97, %p98
    %p100 = scmp.ne.s32.totalorder %s89, %s92
    %p101 = scmp.eq.s32.totalorder %s16, 3
    %p102 = por %p100, %p101
    %p103 = scmp.ne.s32.totalorder %s92, %s93
    %p104 = scmp.eq.s32.totalorder %s16, 0
    %p105 = por %p103, %p104
    %p106 = scmp.ne.s32.totalorder %s92, %s93
    %p107 = scmp.eq.s32.totalorder %s17, 3
    %p108 = por %p106, %p107
    %p110 = scmp.ne.s32.totalorder %s93, %s109
    %p111 = scmp.eq.s32.totalorder %s17, 0
    %p112 = por %p110, %p111
    %s114 = sadd.s32 %s113, 1
    %p117 = scmp.eq.s32.totalorder %s11, 3
    %p118 = scmp.ne.s32.totalorder %s113, %s115
    %p119 = scmp.eq.s32.totalorder %s11, 0
    %p120 = por %p118, %p119
    %p121 = scmp.ne.s32.totalorder %s113, %s115
    %p122 = scmp.eq.s32.totalorder %s16, 3
    %p123 = por %p121, %p122
    %p124 = scmp.ne.s32.totalorder %s115, %s116
    %p125 = scmp.eq.s32.totalorder %s16, 0
    %p126 = por %p124, %p125
    %p127 = scmp.ne.s32.totalorder %s115, %s116
    %p128 = scmp.eq.s32.totalorder %s17, 3
    %p129 = por %p127, %p128
    %p131 = scmp.ne.s32.totalorder %s116, %s130
    %p132 = scmp.eq.s32.totalorder %s17, 0
    %p133 = por %p131, %p132
    %s135 = sadd.s32 %s134, 1
    %p138 = scmp.eq.s32.totalorder %s11, 3
    %p139 = scmp.ne.s32.totalorder %s134, %s136
    %p140 = scmp.eq.s32.totalorder %s11, 0
    %p141 = por %p139, %p140
    %p142 = scmp.ne.s32.totalorder %s134, %s136
    %p143 = scmp.eq.s32.totalorder %s16, 3
    %p144 = por %p142, %p143
    %p145 = scmp.ne.s32.totalorder %s136, %s137
    %p146 = scmp.eq.s32.totalorder %s16, 0
    %p147 = por %p145, %p146
    %p148 = scmp.ne.s32.totalorder %s136, %s137
    %p149 = scmp.eq.s32.totalorder %s17, 3
    %p150 = por %p148, %p149
    %p152 = scmp.ne.s32.totalorder %s137, %s151
    %p153 = scmp.eq.s32.totalorder %s17, 0
    %p154 = por %p152, %p153
    %s155 = ssub.s32 %s18, %s30
    %s156 = ssub.s32 %s19, %s26
    %s157 = sor.u32 %s155, %s156
    %p158 = scmp.eq.s32.totalorder %s157, 0
    %s160 = sadd.s32 %s159, 1
    %s161 = scalar_select %p158, %s159, %s160
    %p164 = pneg %p158
    %p165 = scmp.eq.s32.totalorder %s11, 3
    %p166 = por %p164, %p165
    %p167 = scmp.ne.s32.totalorder %s159, %s162
    %p168 = scmp.eq.s32.totalorder %s11, 0
    %p169 = por %p167, %p168
    %p170 = scmp.ne.s32.totalorder %s159, %s162
    %p171 = scmp.eq.s32.totalorder %s16, 3
    %p172 = por %p170, %p171
    %p173 = scmp.ne.s32.totalorder %s162, %s163
    %p174 = scmp.eq.s32.totalorder %s16, 0
    %p175 = por %p173, %p174
    %p176 = scmp.ne.s32.totalorder %s162, %s163
    %p177 = scmp.eq.s32.totalorder %s17, 3
    %p178 = por %p176, %p177
    %p180 = scmp.ne.s32.totalorder %s163, %s179
    %p181 = scmp.eq.s32.totalorder %s17, 0
    %p182 = por %p180, %p181
    %p183 = scmp.le.s32.totalorder 1, %s11
    %p184 = scmp.lt.s32.totalorder %s11, 5
    %p185 = pnand %p183, %p184
    %p186 = pneg %p185
    // Predicated region
    $region9: #{model_forward.10} parent=5 // pred_check
      _
    $region10: #{model_forward.10} parent=5 // pred_check_branch
      %188 = sbr.rel (%p185) target = $region12
    $region11: #{model_forward.10} parent=5 // pred_region
      %s189 = ssub.s32 %s11, 1
      // Predicated region
      $region13: #{model_forward.10} parent=11 // pred_check
        %p190 = pneg %p126
      $region14: #{model_forward.10} parent=11 // pred_check_branch
        %192 = sbr.rel (%p190) target = $region16
      $region15: #{model_forward.10} parent=11 // pred_region
        _
      $region16: #{model_forward.10} parent=11 // pred_fallthru
        _
      // Predicated region
      $region17: #{model_forward.10} parent=11 // pred_check
        %p193 = pneg %p147
      $region18: #{model_forward.10} parent=11 // pred_check_branch
        %195 = sbr.rel (%p193) target = $region20
      $region19: #{model_forward.10} parent=11 // pred_region
        _
      $region20: #{model_forward.10} parent=11 // pred_fallthru
        _
    $region12: #{model_forward.10} parent=5 // pred_fallthru
      _
    %p196 = scmp.lt.s32.totalorder %s11, 4
    // Predicated region
    $region21: #{model_forward.10} parent=5 // pred_check
      %p197 = pneg %p196
    $region22: #{model_forward.10} parent=5 // pred_check_branch
      %199 = sbr.rel (%p197) target = $region24
    $region23: #{model_forward.10} parent=5 // pred_region
      // Predicated region
      $region25: #{model_forward.10} parent=23 // pred_check
        %p200 = pneg %p45
      $region26: #{model_forward.10} parent=23 // pred_check_branch
        %202 = sbr.rel (%p200) target = $region28
      $region27: #{model_forward.10} parent=23 // pred_region
        %p203 = scmp.lt.s32.totalorder %s18, 3
        %s204 = scalar_select %p203, %s18, 3
        %p205 = scmp.lt.s32.totalorder %s19, 0
        %s206 = scalar_select %p205, %s19, 0
        %s207 = sadd.s32 %s206, 8
        %s208 = smul.addr %s204, 12
        %s209 = sadd.s32 %s207, %s208
        %s210 = smul.addr %s209, 4
        %s211 = scalar_lea.vmem %s0, %s210
      $region28: #{model_forward.10} parent=23 // pred_fallthru
        _
      // Predicated region
      $region29: #{model_forward.10} parent=23 // pred_check
        %p212 = pneg %p71
      $region30: #{model_forward.10} parent=23 // pred_check_branch
        %214 = sbr.rel (%p212) target = $region32
      $region31: #{model_forward.10} parent=23 // pred_region
        %p215 = scmp.lt.s32.totalorder %s18, 3
        %s216 = scalar_select %p215, %s18, 3
        %s217 = smul.addr %s216, 12
        %s218 = smul.addr %s217, 4
        %s219 = scalar_lea.vmem %s1, %s218
      $region32: #{model_forward.10} parent=23 // pred_fallthru
        _
      // Predicated region
      $region33: #{model_forward.10} parent=23 // pred_check
        %p220 = pneg %p99
      $region34: #{model_forward.10} parent=23 // pred_check_branch
        %222 = sbr.rel (%p220) target = $region36
      $region35: #{model_forward.10} parent=23 // pred_region
        %p223 = scmp.lt.s32.totalorder %s18, 3
        %s224 = scalar_select %p223, %s18, 3
        %p225 = scmp.lt.s32.totalorder %s19, 0
        %s226 = scalar_select %p225, %s19, 0
        %s227 = sadd.s32 %s226, %s224
        %s228 = smul.addr %s227, 8
        %s229 = scalar_lea.vmem %s2, %s228
      $region36: #{model_forward.10} parent=23 // pred_fallthru
        _
    $region24: #{model_forward.10} parent=5 // pred_fallthru
      _
    %p230 = scmp.le.s32.totalorder 1, %s11
    %p231 = scmp.lt.s32.totalorder %s11, 5
    %p232 = pnand %p230, %p231
    %p233 = pneg %p232
    // Predicated region
    $region37: #{model_forward.10} parent=5 // pred_check
      _
    $region38: #{model_forward.10} parent=5 // pred_check_branch
      %235 = sbr.rel (%p232) target = $region40
    $region39: #{model_forward.10} parent=5 // pred_region
      %s236 = ssub.s32 %s11, 1
      %p237 = scmp.lt.s32.totalorder %s20, 3
      %s238 = scalar_select %p237, %s20, 3
      %p239 = scmp.lt.s32.totalorder %s21, 0
      %s240 = scalar_select %p239, %s21, 0
      %s241 = sadd.s32 %s240, 8
      %s242 = smul.addr %s238, 12
      %s243 = sadd.s32 %s241, %s242
      %s244 = smul.addr %s243, 4
      %s245 = scalar_lea.vmem %s0, %s244
      %p246 = pneg %p51
      %p247 = pneg %p48
      %p248 = scmp.lt.s32.totalorder %s20, 3
      %s249 = scalar_select %p248, %s20, 3
      %s250 = smul.addr %s249, 12
      %s251 = smul.addr %s250, 4
      %s252 = scalar_lea.vmem %s1, %s251
      %p253 = pneg %p77
      %p254 = pneg %p74
      %p255 = scmp.lt.s32.totalorder %s20, 3
      %s256 = scalar_select %p255, %s20, 3
      %p257 = scmp.lt.s32.totalorder %s21, 0
      %s258 = scalar_select %p257, %s21, 0
      %s259 = sadd.s32 %s258, %s256
      %s260 = smul.addr %s259, 8
      %s261 = scalar_lea.vmem %s2, %s260
      %p262 = pneg %p105
      %p263 = pneg %p102
      %p264 = pneg %p126
      %p265 = pneg %p123
      %p266 = pneg %p147
      %p267 = pneg %p144
      %p268 = pneg %p175
      %p269 = pneg %p172
      %p270 = scmp.lt.s32.totalorder %s20, 3
      %s271 = scalar_select %p270, %s20, 3
      %p272 = scmp.lt.s32.totalorder %s21, 0
      %s273 = scalar_select %p272, %s21, 0
      %s274 = sadd.s32 %s273, %s271
      %s275 = smul.addr %s274, 8
      %s276 = scalar_lea.vmem %s5, %s275
      %p277 = scmp.lt.s32.totalorder %s20, 3
      %s278 = scalar_select %p277, %s20, 3
      %p279 = scmp.lt.s32.totalorder %s21, 0
      %s280 = scalar_select %p279, %s21, 0
      %s281 = sadd.s32 %s280, 8
      %s282 = smul.addr %s278, 12
      %s283 = sadd.s32 %s281, %s282
      %s284 = smul.addr %s283, 4
      %s285 = scalar_lea.vmem %s0, %s284
      %p286 = scmp.lt.s32.totalorder %s20, 3
      %s287 = scalar_select %p286, %s20, 3
      %s288 = smul.addr %s287, 12
      %s289 = smul.addr %s288, 4
      %s290 = scalar_lea.vmem %s1, %s289
      %p291 = scmp.lt.s32.totalorder %s20, 3
      %s292 = scalar_select %p291, %s20, 3
      %p293 = scmp.lt.s32.totalorder %s21, 0
      %s294 = scalar_select %p293, %s21, 0
      %s295 = sadd.s32 %s294, %s292
      %s296 = smul.addr %s295, 8
      %s297 = scalar_lea.vmem %s2, %s296
      %p298 = scmp.lt.s32.totalorder %s20, 3
      %s299 = scalar_select %p298, %s20, 3
      %p300 = scmp.lt.s32.totalorder %s21, 0
      %s301 = scalar_select %p300, %s21, 0
      %s302 = sadd.s32 %s301, %s299
      %s303 = smul.addr %s302, 8
      %s304 = scalar_lea.vmem %s5, %s303
      %vm306 = vcmask 258048
      %307 = vst.msk [vmem:[#allocation2] sm:$0x1f] %vm306, 0.0
      %v308 = vld [vmem:[%s285] sm:$0x7]
      %v309 = vld [vmem:[%s290] sm:$0x7]
      %s310 = scalar_lea.vmem %s290, 16
      %v311 = vld [vmem:[%s310] sm:$0x7]
      %vm312 = vcmask 64512
      %v314 = vsel %vm312, %v308, 0
      %v317 = vsel %vm312, %v309, 0
      %319 = vmatprep.subr.bf16.mxu0 0
      %320 = vmatpush1.bf16.xpose.msra.mxu0 %v317
      %321 = vmatprep.subr.bf16.mxu0 0
      %322 = vmatpush1.bf16.xpose.msra.mxu0 0
      %323 = vmatprep.subr.bf16.mxu0 0
      %324 = vmatpush1.bf16.xpose.msra.mxu0 0
      %325 = vmatprep.subr.bf16.mxu0 0
      %326 = vmatpush1.bf16.xpose.msra.mxu0 0
      %327 = vmatprep.subr.bf16.mxu0 0
      %328 = vmatpush1.bf16.xpose.msra.mxu0 0
      %329 = vmatprep.subr.bf16.mxu0 0
      %330 = vmatpush1.bf16.xpose.msra.mxu0 0
      %331 = vmatprep.subr.bf16.mxu0 0
      %332 = vmatpush1.bf16.xpose.msra.mxu0 0
      %333 = vmatprep.subr.bf16.mxu0 0
      %334 = vmatpush1.bf16.xpose.msra.mxu0 0
      %335 = vmatprep.subr.bf16.mxu0 0
      %336 = vmatpush1.bf16.xpose.msra.mxu0 0
      %337 = vmatprep.subr.bf16.mxu0 0
      %338 = vmatpush1.bf16.xpose.msra.mxu0 0
      %339 = vmatprep.subr.bf16.mxu0 0
      %340 = vmatpush1.bf16.xpose.msra.mxu0 0
      %341 = vmatprep.subr.bf16.mxu0 0
      %342 = vmatpush1.bf16.xpose.msra.mxu0 0
      %343 = vmatprep.subr.bf16.mxu0 0
      %344 = vmatpush1.bf16.xpose.msra.mxu0 0
      %345 = vmatprep.subr.bf16.mxu0 0
      %346 = vmatpush1.bf16.xpose.msra.mxu0 0
      %347 = vmatprep.subr.bf16.mxu0 0
      %348 = vmatpush1.bf16.xpose.msra.mxu0 0
      %349 = vmatprep.subr.bf16.mxu0 0
      %350 = vmatpush1.bf16.xpose.msra.mxu0 0
      %351 = vmatprep.mubr.bf16.mxu0 0
      %352 = vmatmul.mubr.bf16.gmra.mrb[0].mxu0 %v314
      %v353 = vpop.f32.mrb[0].mxu0
      %v354 = vadd.f32 0.0, %v353
      %v355 = vpop.f32.mrb[0].mxu0
      %v356 = vpop.f32.mrb[0].mxu0
      %v357 = vpop.f32.mrb[0].mxu0
      %358 = vdwg.mxu0
      %vm359 = vcmask 36864
      %v360 = vsel %vm359, %v354, -inf
      %361 = vmax.xlane.f32.xlu0 %v360
      %v362 = vpop.xlane.xlu0 %361
      %v363 = vsub.f32 %v354, %v362
      %v364 = vmul.f32 %v363, 1.442695
      %v365 = vpow.pop %v364
      %v366 = vsel %vm359, %v365, 0.0
      %367 = vadd.xlane.f32.xlu0 %v366
      %v368 = vpop.xlane.xlu0 %367
      %v369 = vrcp.pop %v368
      %v370 = vmul.f32 %v365, %v369
      %v371 = vpack.c.bf16 %v370, %v370
      %vm372 = vcmask 39936
      %v374 = vsel %vm372, %v371, 0
      %vm376 = vcmask 1041408
      %vm377 = vcmask 1042432
      %v378 = vsel %vm376, 4294967295, 65535
      %v379 = vsel %vm377, %v378, 0
      %v381 = vand.u32 %v311, %v379
      %383 = vmatprep.subr.bf16.mxu0 0
      %384 = vmatpush1.bf16.msra.mxu0 %v381
      %385 = vmatprep.subr.bf16.mxu0 0
      %386 = vmatpush1.bf16.msra.mxu0 0
      %387 = vmatprep.subr.bf16.mxu0 0
      %388 = vmatpush1.bf16.msra.mxu0 0
      %389 = vmatprep.subr.bf16.mxu0 0
      %390 = vmatpush1.bf16.msra.mxu0 0
      %391 = vmatprep.subr.bf16.mxu0 0
      %392 = vmatpush1.bf16.msra.mxu0 0
      %393 = vmatprep.subr.bf16.mxu0 0
      %394 = vmatpush1.bf16.msra.mxu0 0
      %395 = vmatprep.subr.bf16.mxu0 0
      %396 = vmatpush1.bf16.msra.mxu0 0
      %397 = vmatprep.subr.bf16.mxu0 0
      %398 = vmatpush1.bf16.msra.mxu0 0
      %399 = vmatprep.subr.bf16.mxu0 0
      %400 = vmatpush1.bf16.msra.mxu0 0
      %401 = vmatprep.subr.bf16.mxu0 0
      %402 = vmatpush1.bf16.msra.mxu0 0
      %403 = vmatprep.subr.bf16.mxu0 0
      %404 = vmatpush1.bf16.msra.mxu0 0
      %405 = vmatprep.subr.bf16.mxu0 0
      %406 = vmatpush1.bf16.msra.mxu0 0
      %407 = vmatprep.subr.bf16.mxu0 0
      %408 = vmatpush1.bf16.msra.mxu0 0
      %409 = vmatprep.subr.bf16.mxu0 0
      %410 = vmatpush1.bf16.msra.mxu0 0
      %411 = vmatprep.subr.bf16.mxu0 0
      %412 = vmatpush1.bf16.msra.mxu0 0
      %413 = vmatprep.subr.bf16.mxu0 0
      %414 = vmatpush1.bf16.msra.mxu0 0
      %415 = vmatprep.mubr.bf16.mxu0 0
      %416 = vmatmul.mubr.bf16.gmra.mrb[0].mxu0 %v374
      %v417 = vpop.f32.mrb[0].mxu0
      %v418 = vadd.f32 0.0, %v417
      %v419 = vpop.f32.mrb[0].mxu0
      %v420 = vpop.f32.mrb[0].mxu0
      %v421 = vpop.f32.mrb[0].mxu0
      %422 = vdwg.mxu0
      %v423 = vld [vmem:[#allocation2] sm:$0x1f]
      %v424 = vpack.c.bf16 %v418, %v418
      %v425 = vld [vmem:[%s3] sm:$0xf]
      %v427 = vsel %vm312, %v424, 0
      %vm429 = vcmask 1043456
      %v431 = vsel %vm429, %v425, 0
      %433 = vmatprep.subr.bf16.mxu0 0
      %434 = vmatpush1.bf16.msra.mxu0 %v431
      %435 = vmatprep.subr.bf16.mxu0 0
      %436 = vmatpush1.bf16.msra.mxu0 0
      %437 = vmatprep.subr.bf16.mxu0 0
      %438 = vmatpush1.bf16.msra.mxu0 0
      %439 = vmatprep.subr.bf16.mxu0 0
      %440 = vmatpush1.bf16.msra.mxu0 0
      %441 = vmatprep.subr.bf16.mxu0 0
      %442 = vmatpush1.bf16.msra.mxu0 0
      %443 = vmatprep.subr.bf16.mxu0 0
      %444 = vmatpush1.bf16.msra.mxu0 0
      %445 = vmatprep.subr.bf16.mxu0 0
      %446 = vmatpush1.bf16.msra.mxu0 0
      %447 = vmatprep.subr.bf16.mxu0 0
      %448 = vmatpush1.bf16.msra.mxu0 0
      %449 = vmatprep.subr.bf16.mxu0 0
      %450 = vmatpush1.bf16.msra.mxu0 0
      %451 = vmatprep.subr.bf16.mxu0 0
      %452 = vmatpush1.bf16.msra.mxu0 0
      %453 = vmatprep.subr.bf16.mxu0 0
      %454 = vmatpush1.bf16.msra.mxu0 0
      %455 = vmatprep.subr.bf16.mxu0 0
      %456 = vmatpush1.bf16.msra.mxu0 0
      %457 = vmatprep.subr.bf16.mxu0 0
      %458 = vmatpush1.bf16.msra.mxu0 0
      %459 = vmatprep.subr.bf16.mxu0 0
      %460 = vmatpush1.bf16.msra.mxu0 0
      %461 = vmatprep.subr.bf16.mxu0 0
      %462 = vmatpush1.bf16.msra.mxu0 0
      %463 = vmatprep.subr.bf16.mxu0 0
      %464 = vmatpush1.bf16.msra.mxu0 0
      %465 = vmatprep.mubr.bf16.mxu0 0
      %466 = vmatmul.mubr.bf16.gmra.mrb[0].mxu0 %v427
      %v467 = vpop.f32.mrb[0].mxu0
      %v468 = vadd.f32 0.0, %v467
      %v469 = vpop.f32.mrb[0].mxu0
      %v470 = vpop.f32.mrb[0].mxu0
      %v471 = vpop.f32.mrb[0].mxu0
      %472 = vdwg.mxu0
      %v473 = vadd.f32 %v423, %v468
      %474 = vst.msk [vmem:[#allocation2] sm:$0x1f] %vm306, %v473
      %s475 = scalar_lea.vmem %s285, 4
      %v476 = vld [vmem:[%s475] sm:$0x7]
      %s477 = scalar_lea.vmem %s290, 4
      %v478 = vld [vmem:[%s477] sm:$0x7]
      %s479 = scalar_lea.vmem %s290, 20
      %v480 = vld [vmem:[%s479] sm:$0x7]
      %v482 = vsel %vm312, %v476, 0
      %v485 = vsel %vm312, %v478, 0
      %487 = vmatprep.subr.bf16.mxu0 0
      %488 = vmatpush1.bf16.xpose.msra.mxu0 %v485
      %489 = vmatprep.subr.bf16.mxu0 0
      %490 = vmatpush1.bf16.xpose.msra.mxu0 0
      %491 = vmatprep.subr.bf16.mxu0 0
      %492 = vmatpush1.bf16.xpose.msra.mxu0 0
      %493 = vmatprep.subr.bf16.mxu0 0
      %494 = vmatpush1.bf16.xpose.msra.mxu0 0
      %495 = vmatprep.subr.bf16.mxu0 0
      %496 = vmatpush1.bf16.xpose.msra.mxu0 0
      %497 = vmatprep.subr.bf16.mxu0 0
      %498 = vmatpush1.bf16.xpose.msra.mxu0 0
      %499 = vmatprep.subr.bf16.mxu0 0
      %500 = vmatpush1.bf16.xpose.msra.mxu0 0
      %501 = vmatprep.subr.bf16.mxu0 0
      %502 = vmatpush1.bf16.xpose.msra.mxu0 0
      %503 = vmatprep.subr.bf16.mxu0 0
      %504 = vmatpush1.bf16.xpose.msra.mxu0 0
      %505 = vmatprep.subr.bf16.mxu0 0
      %506 = vmatpush1.bf16.xpose.msra.mxu0 0
      %507 = vmatprep.subr.bf16.mxu0 0
      %508 = vmatpush1.bf16.xpose.msra.mxu0 0
      %509 = vmatprep.subr.bf16.mxu0 0
      %510 = vmatpush1.bf16.xpose.msra.mxu0 0
      %511 = vmatprep.subr.bf16.mxu0 0
      %512 = vmatpush1.bf16.xpose.msra.mxu0 0
      %513 = vmatprep.subr.bf16.mxu0 0
      %514 = vmatpush1.bf16.xpose.msra.mxu0 0
      %515 = vmatprep.subr.bf16.mxu0 0
      %516 = vmatpush1.bf16.xpose.msra.mxu0 0
      %517 = vmatprep.subr.bf16.mxu0 0
      %518 = vmatpush1.bf16.xpose.msra.mxu0 0
      %519 = vmatprep.mubr.bf16.mxu0 0
      %520 = vmatmul.mubr.bf16.gmra.mrb[0].mxu0 %v482
      %v521 = vpop.f32.mrb[0].mxu0
      %v522 = vadd.f32 0.0, %v521
      %v523 = vpop.f32.mrb[0].mxu0
      %v524 = vpop.f32.mrb[0].mxu0
      %v525 = vpop.f32.mrb[0].mxu0
      %526 = vdwg.mxu0
      %v527 = vsel %vm359, %v522, -inf
      %528 = vmax.xlane.f32.xlu0 %v527
      %v529 = vpop.xlane.xlu0 %528
      %v530 = vsub.f32 %v522, %v529
      %v531 = vmul.f32 %v530, 1.442695
      %v532 = vpow.pop %v531
      %v533 = vsel %vm359, %v532, 0.0
      %534 = vadd.xlane.f32.xlu0 %v533
      %v535 = vpop.xlane.xlu0 %534
      %v536 = vrcp.pop %v535
      %v537 = vmul.f32 %v532, %v536
      %v538 = vpack.c.bf16 %v537, %v537
      %v540 = vsel %vm372, %v538, 0
      %v543 = vand.u32 %v480, %v379
      %545 = vmatprep.subr.bf16.mxu0 0
      %546 = vmatpush1.bf16.msra.mxu0 %v543
      %547 = vmatprep.subr.bf16.mxu0 0
      %548 = vmatpush1.bf16.msra.mxu0 0
      %549 = vmatprep.subr.bf16.mxu0 0
      %550 = vmatpush1.bf16.msra.mxu0 0
      %551 = vmatprep.subr.bf16.mxu0 0
      %552 = vmatpush1.bf16.msra.mxu0 0
      %553 = vmatprep.subr.bf16.mxu0 0
      %554 = vmatpush1.bf16.msra.mxu0 0
      %555 = vmatprep.subr.bf16.mxu0 0
      %556 = vmatpush1.bf16.msra.mxu0 0
      %557 = vmatprep.subr.bf16.mxu0 0
      %558 = vmatpush1.bf16.msra.mxu0 0
      %559 = vmatprep.subr.bf16.mxu0 0
      %560 = vmatpush1.bf16.msra.mxu0 0
      %561 = vmatprep.subr.bf16.mxu0 0
      %562 = vmatpush1.bf16.msra.mxu0 0
      %563 = vmatprep.subr.bf16.mxu0 0
      %564 = vmatpush1.bf16.msra.mxu0 0
      %565 = vmatprep.subr.bf16.mxu0 0
      %566 = vmatpush1.bf16.msra.mxu0 0
      %567 = vmatprep.subr.bf16.mxu0 0
      %568 = vmatpush1.bf16.msra.mxu0 0
      %569 = vmatprep.subr.bf16.mxu0 0
      %570 = vmatpush1.bf16.msra.mxu0 0
      %571 = vmatprep.subr.bf16.mxu0 0
      %572 = vmatpush1.bf16.msra.mxu0 0
      %573 = vmatprep.subr.bf16.mxu0 0
      %574 = vmatpush1.bf16.msra.mxu0 0
      %575 = vmatprep.subr.bf16.mxu0 0
      %576 = vmatpush1.bf16.msra.mxu0 0
      %577 = vmatprep.mubr.bf16.mxu0 0
      %578 = vmatmul.mubr.bf16.gmra.mrb[0].mxu0 %v540
      %v579 = vpop.f32.mrb[0].mxu0
      %v580 = vadd.f32 0.0, %v579
      %v581 = vpop.f32.mrb[0].mxu0
      %v582 = vpop.f32.mrb[0].mxu0
      %v583 = vpop.f32.mrb[0].mxu0
      %584 = vdwg.mxu0
      %v585 = vld [vmem:[#allocation2] sm:$0x1f]
      %v586 = vpack.c.bf16 %v580, %v580
      %s587 = scalar_lea.vmem %s3, 4
      %v588 = vld [vmem:[%s587] sm:$0xf]
      %v590 = vsel %vm312, %v586, 0
      %v593 = vsel %vm429, %v588, 0
      %595 = vmatprep.subr.bf16.mxu0 0
      %596 = vmatpush1.bf16.msra.mxu0 %v593
      %597 = vmatprep.subr.bf16.mxu0 0
      %598 = vmatpush1.bf16.msra.mxu0 0
      %599 = vmatprep.subr.bf16.mxu0 0
      %600 = vmatpush1.bf16.msra.mxu0 0
      %601 = vmatprep.subr.bf16.mxu0 0
      %602 = vmatpush1.bf16.msra.mxu0 0
      %603 = vmatprep.subr.bf16.mxu0 0
      %604 = vmatpush1.bf16.msra.mxu0 0
      %605 = vmatprep.subr.bf16.mxu0 0
      %606 = vmatpush1.bf16.msra.mxu0 0
      %607 = vmatprep.subr.bf16.mxu0 0
      %608 = vmatpush1.bf16.msra.mxu0 0
      %609 = vmatprep.subr.bf16.mxu0 0
      %610 = vmatpush1.bf16.msra.mxu0 0
      %611 = vmatprep.subr.bf16.mxu0 0
      %612 = vmatpush1.bf16.msra.mxu0 0
      %613 = vmatprep.subr.bf16.mxu0 0
      %614 = vmatpush1.bf16.msra.mxu0 0
      %615 = vmatprep.subr.bf16.mxu0 0
      %616 = vmatpush1.bf16.msra.mxu0 0
      %617 = vmatprep.subr.bf16.mxu0 0
      %618 = vmatpush1.bf16.msra.mxu0 0
      %619 = vmatprep.subr.bf16.mxu0 0
      %620 = vmatpush1.bf16.msra.mxu0 0
      %621 = vmatprep.subr.bf16.mxu0 0
      %622 = vmatpush1.bf16.msra.mxu0 0
      %623 = vmatprep.subr.bf16.mxu0 0
      %624 = vmatpush1.bf16.msra.mxu0 0
      %625 = vmatprep.subr.bf16.mxu0 0
      %626 = vmatpush1.bf16.msra.mxu0 0
      %627 = vmatprep.mubr.bf16.mxu0 0
      %628 = vmatmul.mubr.bf16.gmra.mrb[0].mxu0 %v590
      %v629 = vpop.f32.mrb[0].mxu0
      %v630 = vadd.f32 0.0, %v629
      %v631 = vpop.f32.mrb[0].mxu0
      %v632 = vpop.f32.mrb[0].mxu0
      %v633 = vpop.f32.mrb[0].mxu0
      %634 = vdwg.mxu0
      %v635 = vadd.f32 %v585, %v630
      %636 = vst.msk [vmem:[#allocation2] sm:$0x1f] %vm306, %v635
      %s637 = scalar_lea.vmem %s285, 8
      %v638 = vld [vmem:[%s637] sm:$0x7]
      %s639 = scalar_lea.vmem %s290, 8
      %v640 = vld [vmem:[%s639] sm:$0x7]
      %s641 = scalar_lea.vmem %s290, 24
      %v642 = vld [vmem:[%s641] sm:$0x7]
      %v644 = vsel %vm312, %v638, 0
      %v647 = vsel %vm312, %v640, 0
      %649 = vmatprep.subr.bf16.mxu0 0
      %650 = vmatpush1.bf16.xpose.msra.mxu0 %v647
      %651 = vmatprep.subr.bf16.mxu0 0
      %652 = vmatpush1.bf16.xpose.msra.mxu0 0
      %653 = vmatprep.subr.bf16.mxu0 0
      %654 = vmatpush1.bf16.xpose.msra.mxu0 0
      %655 = vmatprep.subr.bf16.mxu0 0
      %656 = vmatpush1.bf16.xpose.msra.mxu0 0
      %657 = vmatprep.subr.bf16.mxu0 0
      %658 = vmatpush1.bf16.xpose.msra.mxu0 0
      %659 = vmatprep.subr.bf16.mxu0 0
      %660 = vmatpush1.bf16.xpose.msra.mxu0 0
      %661 = vmatprep.subr.bf16.mxu0 0
      %662 = vmatpush1.bf16.xpose.msra.mxu0 0
      %663 = vmatprep.subr.bf16.mxu0 0
      %664 = vmatpush1.bf16.xpose.msra.mxu0 0
      %665 = vmatprep.subr.bf16.mxu0 0
      %666 = vmatpush1.bf16.xpose.msra.mxu0 0
      %667 = vmatprep.subr.bf16.mxu0 0
      %668 = vmatpush1.bf16.xpose.msra.mxu0 0
      %669 = vmatprep.subr.bf16.mxu0 0
      %670 = vmatpush1.bf16.xpose.msra.mxu0 0
      %671 = vmatprep.subr.bf16.mxu0 0
      %672 = vmatpush1.bf16.xpose.msra.mxu0 0
      %673 = vmatprep.subr.bf16.mxu0 0
      %674 = vmatpush1.bf16.xpose.msra.mxu0 0
      %675 = vmatprep.subr.bf16.mxu0 0
      %676 = vmatpush1.bf16.xpose.msra.mxu0 0
      %677 = vmatprep.subr.bf16.mxu0 0
      %678 = vmatpush1.bf16.xpose.msra.mxu0 0
      %679 = vmatprep.subr.bf16.mxu0 0
      %680 = vmatpush1.bf16.xpose.msra.mxu0 0
      %681 = vmatprep.mubr.bf16.mxu0 0
      %682 = vmatmul.mubr.bf16.gmra.mrb[0].mxu0 %v644
      %v683 = vpop.f32.mrb[0].mxu0
      %v684 = vadd.f32 0.0, %v683
      %v685 = vpop.f32.mrb[0].mxu0
      %v686 = vpop.f32.mrb[0].mxu0
      %v687 = vpop.f32.mrb[0].mxu0
      %688 = vdwg.mxu0
      %v689 = vsel %vm359, %v684, -inf
      %690 = vmax.xlane.f32.xlu0 %v689
      %v691 = vpop.xlane.xlu0 %690
      %v692 = vsub.f32 %v684, %v691
      %v693 = vmul.f32 %v692, 1.442695
      %v694 = vpow.pop %v693
      %v695 = vsel %vm359, %v694, 0.0
      %696 = vadd.xlane.f32.xlu0 %v695
      %v697 = vpop.xlane.xlu0 %696
      %v698 = vrcp.pop %v697
      %v699 = vmul.f32 %v694, %v698
      %v700 = vpack.c.bf16 %v699, %v699
      %v702 = vsel %vm372, %v700, 0
      %v705 = vand.u32 %v642, %v379
      %707 = vmatprep.subr.bf16.mxu0 0
      %708 = vmatpush1.bf16.msra.mxu0 %v705
      %709 = vmatprep.subr.bf16.mxu0 0
      %710 = vmatpush1.bf16.msra.mxu0 0
      %711 = vmatprep.subr.bf16.mxu0 0
      %712 = vmatpush1.bf16.msra.mxu0 0
      %713 = vmatprep.subr.bf16.mxu0 0
      %714 = vmatpush1.bf16.msra.mxu0 0
      %715 = vmatprep.subr.bf16.mxu0 0
      %716 = vmatpush1.bf16.msra.mxu0 0
      %717 = vmatprep.subr.bf16.mxu0 0
      %718 = vmatpush1.bf16.msra.mxu0 0
      %719 = vmatprep.subr.bf16.mxu0 0
      %720 = vmatpush1.bf16.msra.mxu0 0
      %721 = vmatprep.subr.bf16.mxu0 0
      %722 = vmatpush1.bf16.msra.mxu0 0
      %723 = vmatprep.subr.bf16.mxu0 0
      %724 = vmatpush1.bf16.msra.mxu0 0
      %725 = vmatprep.subr.bf16.mxu0 0
      %726 = vmatpush1.bf16.msra.mxu0 0
      %727 = vmatprep.subr.bf16.mxu0 0
      %728 = vmatpush1.bf16.msra.mxu0 0
      %729 = vmatprep.subr.bf16.mxu0 0
      %730 = vmatpush1.bf16.msra.mxu0 0
      %731 = vmatprep.subr.bf16.mxu0 0
      %732 = vmatpush1.bf16.msra.mxu0 0
      %733 = vmatprep.subr.bf16.mxu0 0
      %734 = vmatpush1.bf16.msra.mxu0 0
      %735 = vmatprep.subr.bf16.mxu0 0
      %736 = vmatpush1.bf16.msra.mxu0 0
      %737 = vmatprep.subr.bf16.mxu0 0
      %738 = vmatpush1.bf16.msra.mxu0 0
      %739 = vmatprep.mubr.bf16.mxu0 0
      %740 = vmatmul.mubr.bf16.gmra.mrb[0].mxu0 %v702
      %v741 = vpop.f32.mrb[0].mxu0
      %v742 = vadd.f32 0.0, %v741
      %v743 = vpop.f32.mrb[0].mxu0
      %v744 = vpop.f32.mrb[0].mxu0
      %v745 = vpop.f32.mrb[0].mxu0
      %746 = vdwg.mxu0
      %v747 = vld [vmem:[#allocation2] sm:$0x1f]
      %v748 = vpack.c.bf16 %v742, %v742
      %s749 = scalar_lea.vmem %s3, 8
      %v750 = vld [vmem:[%s749] sm:$0xf]
      %v752 = vsel %vm312, %v748, 0
      %v755 = vsel %vm429, %v750, 0
      %757 = vmatprep.subr.bf16.mxu0 0
      %758 = vmatpush1.bf16.msra.mxu0 %v755
      %759 = vmatprep.subr.bf16.mxu0 0
      %760 = vmatpush1.bf16.msra.mxu0 0
      %761 = vmatprep.subr.bf16.mxu0 0
      %762 = vmatpush1.bf16.msra.mxu0 0
      %763 = vmatprep.subr.bf16.mxu0 0
      %764 = vmatpush1.bf16.msra.mxu0 0
      %765 = vmatprep.subr.bf16.mxu0 0
      %766 = vmatpush1.bf16.msra.mxu0 0
      %767 = vmatprep.subr.bf16.mxu0 0
      %768 = vmatpush1.bf16.msra.mxu0 0
      %769 = vmatprep.subr.bf16.mxu0 0
      %770 = vmatpush1.bf16.msra.mxu0 0
      %771 = vmatprep.subr.bf16.mxu0 0
      %772 = vmatpush1.bf16.msra.mxu0 0
      %773 = vmatprep.subr.bf16.mxu0 0
      %774 = vmatpush1.bf16.msra.mxu0 0
      %775 = vmatprep.subr.bf16.mxu0 0
      %776 = vmatpush1.bf16.msra.mxu0 0
      %777 = vmatprep.subr.bf16.mxu0 0
      %778 = vmatpush1.bf16.msra.mxu0 0
      %779 = vmatprep.subr.bf16.mxu0 0
      %780 = vmatpush1.bf16.msra.mxu0 0
      %781 = vmatprep.subr.bf16.mxu0 0
      %782 = vmatpush1.bf16.msra.mxu0 0
      %783 = vmatprep.subr.bf16.mxu0 0
      %784 = vmatpush1.bf16.msra.mxu0 0
      %785 = vmatprep.subr.bf16.mxu0 0
      %786 = vmatpush1.bf16.msra.mxu0 0
      %787 = vmatprep.subr.bf16.mxu0 0
      %788 = vmatpush1.bf16.msra.mxu0 0
      %789 = vmatprep.mubr.bf16.mxu0 0
      %790 = vmatmul.mubr.bf16.gmra.mrb[0].mxu0 %v752
      %v791 = vpop.f32.mrb[0].mxu0
      %v792 = vadd.f32 0.0, %v791
      %v793 = vpop.f32.mrb[0].mxu0
      %v794 = vpop.f32.mrb[0].mxu0
      %v795 = vpop.f32.mrb[0].mxu0
      %796 = vdwg.mxu0
      %v797 = vadd.f32 %v747, %v792
      %798 = vst.msk [vmem:[#allocation2] sm:$0x1f] %vm306, %v797
      %s799 = scalar_lea.vmem %s285, 12
      %v800 = vld [vmem:[%s799] sm:$0x7]
      %s801 = scalar_lea.vmem %s290, 12
      %v802 = vld [vmem:[%s801] sm:$0x7]
      %s803 = scalar_lea.vmem %s290, 28
      %v804 = vld [vmem:[%s803] sm:$0x7]
      %v806 = vsel %vm312, %v800, 0
      %v809 = vsel %vm312, %v802, 0
      %811 = vmatprep.subr.bf16.mxu0 0
      %812 = vmatpush1.bf16.xpose.msra.mxu0 %v809
      %813 = vmatprep.subr.bf16.mxu0 0
      %814 = vmatpush1.bf16.xpose.msra.mxu0 0
      %815 = vmatprep.subr.bf16.mxu0 0
      %816 = vmatpush1.bf16.xpose.msra.mxu0 0
      %817 = vmatprep.subr.bf16.mxu0 0
      %818 = vmatpush1.bf16.xpose.msra.mxu0 0
      %819 = vmatprep.subr.bf16.mxu0 0
      %820 = vmatpush1.bf16.xpose.msra.mxu0 0
      %821 = vmatprep.subr.bf16.mxu0 0
      %822 = vmatpush1.bf16.xpose.msra.mxu0 0
      %823 = vmatprep.subr.bf16.mxu0 0
      %824 = vmatpush1.bf16.xpose.msra.mxu0 0
      %825 = vmatprep.subr.bf16.mxu0 0
      %826 = vmatpush1.bf16.xpose.msra.mxu0 0
      %827 = vmatprep.subr.bf16.mxu0 0
      %828 = vmatpush1.bf16.xpose.msra.mxu0 0
      %829 = vmatprep.subr.bf16.mxu0 0
      %830 = vmatpush1.bf16.xpose.msra.mxu0 0
      %831 = vmatprep.subr.bf16.mxu0 0
      %832 = vmatpush1.bf16.xpose.msra.mxu0 0
      %833 = vmatprep.subr.bf16.mxu0 0
      %834 = vmatpush1.bf16.xpose.msra.mxu0 0
      %835 = vmatprep.subr.bf16.mxu0 0
      %836 = vmatpush1.bf16.xpose.msra.mxu0 0
      %837 = vmatprep.subr.bf16.mxu0 0
      %838 = vmatpush1.bf16.xpose.msra.mxu0 0
      %839 = vmatprep.subr.bf16.mxu0 0
      %840 = vmatpush1.bf16.xpose.msra.mxu0 0
      %841 = vmatprep.subr.bf16.mxu0 0
      %842 = vmatpush1.bf16.xpose.msra.mxu0 0
      %843 = vmatprep.mubr.bf16.mxu0 0
      %844 = vmatmul.mubr.bf16.gmra.mrb[0].mxu0 %v806
      %v845 = vpop.f32.mrb[0].mxu0
      %v846 = vadd.f32 0.0, %v845
      %v847 = vpop.f32.mrb[0].mxu0
      %v848 = vpop.f32.mrb[0].mxu0
      %v849 = vpop.f32.mrb[0].mxu0
      %850 = vdwg.mxu0
      %v851 = vsel %vm359, %v846, -inf
      %852 = vmax.xlane.f32.xlu0 %v851
      %v853 = vpop.xlane.xlu0 %852
      %v854 = vsub.f32 %v846, %v853
      %v855 = vmul.f32 %v854, 1.442695
      %v856 = vpow.pop %v855
      %v857 = vsel %vm359, %v856, 0.0
      %858 = vadd.xlane.f32.xlu0 %v857
      %v859 = vpop.xlane.xlu0 %858
      %v860 = vrcp.pop %v859
      %v861 = vmul.f32 %v856, %v860
      %v862 = vpack.c.bf16 %v861, %v861
      %v864 = vsel %vm372, %v862, 0
      %v867 = vand.u32 %v804, %v379
      %869 = vmatprep.subr.bf16.mxu0 0
      %870 = vmatpush1.bf16.msra.mxu0 %v867
      %871 = vmatprep.subr.bf16.mxu0 0
      %872 = vmatpush1.bf16.msra.mxu0 0
      %873 = vmatprep.subr.bf16.mxu0 0
      %874 = vmatpush1.bf16.msra.mxu0 0
      %875 = vmatprep.subr.bf16.mxu0 0
      %876 = vmatpush1.bf16.msra.mxu0 0
      %877 = vmatprep.subr.bf16.mxu0 0
      %878 = vmatpush1.bf16.msra.mxu0 0
      %879 = vmatprep.subr.bf16.mxu0 0
      %880 = vmatpush1.bf16.msra.mxu0 0
      %881 = vmatprep.subr.bf16.mxu0 0
      %882 = vmatpush1.bf16.msra.mxu0 0
      %883 = vmatprep.subr.bf16.mxu0 0
      %884 = vmatpush1.bf16.msra.mxu0 0
      %885 = vmatprep.subr.bf16.mxu0 0
      %886 = vmatpush1.bf16.msra.mxu0 0
      %887 = vmatprep.subr.bf16.mxu0 0
      %888 = vmatpush1.bf16.msra.mxu0 0
      %889 = vmatprep.subr.bf16.mxu0 0
      %890 = vmatpush1.bf16.msra.mxu0 0
      %891 = vmatprep.subr.bf16.mxu0 0
      %892 = vmatpush1.bf16.msra.mxu0 0
      %893 = vmatprep.subr.bf16.mxu0 0
      %894 = vmatpush1.bf16.msra.mxu0 0
      %895 = vmatprep.subr.bf16.mxu0 0
      %896 = vmatpush1.bf16.msra.mxu0 0
      %897 = vmatprep.subr.bf16.mxu0 0
      %898 = vmatpush1.bf16.msra.mxu0 0
      %899 = vmatprep.subr.bf16.mxu0 0
      %900 = vmatpush1.bf16.msra.mxu0 0
      %901 = vmatprep.mubr.bf16.mxu0 0
      %902 = vmatmul.mubr.bf16.gmra.mrb[0].mxu0 %v864
      %v903 = vpop.f32.mrb[0].mxu0
      %v904 = vadd.f32 0.0, %v903
      %v905 = vpop.f32.mrb[0].mxu0
      %v906 = vpop.f32.mrb[0].mxu0
      %v907 = vpop.f32.mrb[0].mxu0
      %908 = vdwg.mxu0
      %v909 = vld [vmem:[#allocation2] sm:$0x1f]
      %v910 = vpack.c.bf16 %v904, %v904
      %s911 = scalar_lea.vmem %s3, 12
      %v912 = vld [vmem:[%s911] sm:$0xf]
      %v914 = vsel %vm312, %v910, 0
      %v917 = vsel %vm429, %v912, 0
      %919 = vmatprep.subr.bf16.mxu0 0
      %920 = vmatpush1.bf16.msra.mxu0 %v917
      %921 = vmatprep.subr.bf16.mxu0 0
      %922 = vmatpush1.bf16.msra.mxu0 0
      %923 = vmatprep.subr.bf16.mxu0 0
      %924 = vmatpush1.bf16.msra.mxu0 0
      %925 = vmatprep.subr.bf16.mxu0 0
      %926 = vmatpush1.bf16.msra.mxu0 0
      %927 = vmatprep.subr.bf16.mxu0 0
      %928 = vmatpush1.bf16.msra.mxu0 0
      %929 = vmatprep.subr.bf16.mxu0 0
      %930 = vmatpush1.bf16.msra.mxu0 0
      %931 = vmatprep.subr.bf16.mxu0 0
      %932 = vmatpush1.bf16.msra.mxu0 0
      %933 = vmatprep.subr.bf16.mxu0 0
      %934 = vmatpush1.bf16.msra.mxu0 0
      %935 = vmatprep.subr.bf16.mxu0 0
      %936 = vmatpush1.bf16.msra.mxu0 0
      %937 = vmatprep.subr.bf16.mxu0 0
      %938 = vmatpush1.bf16.msra.mxu0 0
      %939 = vmatprep.subr.bf16.mxu0 0
      %940 = vmatpush1.bf16.msra.mxu0 0
      %941 = vmatprep.subr.bf16.mxu0 0
      %942 = vmatpush1.bf16.msra.mxu0 0
      %943 = vmatprep.subr.bf16.mxu0 0
      %944 = vmatpush1.bf16.msra.mxu0 0
      %945 = vmatprep.subr.bf16.mxu0 0
      %946 = vmatpush1.bf16.msra.mxu0 0
      %947 = vmatprep.subr.bf16.mxu0 0
      %948 = vmatpush1.bf16.msra.mxu0 0
      %949 = vmatprep.subr.bf16.mxu0 0
      %950 = vmatpush1.bf16.msra.mxu0 0
      %951 = vmatprep.mubr.bf16.mxu0 0
      %952 = vmatmul.mubr.bf16.gmra.mrb[0].mxu0 %v914
      %v953 = vpop.f32.mrb[0].mxu0
      %v954 = vadd.f32 0.0, %v953
      %v955 = vpop.f32.mrb[0].mxu0
      %v956 = vpop.f32.mrb[0].mxu0
      %v957 = vpop.f32.mrb[0].mxu0
      %958 = vdwg.mxu0
      %v959 = vadd.f32 %v909, %v954
      %960 = vst.msk [vmem:[#allocation2] sm:$0x1f] %vm306, %v959
      %v961 = vld [vmem:[%s297] sm:$0x1f]
      %v962 = vld [vmem:[#allocation2] sm:$0x1f]
      %v963 = vadd.f32 %v961, %v962
      %v964 = vld [vmem:[%s4] sm:$0x1]
      %v966 = vlaneseq
      %v967 = vshrl.u32 %v966, 7
      %v968 = vsub.s32 0, %v967
      %v969 = vrot.slane %v964, %v968
      %v971 = vadd.f32 %v963, %v969
      %972 = vst.msk [vmem:[%s304] sm:$0x1f] %vm306, %v971
      %p973 = scmp.lt.s32.totalorder %s20, 3
      %s974 = scalar_select %p973, %s20, 3
      %p975 = scmp.lt.s32.totalorder %s21, 0
      %s976 = scalar_select %p975, %s21, 0
      %s977 = sadd.s32 %s976, %s974
      %s978 = smul.addr %s977, 8
      %s979 = scalar_lea.vmem %s5, %s978
      // Predicated region
      $region41: #{model_forward.10} parent=39 // pred_check
        %p980 = pneg %p172
      $region42: #{model_forward.10} parent=39 // pred_check_branch
        %982 = sbr.rel (%p980) target = $region44
      $region43: #{model_forward.10} parent=39 // pred_region
        _
      $region44: #{model_forward.10} parent=39 // pred_fallthru
        _
    $region40: #{model_forward.10} parent=5 // pred_fallthru
      _
    %p983 = scmp.le.s32.totalorder 2, %s11
    // Predicated region
    $region45: #{model_forward.10} parent=5 // pred_check
      %p984 = pneg %p983
    $region46: #{model_forward.10} parent=5 // pred_check_branch
      %986 = sbr.rel (%p984) target = $region48
    $region47: #{model_forward.10} parent=5 // pred_region
      %s987 = ssub.s32 %s11, 2
      // Predicated region
      $region49: #{model_forward.10} parent=47 // pred_check
        %p988 = pneg %p178
      $region50: #{model_forward.10} parent=47 // pred_check_branch
        %990 = sbr.rel (%p988) target = $region52
      $region51: #{model_forward.10} parent=47 // pred_region
        %p991 = scmp.lt.s32.totalorder %s22, 3
        %s992 = scalar_select %p991, %s22, 3
        %p993 = scmp.lt.s32.totalorder %s23, 0
        %s994 = scalar_select %p993, %s23, 0
        %s995 = sadd.s32 %s994, %s992
        %s996 = smul.addr %s995, 8
        %s997 = scalar_lea.vmem %s5, %s996
      $region52: #{model_forward.10} parent=47 // pred_fallthru
        _
    $region48: #{model_forward.10} parent=5 // pred_fallthru
      _
  $region6: #{model_forward.10} parent=0 // loop_footer
    %s15 = sadd.s32 1, %s11
  $region7: #{model_forward.10} parent=0 // loop_footer_branch
    %10 = sbr.rel target = $region3
  $region8: #{model_forward.10} parent=0 // loop_exit
    _

// kernel: model_forward.12
$region0: #{model_forward.12}
  #allocation0 [shape = 'u32[]', space=smem, size = 0x4, offset = 0x4, fixed_abs, tag = 'smem constant byte address 0x4 - core index']
  #allocation1 [shape = 'u32[144,128]{1,0:T(1,128)}', space=vmem, size = 0x12000, scoped, tag = 'internal scratch']
  %s0 = inlined_call_operand.vmem [shape: f32[20,32], index: 0, kind: input, shape index: {}]
  %s1 = inlined_call_operand.vmem [shape: f32[1,32], index: 1, kind: input, shape index: {}]
  %s2 = inlined_call_operand.vmem [shape: f32[1,32], index: 2, kind: input, shape index: {}]
  %s3 = inlined_call_operand.vmem [shape: f32[20,32], index: 3, kind: output, shape index: {}]
  %s4 = sld [smem:[#allocation0]]
  $region22: #{model_forward.12} parent=0
    _
  %s6 = ssub.s32 1, %s4
  %s7 = scalar_select 0, %s6, %s4
  // Predicated region
  $region2: #{model_forward.12} parent=0 // pred_check
    _
  $region3: #{model_forward.12} parent=0 // pred_check_branch
    %9 = sbr.rel (0) target = $region5
  $region4: #{model_forward.12} parent=0 // pred_region
    _
  $region5: #{model_forward.12} parent=0 // pred_fallthru
    _
  // Predicated region
  $region6: #{model_forward.12} parent=0 // pred_check
    _
  $region7: #{model_forward.12} parent=0 // pred_check_branch
    %11 = sbr.rel (0) target = $region9
  $region8: #{model_forward.12} parent=0 // pred_region
    _
  $region9: #{model_forward.12} parent=0 // pred_fallthru
    _
  // Predicated region
  $region10: #{model_forward.12} parent=0 // pred_check
    _
  $region11: #{model_forward.12} parent=0 // pred_check_branch
    %13 = sbr.rel (0) target = $region13
  $region12: #{model_forward.12} parent=0 // pred_region
    _
  $region13: #{model_forward.12} parent=0 // pred_fallthru
    _
  %v14 = vld [vmem:[%s0] sm:$0xff]
  %v15 = vld [vmem:[%s0 + $0x8] sm:$0xff]
  %v16 = vld [vmem:[%s0 + $0x10] sm:$0xf]
  %vm17 = vcmask 261120
  %v18 = vsel %vm17, %v14, 0.0
  %19 = vadd.xlane.f32.xlu0 %v18
  %v20 = vpop.xlane.xlu0 %19
  %v21 = vsel %vm17, %v15, 0.0
  %22 = vadd.xlane.f32.xlu0 %v21
  %v23 = vpop.xlane.xlu0 %22
  %vm24 = vcmask 257024
  %v25 = vsel %vm24, %v16, 0.0
  %26 = vadd.xlane.f32.xlu0 %v25
  %v27 = vpop.xlane.xlu0 %26
  %v28 = vrcp.pop 32.0
  %v29 = vmul.f32 %v20, %v28
  %v30 = vmul.f32 %v23, %v28
  %v31 = vmul.f32 %v27, %v28
  %v32 = vsub.f32 %v14, %v29
  %v33 = vsub.f32 %v15, %v30
  %v34 = vsub.f32 %v16, %v31
  %v35 = vmul.f32 %v32, %v32
  %v36 = vmul.f32 %v33, %v33
  %v37 = vmul.f32 %v34, %v34
  %v38 = vsel %vm17, %v35, 0.0
  %39 = vadd.xlane.f32.xlu0 %v38
  %v40 = vpop.xlane.xlu0 %39
  %v41 = vsel %vm17, %v36, 0.0
  %42 = vadd.xlane.f32.xlu0 %v41
  %v43 = vpop.xlane.xlu0 %42
  %v44 = vsel %vm24, %v37, 0.0
  %45 = vadd.xlane.f32.xlu0 %v44
  %v46 = vpop.xlane.xlu0 %45
  %v47 = vmul.f32 %v40, %v28
  %v48 = vmul.f32 %v43, %v28
  %v49 = vmul.f32 %v46, %v28
  %v50 = vadd.f32 %v47, 1e-05
  %v51 = vadd.f32 %v48, 1e-05
  %v52 = vadd.f32 %v49, 1e-05
  %v53 = vrsqrt.pop %v50
  %v54 = vrsqrt.pop %v51
  %v55 = vrsqrt.pop %v52
  %v56 = vmul.f32 %v32, %v53
  %v57 = vmul.f32 %v33, %v54
  %v58 = vmul.f32 %v34, %v55
  %v59 = vld [vmem:[%s1] sm:$0x1]
  %v61 = vlaneseq
  %v62 = vshrl.u32 %v61, 7
  %v63 = vsub.s32 0, %v62
  %v64 = vrot.slane %v59, %v63
  %v66 = vmul.f32 %v56, %v64
  %v67 = vmul.f32 %v57, %v64
  %v68 = vmul.f32 %v58, %v64
  %v69 = vld [vmem:[%s2] sm:$0x1]
  %v71 = vlaneseq
  %v72 = vshrl.u32 %v71, 7
  %v73 = vsub.s32 0, %v72
  %v74 = vrot.slane %v69, %v73
  %v76 = vadd.f32 %v66, %v74
  %v77 = vadd.f32 %v67, %v74
  %v78 = vadd.f32 %v68, %v74
  %79 = vst.msk [vmem:[%s3] sm:$0xff] %vm17, %v76
  %80 = vst.msk [vmem:[%s3 + $0x8] sm:$0xff] %vm17, %v77
  %81 = vst.msk [vmem:[%s3 + $0x10] sm:$0xf] %vm24, %v78
  // Predicated region
  $region14: #{model_forward.12} parent=0 // pred_check
    _
  $region15: #{model_forward.12} parent=0 // pred_check_branch
    %83 = sbr.rel (0) target = $region17
  $region16: #{model_forward.12} parent=0 // pred_region
    _
  $region17: #{model_forward.12} parent=0 // pred_fallthru
    _
  // Predicated region
  $region18: #{model_forward.12} parent=0 // pred_check
    _
  $region19: #{model_forward.12} parent=0 // pred_check_branch
    %85 = sbr.rel (0) target = $region21
  $region20: #{model_forward.12} parent=0 // pred_region
    _
  $region21: #{model_forward.12} parent=0 // pred_fallthru
    _

// kernel: model_forward.14
$region0: #{model_forward.14}
  #allocation0 [shape = 'u32[]', space=smem, size = 0x4, offset = 0x4, fixed_abs, tag = 'smem constant byte address 0x4 - core index']
  #allocation1 [shape = 'u32[144,128]{1,0:T(1,128)}', space=vmem, size = 0x12000, scoped, tag = 'internal scratch']
  #allocation2 [shape = 'f32[5,32]{1,0:T(8,128)}', space=vmem, size = 0x1000, scoped, tag = 'scratch operand']
  %s0 = inlined_call_operand.vmem [shape: bf16[4,3,4,5,8], index: 0, kind: input, shape index: {}, may-alias: {0,1}]
  %s1 = inlined_call_operand.vmem [shape: bf16[4,3,4,5,8], index: 1, kind: input, shape index: {}, may-alias: {0,1}]
  %s2 = inlined_call_operand.vmem [shape: f32[4,5,32], index: 2, kind: input, shape index: {}]
  %s3 = inlined_call_operand.vmem [shape: bf16[4,8,32], index: 3, kind: input, shape index: {}]
  %s4 = inlined_call_operand.vmem [shape: f32[1,32], index: 4, kind: input, shape index: {}]
  %s5 = inlined_call_operand.vmem [shape: f32[4,5,32], index: 5, kind: output, shape index: {}]
  %s6 = sld [smem:[#allocation0]]
  $region53: #{model_forward.14} parent=0
    _
  %s8 = ssub.s32 1, %s6
  %s9 = scalar_select 0, %s8, %s6
  loop: start=0, step=1, limit=6
  $region2: #{model_forward.14} parent=0 // loop_pre_header
    _
  $region3: #{model_forward.14} parent=0 // loop_header
    %s11 = sphi 0, %s15
    %p12 = scmp.ge.s32.totalorder %s11, 6
    %s18 = sphi 0, %s30
    %s19 = sphi 0, %s26
    %s20 = sphi 0, %s18
    %s21 = sphi 0, %s19
    %s22 = sphi 0, %s20
    %s23 = sphi 0, %s21
    %s35 = sphi 0, %s37
    %s38 = sphi 0, %s35
    %s39 = sphi 0, %s38
    %s55 = sphi 0, %s39
    %s87 = sphi 0, %s89
    %s90 = sphi 0, %s87
    %s91 = sphi 0, %s90
    %s107 = sphi 0, %s91
    %s115 = sphi 0, %s117
    %s118 = sphi 0, %s115
    %s119 = sphi 0, %s118
    %s135 = sphi 0, %s119
    %s139 = sphi 0, %s139
    %s141 = sphi 0, %s139
    %s142 = sphi 0, %s141
    %s156 = sphi 0, %s142
    %s160 = sphi 0, %s160
    %s162 = sphi 0, %s160
    %s163 = sphi 0, %s162
    %s177 = sphi 0, %s163
    %s185 = sphi 0, %s187
    %s188 = sphi 0, %s185
    %s189 = sphi 0, %s188
    %s205 = sphi 0, %s189
  $region4: #{model_forward.14} parent=0 // loop_header_branch
    %14 = sbr.rel (%p12) target = $region8
  $region5: #{model_forward.14} parent=0 // loop_body
    %s16 = ssub.s32 %s11, 1
    %s17 = ssub.s32 %s11, 2
    %s24 = sadd.s32 1, %s19
    %p25 = scmp.ge.s32.totalorder %s24, 1
    %s26 = scalar_select %p25, 0, %s24
    %s27 = sadd.s32 1, %s18
    %s28 = scalar_select %p25, %s27, %s18
    %p29 = scmp.ge.s32.totalorder %s28, 4
    %s30 = scalar_select %p29, 0, %s28
    %s31 = ssub.s32 %s18, %s30
    %s32 = ssub.s32 %s19, %s26
    %s33 = sor.u32 %s31, %s32
    %p34 = scmp.eq.s32.totalorder %s33, 0
    %s36 = sadd.s32 %s35, 1
    %s37 = scalar_select %p34, %s35, %s36
    %p40 = pneg %p34
    %p41 = scmp.eq.s32.totalorder %s11, 3
    %p42 = por %p40, %p41
    %p43 = scmp.ne.s32.totalorder %s35, %s38
    %p44 = scmp.eq.s32.totalorder %s11, 0
    %p45 = por %p43, %p44
    %p46 = scmp.ne.s32.totalorder %s35, %s38
    %p47 = scmp.eq.s32.totalorder %s16, 3
    %p48 = por %p46, %p47
    %p49 = scmp.ne.s32.totalorder %s38, %s39
    %p50 = scmp.eq.s32.totalorder %s16, 0
    %p51 = por %p49, %p50
    %p52 = scmp.ne.s32.totalorder %s38, %s39
    %p53 = scmp.eq.s32.totalorder %s17, 3
    %p54 = por %p52, %p53
    %p56 = scmp.ne.s32.totalorder %s39, %s55
    %p57 = scmp.eq.s32.totalorder %s17, 0
    %p58 = por %p56, %p57
    %s59 = sadd.s32 %s18, 2
    %p60 = scmp.lt.s32.totalorder %s59, 0
    %s61 = ssub.s32 0, %s59
    %s62 = scalar_select %p60, %s61, %s59
    %s63 = sand.u32 %s62, 3
    %s64 = ssub.s32 0, %s63
    %s65 = scalar_select %p60, %s64, %s63
    %p66 = scmp.ne.s32.totalorder %s65, 0
    %p67 = scmp.lt.s32.totalorder %s65, 0
    %p68 = pnand %p67, %p66
    %p69 = pneg %p68
    %s70 = sadd.s32 %s65, 4
    %s71 = scalar_select %p69, %s70, %s65
    %s72 = sadd.s32 %s30, 2
    %p73 = scmp.lt.s32.totalorder %s72, 0
    %s74 = ssub.s32 0, %s72
    %s75 = scalar_select %p73, %s74, %s72
    %s76 = sand.u32 %s75, 3
    %s77 = ssub.s32 0, %s76
    %s78 = scalar_select %p73, %s77, %s76
    %p79 = scmp.ne.s32.totalorder %s78, 0
    %p80 = scmp.lt.s32.totalorder %s78, 0
    %p81 = pnand %p80, %p79
    %p82 = pneg %p81
    %s83 = sadd.s32 %s78, 4
    %s84 = scalar_select %p82, %s83, %s78
    %s85 = ssub.s32 %s71, %s84
    %p86 = scmp.eq.s32.totalorder %s85, 0
    %s88 = sadd.s32 %s87, 1
    %s89 = scalar_select %p86, %s87, %s88
    %p92 = pneg %p86
    %p93 = scmp.eq.s32.totalorder %s11, 3
    %p94 = por %p92, %p93
    %p95 = scmp.ne.s32.totalorder %s87, %s90
    %p96 = scmp.eq.s32.totalorder %s11, 0
    %p97 = por %p95, %p96
    %p98 = scmp.ne.s32.totalorder %s87, %s90
    %p99 = scmp.eq.s32.totalorder %s16, 3
    %p100 = por %p98, %p99
    %p101 = scmp.ne.s32.totalorder %s90, %s91
    %p102 = scmp.eq.s32.totalorder %s16, 0
    %p103 = por %p101, %p102
    %p104 = scmp.ne.s32.totalorder %s90, %s91
    %p105 = scmp.eq.s32.totalorder %s17, 3
    %p106 = por %p104, %p105
    %p108 = scmp.ne.s32.totalorder %s91, %s107
    %p109 = scmp.eq.s32.totalorder %s17, 0
    %p110 = por %p108, %p109
    %s111 = ssub.s32 %s18, %s30
    %s112 = ssub.s32 %s19, %s26
    %s113 = sor.u32 %s111, %s112
    %p114 = scmp.eq.s32.totalorder %s113, 0
    %s116 = sadd.s32 %s115, 1
    %s117 = scalar_select %p114, %s115, %s116
    %p120 = pneg %p114
    %p121 = scmp.eq.s32.totalorder %s11, 3
    %p122 = por %p120, %p121
    %p123 = scmp.ne.s32.totalorder %s115, %s118
    %p124 = scmp.eq.s32.totalorder %s11, 0
    %p125 = por %p123, %p124
    %p126 = scmp.ne.s32.totalorder %s115, %s118
    %p127 = scmp.eq.s32.totalorder %s16, 3
    %p128 = por %p126, %p127
    %p129 = scmp.ne.s32.totalorder %s118, %s119
    %p130 = scmp.eq.s32.totalorder %s16, 0
    %p131 = por %p129, %p130
    %p132 = scmp.ne.s32.totalorder %s118, %s119
    %p133 = scmp.eq.s32.totalorder %s17, 3
    %p134 = por %p132, %p133
    %p136 = scmp.ne.s32.totalorder %s119, %s135
    %p137 = scmp.eq.s32.totalorder %s17, 0
    %p138 = por %p136, %p137
    %s140 = sadd.s32 %s139, 1
    %p143 = scmp.eq.s32.totalorder %s11, 3
    %p144 = scmp.ne.s32.totalorder %s139, %s141
    %p145 = scmp.eq.s32.totalorder %s11, 0
    %p146 = por %p144, %p145
    %p147 = scmp.ne.s32.totalorder %s139, %s141
    %p148 = scmp.eq.s32.totalorder %s16, 3
    %p149 = por %p147, %p148
    %p150 = scmp.ne.s32.totalorder %s141, %s142
    %p151 = scmp.eq.s32.totalorder %s16, 0
    %p152 = por %p150, %p151
    %p153 = scmp.ne.s32.totalorder %s141, %s142
    %p154 = scmp.eq.s32.totalorder %s17, 3
    %p155 = por %p153, %p154
    %p157 = scmp.ne.s32.totalorder %s142, %s156
    %p158 = scmp.eq.s32.totalorder %s17, 0
    %p159 = por %p157, %p158
    %s161 = sadd.s32 %s160, 1
    %p164 = scmp.eq.s32.totalorder %s11, 3
    %p165 = scmp.ne.s32.totalorder %s160, %s162
    %p166 = scmp.eq.s32.totalorder %s11, 0
    %p167 = por %p165, %p166
    %p168 = scmp.ne.s32.totalorder %s160, %s162
    %p169 = scmp.eq.s32.totalorder %s16, 3
    %p170 = por %p168, %p169
    %p171 = scmp.ne.s32.totalorder %s162, %s163
    %p172 = scmp.eq.s32.totalorder %s16, 0
    %p173 = por %p171, %p172
    %p174 = scmp.ne.s32.totalorder %s162, %s163
    %p175 = scmp.eq.s32.totalorder %s17, 3
    %p176 = por %p174, %p175
    %p178 = scmp.ne.s32.totalorder %s163, %s177
    %p179 = scmp.eq.s32.totalorder %s17, 0
    %p180 = por %p178, %p179
    %s181 = ssub.s32 %s18, %s30
    %s182 = ssub.s32 %s19, %s26
    %s183 = sor.u32 %s181, %s182
    %p184 = scmp.eq.s32.totalorder %s183, 0
    %s186 = sadd.s32 %s185, 1
    %s187 = scalar_select %p184, %s185, %s186
    %p190 = pneg %p184
    %p191 = scmp.eq.s32.totalorder %s11, 3
    %p192 = por %p190, %p191
    %p193 = scmp.ne.s32.totalorder %s185, %s188
    %p194 = scmp.eq.s32.totalorder %s11, 0
    %p195 = por %p193, %p194
    %p196 = scmp.ne.s32.totalorder %s185, %s188
    %p197 = scmp.eq.s32.totalorder %s16, 3
    %p198 = por %p196, %p197
    %p199 = scmp.ne.s32.totalorder %s188, %s189
    %p200 = scmp.eq.s32.totalorder %s16, 0
    %p201 = por %p199, %p200
    %p202 = scmp.ne.s32.totalorder %s188, %s189
    %p203 = scmp.eq.s32.totalorder %s17, 3
    %p204 = por %p202, %p203
    %p206 = scmp.ne.s32.totalorder %s189, %s205
    %p207 = scmp.eq.s32.totalorder %s17, 0
    %p208 = por %p206, %p207
    %p209 = scmp.le.s32.totalorder 1, %s11
    %p210 = scmp.lt.s32.totalorder %s11, 5
    %p211 = pnand %p209, %p210
    %p212 = pneg %p211
    // Predicated region
    $region9: #{model_forward.14} parent=5 // pred_check
      _
    $region10: #{model_forward.14} parent=5 // pred_check_branch
      %214 = sbr.rel (%p211) target = $region12
    $region11: #{model_forward.14} parent=5 // pred_region
      %s215 = ssub.s32 %s11, 1
      // Predicated region
      $region13: #{model_forward.14} parent=11 // pred_check
        %p216 = pneg %p152
      $region14: #{model_forward.14} parent=11 // pred_check_branch
        %218 = sbr.rel (%p216) target = $region16
      $region15: #{model_forward.14} parent=11 // pred_region
        _
      $region16: #{model_forward.14} parent=11 // pred_fallthru
        _
      // Predicated region
      $region17: #{model_forward.14} parent=11 // pred_check
        %p219 = pneg %p173
      $region18: #{model_forward.14} parent=11 // pred_check_branch
        %221 = sbr.rel (%p219) target = $region20
      $region19: #{model_forward.14} parent=11 // pred_region
        _
      $region20: #{model_forward.14} parent=11 // pred_fallthru
        _
    $region12: #{model_forward.14} parent=5 // pred_fallthru
      _
    %p222 = scmp.lt.s32.totalorder %s11, 4
    // Predicated region
    $region21: #{model_forward.14} parent=5 // pred_check
      %p223 = pneg %p222
    $region22: #{model_forward.14} parent=5 // pred_check_branch
      %225 = sbr.rel (%p223) target = $region24
    $region23: #{model_forward.14} parent=5 // pred_region
      // Predicated region
      $region25: #{model_forward.14} parent=23 // pred_check
        %p226 = pneg %p45
      $region26: #{model_forward.14} parent=23 // pred_check_branch
        %228 = sbr.rel (%p226) target = $region28
      $region27: #{model_forward.14} parent=23 // pred_region
        %p229 = scmp.lt.s32.totalorder %s18, 3
        %s230 = scalar_select %p229, %s18, 3
        %p231 = scmp.lt.s32.totalorder %s19, 0
        %s232 = scalar_select %p231, %s19, 0
        %s233 = sadd.s32 %s232, 8
        %s234 = smul.addr %s230, 12
        %s235 = sadd.s32 %s233, %s234
        %s236 = smul.addr %s235, 4
        %s237 = scalar_lea.vmem %s0, %s236
      $region28: #{model_forward.14} parent=23 // pred_fallthru
        _
      // Predicated region
      $region29: #{model_forward.14} parent=23 // pred_check
        %p238 = pneg %p97
      $region30: #{model_forward.14} parent=23 // pred_check_branch
        %240 = sbr.rel (%p238) target = $region32
      $region31: #{model_forward.14} parent=23 // pred_region
        %s241 = sadd.s32 %s18, 2
        %p242 = scmp.lt.s32.totalorder %s241, 0
        %s243 = ssub.s32 0, %s241
        %s244 = scalar_select %p242, %s243, %s241
        %s245 = sand.u32 %s244, 3
        %s246 = ssub.s32 0, %s245
        %s247 = scalar_select %p242, %s246, %s245
        %p248 = scmp.ne.s32.totalorder %s247, 0
        %p249 = scmp.lt.s32.totalorder %s247, 0
        %p250 = pnand %p249, %p248
        %p251 = pneg %p250
        %s252 = sadd.s32 %s247, 4
        %s253 = scalar_select %p251, %s252, %s247
        %p254 = scmp.lt.s32.totalorder %s253, 3
        %s255 = scalar_select %p254, %s253, 3
        %s256 = smul.addr %s255, 12
        %s257 = smul.addr %s256, 4
        %s258 = scalar_lea.vmem %s1, %s257
        %s259 = sadd.s32 %s18, 2
        %p260 = scmp.lt.s32.totalorder %s259, 0
        %s261 = ssub.s32 0, %s259
        %s262 = scalar_select %p260, %s261, %s259
        %s263 = sand.u32 %s262, 3
        %s264 = ssub.s32 0, %s263
        %s265 = scalar_select %p260, %s264, %s263
        %p266 = scmp.ne.s32.totalorder %s265, 0
        %p267 = scmp.lt.s32.totalorder %s265, 0
        %p268 = pnand %p267, %p266
        %p269 = pneg %p268
        %s270 = sadd.s32 %s265, 4
        %s271 = scalar_select %p269, %s270, %s265
      $region32: #{model_forward.14} parent=23 // pred_fallthru
        _
      // Predicated region
      $region33: #{model_forward.14} parent=23 // pred_check
        %p272 = pneg %p125
      $region34: #{model_forward.14} parent=23 // pred_check_branch
        %274 = sbr.rel (%p272) target = $region36
      $region35: #{model_forward.14} parent=23 // pred_region
        %p275 = scmp.lt.s32.totalorder %s18, 3
        %s276 = scalar_select %p275, %s18, 3
        %p277 = scmp.lt.s32.totalorder %s19, 0
        %s278 = scalar_select %p277, %s19, 0
        %s279 = sadd.s32 %s278, %s276
        %s280 = smul.addr %s279, 8
        %s281 = scalar_lea.vmem %s2, %s280
      $region36: #{model_forward.14} parent=23 // pred_fallthru
        _
    $region24: #{model_forward.14} parent=5 // pred_fallthru
      _
    %p282 = scmp.le.s32.totalorder 1, %s11
    %p283 = scmp.lt.s32.totalorder %s11, 5
    %p284 = pnand %p282, %p283
    %p285 = pneg %p284
    // Predicated region
    $region37: #{model_forward.14} parent=5 // pred_check
      _
    $region38: #{model_forward.14} parent=5 // pred_check_branch
      %287 = sbr.rel (%p284) target = $region40
    $region39: #{model_forward.14} parent=5 // pred_region
      %s288 = ssub.s32 %s11, 1
      %p289 = scmp.lt.s32.totalorder %s20, 3
      %s290 = scalar_select %p289, %s20, 3
      %p291 = scmp.lt.s32.totalorder %s21, 0
      %s292 = scalar_select %p291, %s21, 0
      %s293 = sadd.s32 %s292, 8
      %s294 = smul.addr %s290, 12
      %s295 = sadd.s32 %s293, %s294
      %s296 = smul.addr %s295, 4
      %s297 = scalar_lea.vmem %s0, %s296
      %p298 = pneg %p51
      %p299 = pneg %p48
      %s300 = sadd.s32 %s20, 2
      %p301 = scmp.lt.s32.totalorder %s300, 0
      %s302 = ssub.s32 0, %s300
      %s303 = scalar_select %p301, %s302, %s300
      %s304 = sand.u32 %s303, 3
      %s305 = ssub.s32 0, %s304
      %s306 = scalar_select %p301, %s305, %s304
      %p307 = scmp.ne.s32.totalorder %s306, 0
      %p308 = scmp.lt.s32.totalorder %s306, 0
      %p309 = pnand %p308, %p307
      %p310 = pneg %p309
      %s311 = sadd.s32 %s306, 4
      %s312 = scalar_select %p310, %s311, %s306
      %p313 = scmp.lt.s32.totalorder %s312, 3
      %s314 = scalar_select %p313, %s312, 3
      %s315 = smul.addr %s314, 12
      %s316 = smul.addr %s315, 4
      %s317 = scalar_lea.vmem %s1, %s316
      %p318 = pneg %p103
      %p319 = pneg %p100
      %p320 = scmp.lt.s32.totalorder %s20, 3
      %s321 = scalar_select %p320, %s20, 3
      %p322 = scmp.lt.s32.totalorder %s21, 0
      %s323 = scalar_select %p322, %s21, 0
      %s324 = sadd.s32 %s323, %s321
      %s325 = smul.addr %s324, 8
      %s326 = scalar_lea.vmem %s2, %s325
      %p327 = pneg %p131
      %p328 = pneg %p128
      %p329 = pneg %p152
      %p330 = pneg %p149
      %p331 = pneg %p173
      %p332 = pneg %p170
      %p333 = pneg %p201
      %p334 = pneg %p198
      %p335 = scmp.lt.s32.totalorder %s20, 3
      %s336 = scalar_select %p335, %s20, 3
      %p337 = scmp.lt.s32.totalorder %s21, 0
      %s338 = scalar_select %p337, %s21, 0
      %s339 = sadd.s32 %s338, %s336
      %s340 = smul.addr %s339, 8
      %s341 = scalar_lea.vmem %s5, %s340
      %p342 = scmp.lt.s32.totalorder %s20, 3
      %s343 = scalar_select %p342, %s20, 3
      %p344 = scmp.lt.s32.totalorder %s21, 0
      %s345 = scalar_select %p344, %s21, 0
      %s346 = sadd.s32 %s345, 8
      %s347 = smul.addr %s343, 12
      %s348 = sadd.s32 %s346, %s347
      %s349 = smul.addr %s348, 4
      %s350 = scalar_lea.vmem %s0, %s349
      %s351 = sadd.s32 %s20, 2
      %p352 = scmp.lt.s32.totalorder %s351, 0
      %s353 = ssub.s32 0, %s351
      %s354 = scalar_select %p352, %s353, %s351
      %s355 = sand.u32 %s354, 3
      %s356 = ssub.s32 0, %s355
      %s357 = scalar_select %p352, %s356, %s355
      %p358 = scmp.ne.s32.totalorder %s357, 0
      %p359 = scmp.lt.s32.totalorder %s357, 0
      %p360 = pnand %p359, %p358
      %p361 = pneg %p360
      %s362 = sadd.s32 %s357, 4
      %s363 = scalar_select %p361, %s362, %s357
      %p364 = scmp.lt.s32.totalorder %s363, 3
      %s365 = scalar_select %p364, %s363, 3
      %s366 = smul.addr %s365, 12
      %s367 = smul.addr %s366, 4
      %s368 = scalar_lea.vmem %s1, %s367
      %s369 = sadd.s32 %s20, 2
      %p370 = scmp.lt.s32.totalorder %s369, 0
      %s371 = ssub.s32 0, %s369
      %s372 = scalar_select %p370, %s371, %s369
      %s373 = sand.u32 %s372, 3
      %s374 = ssub.s32 0, %s373
      %s375 = scalar_select %p370, %s374, %s373
      %p376 = scmp.ne.s32.totalorder %s375, 0
      %p377 = scmp.lt.s32.totalorder %s375, 0
      %p378 = pnand %p377, %p376
      %p379 = pneg %p378
      %s380 = sadd.s32 %s375, 4
      %s381 = scalar_select %p379, %s380, %s375
      %p382 = scmp.lt.s32.totalorder %s20, 3
      %s383 = scalar_select %p382, %s20, 3
      %p384 = scmp.lt.s32.totalorder %s21, 0
      %s385 = scalar_select %p384, %s21, 0
      %s386 = sadd.s32 %s385, %s383
      %s387 = smul.addr %s386, 8
      %s388 = scalar_lea.vmem %s2, %s387
      %p389 = scmp.lt.s32.totalorder %s20, 3
      %s390 = scalar_select %p389, %s20, 3
      %p391 = scmp.lt.s32.totalorder %s21, 0
      %s392 = scalar_select %p391, %s21, 0
      %s393 = sadd.s32 %s392, %s390
      %s394 = smul.addr %s393, 8
      %s395 = scalar_lea.vmem %s5, %s394
      %vm397 = vcmask 258048
      %398 = vst.msk [vmem:[#allocation2] sm:$0x1f] %vm397, 0.0
      %v399 = vld [vmem:[%s350] sm:$0x7]
      %v400 = vld [vmem:[%s368] sm:$0x7]
      %s401 = scalar_lea.vmem %s368, 16
      %v402 = vld [vmem:[%s401] sm:$0x7]
      %vm403 = vcmask 64512
      %v405 = vsel %vm403, %v399, 0
      %v408 = vsel %vm403, %v400, 0
      %410 = vmatprep.subr.bf16.mxu0 0
      %411 = vmatpush1.bf16.xpose.msra.mxu0 %v408
      %412 = vmatprep.subr.bf16.mxu0 0
      %413 = vmatpush1.bf16.xpose.msra.mxu0 0
      %414 = vmatprep.subr.bf16.mxu0 0
      %415 = vmatpush1.bf16.xpose.msra.mxu0 0
      %416 = vmatprep.subr.bf16.mxu0 0
      %417 = vmatpush1.bf16.xpose.msra.mxu0 0
      %418 = vmatprep.subr.bf16.mxu0 0
      %419 = vmatpush1.bf16.xpose.msra.mxu0 0
      %420 = vmatprep.subr.bf16.mxu0 0
      %421 = vmatpush1.bf16.xpose.msra.mxu0 0
      %422 = vmatprep.subr.bf16.mxu0 0
      %423 = vmatpush1.bf16.xpose.msra.mxu0 0
      %424 = vmatprep.subr.bf16.mxu0 0
      %425 = vmatpush1.bf16.xpose.msra.mxu0 0
      %426 = vmatprep.subr.bf16.mxu0 0
      %427 = vmatpush1.bf16.xpose.msra.mxu0 0
      %428 = vmatprep.subr.bf16.mxu0 0
      %429 = vmatpush1.bf16.xpose.msra.mxu0 0
      %430 = vmatprep.subr.bf16.mxu0 0
      %431 = vmatpush1.bf16.xpose.msra.mxu0 0
      %432 = vmatprep.subr.bf16.mxu0 0
      %433 = vmatpush1.bf16.xpose.msra.mxu0 0
      %434 = vmatprep.subr.bf16.mxu0 0
      %435 = vmatpush1.bf16.xpose.msra.mxu0 0
      %436 = vmatprep.subr.bf16.mxu0 0
      %437 = vmatpush1.bf16.xpose.msra.mxu0 0
      %438 = vmatprep.subr.bf16.mxu0 0
      %439 = vmatpush1.bf16.xpose.msra.mxu0 0
      %440 = vmatprep.subr.bf16.mxu0 0
      %441 = vmatpush1.bf16.xpose.msra.mxu0 0
      %442 = vmatprep.mubr.bf16.mxu0 0
      %443 = vmatmul.mubr.bf16.gmra.mrb[0].mxu0 %v405
      %v444 = vpop.f32.mrb[0].mxu0
      %v445 = vadd.f32 0.0, %v444
      %v446 = vpop.f32.mrb[0].mxu0
      %v447 = vpop.f32.mrb[0].mxu0
      %v448 = vpop.f32.mrb[0].mxu0
      %449 = vdwg.mxu0
      %vm450 = vcmask 36864
      %v451 = vsel %vm450, %v445, -inf
      %452 = vmax.xlane.f32.xlu0 %v451
      %v453 = vpop.xlane.xlu0 %452
      %v454 = vsub.f32 %v445, %v453
      %v455 = vmul.f32 %v454, 1.442695
      %v456 = vpow.pop %v455
      %v457 = vsel %vm450, %v456, 0.0
      %458 = vadd.xlane.f32.xlu0 %v457
      %v459 = vpop.xlane.xlu0 %458
      %v460 = vrcp.pop %v459
      %v461 = vmul.f32 %v456, %v460
      %v462 = vpack.c.bf16 %v461, %v461
      %vm463 = vcmask 39936
      %v465 = vsel %vm463, %v462, 0
      %vm467 = vcmask 1041408
      %vm468 = vcmask 1042432
      %v469 = vsel %vm467, 4294967295, 65535
      %v470 = vsel %vm468, %v469, 0
      %v472 = vand.u32 %v402, %v470
      %474 = vmatprep.subr.bf16.mxu0 0
      %475 = vmatpush1.bf16.msra.mxu0 %v472
      %476 = vmatprep.subr.bf16.mxu0 0
      %477 = vmatpush1.bf16.msra.mxu0 0
      %478 = vmatprep.subr.bf16.mxu0 0
      %479 = vmatpush1.bf16.msra.mxu0 0
      %480 = vmatprep.subr.bf16.mxu0 0
      %481 = vmatpush1.bf16.msra.mxu0 0
      %482 = vmatprep.subr.bf16.mxu0 0
      %483 = vmatpush1.bf16.msra.mxu0 0
      %484 = vmatprep.subr.bf16.mxu0 0
      %485 = vmatpush1.bf16.msra.mxu0 0
      %486 = vmatprep.subr.bf16.mxu0 0
      %487 = vmatpush1.bf16.msra.mxu0 0
      %488 = vmatprep.subr.bf16.mxu0 0
      %489 = vmatpush1.bf16.msra.mxu0 0
      %490 = vmatprep.subr.bf16.mxu0 0
      %491 = vmatpush1.bf16.msra.mxu0 0
      %492 = vmatprep.subr.bf16.mxu0 0
      %493 = vmatpush1.bf16.msra.mxu0 0
      %494 = vmatprep.subr.bf16.mxu0 0
      %495 = vmatpush1.bf16.msra.mxu0 0
      %496 = vmatprep.subr.bf16.mxu0 0
      %497 = vmatpush1.bf16.msra.mxu0 0
      %498 = vmatprep.subr.bf16.mxu0 0
      %499 = vmatpush1.bf16.msra.mxu0 0
      %500 = vmatprep.subr.bf16.mxu0 0
      %501 = vmatpush1.bf16.msra.mxu0 0
      %502 = vmatprep.subr.bf16.mxu0 0
      %503 = vmatpush1.bf16.msra.mxu0 0
      %504 = vmatprep.subr.bf16.mxu0 0
      %505 = vmatpush1.bf16.msra.mxu0 0
      %506 = vmatprep.mubr.bf16.mxu0 0
      %507 = vmatmul.mubr.bf16.gmra.mrb[0].mxu0 %v465
      %v508 = vpop.f32.mrb[0].mxu0
      %v509 = vadd.f32 0.0, %v508
      %v510 = vpop.f32.mrb[0].mxu0
      %v511 = vpop.f32.mrb[0].mxu0
      %v512 = vpop.f32.mrb[0].mxu0
      %513 = vdwg.mxu0
      %v514 = vld [vmem:[#allocation2] sm:$0x1f]
      %v515 = vpack.c.bf16 %v509, %v509
      %v516 = vld [vmem:[%s3] sm:$0xf]
      %v518 = vsel %vm403, %v515, 0
      %vm520 = vcmask 1043456
      %v522 = vsel %vm520, %v516, 0
      %524 = vmatprep.subr.bf16.mxu0 0
      %525 = vmatpush1.bf16.msra.mxu0 %v522
      %526 = vmatprep.subr.bf16.mxu0 0
      %527 = vmatpush1.bf16.msra.mxu0 0
      %528 = vmatprep.subr.bf16.mxu0 0
      %529 = vmatpush1.bf16.msra.mxu0 0
      %530 = vmatprep.subr.bf16.mxu0 0
      %531 = vmatpush1.bf16.msra.mxu0 0
      %532 = vmatprep.subr.bf16.mxu0 0
      %533 = vmatpush1.bf16.msra.mxu0 0
      %534 = vmatprep.subr.bf16.mxu0 0
      %535 = vmatpush1.bf16.msra.mxu0 0
      %536 = vmatprep.subr.bf16.mxu0 0
      %537 = vmatpush1.bf16.msra.mxu0 0
      %538 = vmatprep.subr.bf16.mxu0 0
      %539 = vmatpush1.bf16.msra.mxu0 0
      %540 = vmatprep.subr.bf16.mxu0 0
      %541 = vmatpush1.bf16.msra.mxu0 0
      %542 = vmatprep.subr.bf16.mxu0 0
      %543 = vmatpush1.bf16.msra.mxu0 0
      %544 = vmatprep.subr.bf16.mxu0 0
      %545 = vmatpush1.bf16.msra.mxu0 0
      %546 = vmatprep.subr.bf16.mxu0 0
      %547 = vmatpush1.bf16.msra.mxu0 0
      %548 = vmatprep.subr.bf16.mxu0 0
      %549 = vmatpush1.bf16.msra.mxu0 0
      %550 = vmatprep.subr.bf16.mxu0 0
      %551 = vmatpush1.bf16.msra.mxu0 0
      %552 = vmatprep.subr.bf16.mxu0 0
      %553 = vmatpush1.bf16.msra.mxu0 0
      %554 = vmatprep.subr.bf16.mxu0 0
      %555 = vmatpush1.bf16.msra.mxu0 0
      %556 = vmatprep.mubr.bf16.mxu0 0
      %557 = vmatmul.mubr.bf16.gmra.mrb[0].mxu0 %v518
      %v558 = vpop.f32.mrb[0].mxu0
      %v559 = vadd.f32 0.0, %v558
      %v560 = vpop.f32.mrb[0].mxu0
      %v561 = vpop.f32.mrb[0].mxu0
      %v562 = vpop.f32.mrb[0].mxu0
      %563 = vdwg.mxu0
      %v564 = vadd.f32 %v514, %v559
      %565 = vst.msk [vmem:[#allocation2] sm:$0x1f] %vm397, %v564
      %s566 = scalar_lea.vmem %s350, 4
      %v567 = vld [vmem:[%s566] sm:$0x7]
      %s568 = scalar_lea.vmem %s368, 4
      %v569 = vld [vmem:[%s568] sm:$0x7]
      %s570 = scalar_lea.vmem %s368, 20
      %v571 = vld [vmem:[%s570] sm:$0x7]
      %v573 = vsel %vm403, %v567, 0
      %v576 = vsel %vm403, %v569, 0
      %578 = vmatprep.subr.bf16.mxu0 0
      %579 = vmatpush1.bf16.xpose.msra.mxu0 %v576
      %580 = vmatprep.subr.bf16.mxu0 0
      %581 = vmatpush1.bf16.xpose.msra.mxu0 0
      %582 = vmatprep.subr.bf16.mxu0 0
      %583 = vmatpush1.bf16.xpose.msra.mxu0 0
      %584 = vmatprep.subr.bf16.mxu0 0
      %585 = vmatpush1.bf16.xpose.msra.mxu0 0
      %586 = vmatprep.subr.bf16.mxu0 0
      %587 = vmatpush1.bf16.xpose.msra.mxu0 0
      %588 = vmatprep.subr.bf16.mxu0 0
      %589 = vmatpush1.bf16.xpose.msra.mxu0 0
      %590 = vmatprep.subr.bf16.mxu0 0
      %591 = vmatpush1.bf16.xpose.msra.mxu0 0
      %592 = vmatprep.subr.bf16.mxu0 0
      %593 = vmatpush1.bf16.xpose.msra.mxu0 0
      %594 = vmatprep.subr.bf16.mxu0 0
      %595 = vmatpush1.bf16.xpose.msra.mxu0 0
      %596 = vmatprep.subr.bf16.mxu0 0
      %597 = vmatpush1.bf16.xpose.msra.mxu0 0
      %598 = vmatprep.subr.bf16.mxu0 0
      %599 = vmatpush1.bf16.xpose.msra.mxu0 0
      %600 = vmatprep.subr.bf16.mxu0 0
      %601 = vmatpush1.bf16.xpose.msra.mxu0 0
      %602 = vmatprep.subr.bf16.mxu0 0
      %603 = vmatpush1.bf16.xpose.msra.mxu0 0
      %604 = vmatprep.subr.bf16.mxu0 0
      %605 = vmatpush1.bf16.xpose.msra.mxu0 0
      %606 = vmatprep.subr.bf16.mxu0 0
      %607 = vmatpush1.bf16.xpose.msra.mxu0 0
      %608 = vmatprep.subr.bf16.mxu0 0
      %609 = vmatpush1.bf16.xpose.msra.mxu0 0
      %610 = vmatprep.mubr.bf16.mxu0 0
      %611 = vmatmul.mubr.bf16.gmra.mrb[0].mxu0 %v573
      %v612 = vpop.f32.mrb[0].mxu0
      %v613 = vadd.f32 0.0, %v612
      %v614 = vpop.f32.mrb[0].mxu0
      %v615 = vpop.f32.mrb[0].mxu0
      %v616 = vpop.f32.mrb[0].mxu0
      %617 = vdwg.mxu0
      %v618 = vsel %vm450, %v613, -inf
      %619 = vmax.xlane.f32.xlu0 %v618
      %v620 = vpop.xlane.xlu0 %619
      %v621 = vsub.f32 %v613, %v620
      %v622 = vmul.f32 %v621, 1.442695
      %v623 = vpow.pop %v622
      %v624 = vsel %vm450, %v623, 0.0
      %625 = vadd.xlane.f32.xlu0 %v624
      %v626 = vpop.xlane.xlu0 %625
      %v627 = vrcp.pop %v626
      %v628 = vmul.f32 %v623, %v627
      %v629 = vpack.c.bf16 %v628, %v628
      %v631 = vsel %vm463, %v629, 0
      %v634 = vand.u32 %v571, %v470
      %636 = vmatprep.subr.bf16.mxu0 0
      %637 = vmatpush1.bf16.msra.mxu0 %v634
      %638 = vmatprep.subr.bf16.mxu0 0
      %639 = vmatpush1.bf16.msra.mxu0 0
      %640 = vmatprep.subr.bf16.mxu0 0
      %641 = vmatpush1.bf16.msra.mxu0 0
      %642 = vmatprep.subr.bf16.mxu0 0
      %643 = vmatpush1.bf16.msra.mxu0 0
      %644 = vmatprep.subr.bf16.mxu0 0
      %645 = vmatpush1.bf16.msra.mxu0 0
      %646 = vmatprep.subr.bf16.mxu0 0
      %647 = vmatpush1.bf16.msra.mxu0 0
      %648 = vmatprep.subr.bf16.mxu0 0
      %649 = vmatpush1.bf16.msra.mxu0 0
      %650 = vmatprep.subr.bf16.mxu0 0
      %651 = vmatpush1.bf16.msra.mxu0 0
      %652 = vmatprep.subr.bf16.mxu0 0
      %653 = vmatpush1.bf16.msra.mxu0 0
      %654 = vmatprep.subr.bf16.mxu0 0
      %655 = vmatpush1.bf16.msra.mxu0 0
      %656 = vmatprep.subr.bf16.mxu0 0
      %657 = vmatpush1.bf16.msra.mxu0 0
      %658 = vmatprep.subr.bf16.mxu0 0
      %659 = vmatpush1.bf16.msra.mxu0 0
      %660 = vmatprep.subr.bf16.mxu0 0
      %661 = vmatpush1.bf16.msra.mxu0 0
      %662 = vmatprep.subr.bf16.mxu0 0
      %663 = vmatpush1.bf16.msra.mxu0 0
      %664 = vmatprep.subr.bf16.mxu0 0
      %665 = vmatpush1.bf16.msra.mxu0 0
      %666 = vmatprep.subr.bf16.mxu0 0
      %667 = vmatpush1.bf16.msra.mxu0 0
      %668 = vmatprep.mubr.bf16.mxu0 0
      %669 = vmatmul.mubr.bf16.gmra.mrb[0].mxu0 %v631
      %v670 = vpop.f32.mrb[0].mxu0
      %v671 = vadd.f32 0.0, %v670
      %v672 = vpop.f32.mrb[0].mxu0
      %v673 = vpop.f32.mrb[0].mxu0
      %v674 = vpop.f32.mrb[0].mxu0
      %675 = vdwg.mxu0
      %v676 = vld [vmem:[#allocation2] sm:$0x1f]
      %v677 = vpack.c.bf16 %v671, %v671
      %s678 = scalar_lea.vmem %s3, 4
      %v679 = vld [vmem:[%s678] sm:$0xf]
      %v681 = vsel %vm403, %v677, 0
      %v684 = vsel %vm520, %v679, 0
      %686 = vmatprep.subr.bf16.mxu0 0
      %687 = vmatpush1.bf16.msra.mxu0 %v684
      %688 = vmatprep.subr.bf16.mxu0 0
      %689 = vmatpush1.bf16.msra.mxu0 0
      %690 = vmatprep.subr.bf16.mxu0 0
      %691 = vmatpush1.bf16.msra.mxu0 0
      %692 = vmatprep.subr.bf16.mxu0 0
      %693 = vmatpush1.bf16.msra.mxu0 0
      %694 = vmatprep.subr.bf16.mxu0 0
      %695 = vmatpush1.bf16.msra.mxu0 0
      %696 = vmatprep.subr.bf16.mxu0 0
      %697 = vmatpush1.bf16.msra.mxu0 0
      %698 = vmatprep.subr.bf16.mxu0 0
      %699 = vmatpush1.bf16.msra.mxu0 0
      %700 = vmatprep.subr.bf16.mxu0 0
      %701 = vmatpush1.bf16.msra.mxu0 0
      %702 = vmatprep.subr.bf16.mxu0 0
      %703 = vmatpush1.bf16.msra.mxu0 0
      %704 = vmatprep.subr.bf16.mxu0 0
      %705 = vmatpush1.bf16.msra.mxu0 0
      %706 = vmatprep.subr.bf16.mxu0 0
      %707 = vmatpush1.bf16.msra.mxu0 0
      %708 = vmatprep.subr.bf16.mxu0 0
      %709 = vmatpush1.bf16.msra.mxu0 0
      %710 = vmatprep.subr.bf16.mxu0 0
      %711 = vmatpush1.bf16.msra.mxu0 0
      %712 = vmatprep.subr.bf16.mxu0 0
      %713 = vmatpush1.bf16.msra.mxu0 0
      %714 = vmatprep.subr.bf16.mxu0 0
      %715 = vmatpush1.bf16.msra.mxu0 0
      %716 = vmatprep.subr.bf16.mxu0 0
      %717 = vmatpush1.bf16.msra.mxu0 0
      %718 = vmatprep.mubr.bf16.mxu0 0
      %719 = vmatmul.mubr.bf16.gmra.mrb[0].mxu0 %v681
      %v720 = vpop.f32.mrb[0].mxu0
      %v721 = vadd.f32 0.0, %v720
      %v722 = vpop.f32.mrb[0].mxu0
      %v723 = vpop.f32.mrb[0].mxu0
      %v724 = vpop.f32.mrb[0].mxu0
      %725 = vdwg.mxu0
      %v726 = vadd.f32 %v676, %v721
      %727 = vst.msk [vmem:[#allocation2] sm:$0x1f] %vm397, %v726
      %s728 = scalar_lea.vmem %s350, 8
      %v729 = vld [vmem:[%s728] sm:$0x7]
      %s730 = scalar_lea.vmem %s368, 8
      %v731 = vld [vmem:[%s730] sm:$0x7]
      %s732 = scalar_lea.vmem %s368, 24
      %v733 = vld [vmem:[%s732] sm:$0x7]
      %v735 = vsel %vm403, %v729, 0
      %v738 = vsel %vm403, %v731, 0
      %740 = vmatprep.subr.bf16.mxu0 0
      %741 = vmatpush1.bf16.xpose.msra.mxu0 %v738
      %742 = vmatprep.subr.bf16.mxu0 0
      %743 = vmatpush1.bf16.xpose.msra.mxu0 0
      %744 = vmatprep.subr.bf16.mxu0 0
      %745 = vmatpush1.bf16.xpose.msra.mxu0 0
      %746 = vmatprep.subr.bf16.mxu0 0
      %747 = vmatpush1.bf16.xpose.msra.mxu0 0
      %748 = vmatprep.subr.bf16.mxu0 0
      %749 = vmatpush1.bf16.xpose.msra.mxu0 0
      %750 = vmatprep.subr.bf16.mxu0 0
      %751 = vmatpush1.bf16.xpose.msra.mxu0 0
      %752 = vmatprep.subr.bf16.mxu0 0
      %753 = vmatpush1.bf16.xpose.msra.mxu0 0
      %754 = vmatprep.subr.bf16.mxu0 0
      %755 = vmatpush1.bf16.xpose.msra.mxu0 0
      %756 = vmatprep.subr.bf16.mxu0 0
      %757 = vmatpush1.bf16.xpose.msra.mxu0 0
      %758 = vmatprep.subr.bf16.mxu0 0
      %759 = vmatpush1.bf16.xpose.msra.mxu0 0
      %760 = vmatprep.subr.bf16.mxu0 0
      %761 = vmatpush1.bf16.xpose.msra.mxu0 0
      %762 = vmatprep.subr.bf16.mxu0 0
      %763 = vmatpush1.bf16.xpose.msra.mxu0 0
      %764 = vmatprep.subr.bf16.mxu0 0
      %765 = vmatpush1.bf16.xpose.msra.mxu0 0
      %766 = vmatprep.subr.bf16.mxu0 0
      %767 = vmatpush1.bf16.xpose.msra.mxu0 0
      %768 = vmatprep.subr.bf16.mxu0 0
      %769 = vmatpush1.bf16.xpose.msra.mxu0 0
      %770 = vmatprep.subr.bf16.mxu0 0
      %771 = vmatpush1.bf16.xpose.msra.mxu0 0
      %772 = vmatprep.mubr.bf16.mxu0 0
      %773 = vmatmul.mubr.bf16.gmra.mrb[0].mxu0 %v735
      %v774 = vpop.f32.mrb[0].mxu0
      %v775 = vadd.f32 0.0, %v774
      %v776 = vpop.f32.mrb[0].mxu0
      %v777 = vpop.f32.mrb[0].mxu0
      %v778 = vpop.f32.mrb[0].mxu0
      %779 = vdwg.mxu0
      %v780 = vsel %vm450, %v775, -inf
      %781 = vmax.xlane.f32.xlu0 %v780
      %v782 = vpop.xlane.xlu0 %781
      %v783 = vsub.f32 %v775, %v782
      %v784 = vmul.f32 %v783, 1.442695
      %v785 = vpow.pop %v784
      %v786 = vsel %vm450, %v785, 0.0
      %787 = vadd.xlane.f32.xlu0 %v786
      %v788 = vpop.xlane.xlu0 %787
      %v789 = vrcp.pop %v788
      %v790 = vmul.f32 %v785, %v789
      %v791 = vpack.c.bf16 %v790, %v790
      %v793 = vsel %vm463, %v791, 0
      %v796 = vand.u32 %v733, %v470
      %798 = vmatprep.subr.bf16.mxu0 0
      %799 = vmatpush1.bf16.msra.mxu0 %v796
      %800 = vmatprep.subr.bf16.mxu0 0
      %801 = vmatpush1.bf16.msra.mxu0 0
      %802 = vmatprep.subr.bf16.mxu0 0
      %803 = vmatpush1.bf16.msra.mxu0 0
      %804 = vmatprep.subr.bf16.mxu0 0
      %805 = vmatpush1.bf16.msra.mxu0 0
      %806 = vmatprep.subr.bf16.mxu0 0
      %807 = vmatpush1.bf16.msra.mxu0 0
      %808 = vmatprep.subr.bf16.mxu0 0
      %809 = vmatpush1.bf16.msra.mxu0 0
      %810 = vmatprep.subr.bf16.mxu0 0
      %811 = vmatpush1.bf16.msra.mxu0 0
      %812 = vmatprep.subr.bf16.mxu0 0
      %813 = vmatpush1.bf16.msra.mxu0 0
      %814 = vmatprep.subr.bf16.mxu0 0
      %815 = vmatpush1.bf16.msra.mxu0 0
      %816 = vmatprep.subr.bf16.mxu0 0
      %817 = vmatpush1.bf16.msra.mxu0 0
      %818 = vmatprep.subr.bf16.mxu0 0
      %819 = vmatpush1.bf16.msra.mxu0 0
      %820 = vmatprep.subr.bf16.mxu0 0
      %821 = vmatpush1.bf16.msra.mxu0 0
      %822 = vmatprep.subr.bf16.mxu0 0
      %823 = vmatpush1.bf16.msra.mxu0 0
      %824 = vmatprep.subr.bf16.mxu0 0
      %825 = vmatpush1.bf16.msra.mxu0 0
      %826 = vmatprep.subr.bf16.mxu0 0
      %827 = vmatpush1.bf16.msra.mxu0 0
      %828 = vmatprep.subr.bf16.mxu0 0
      %829 = vmatpush1.bf16.msra.mxu0 0
      %830 = vmatprep.mubr.bf16.mxu0 0
      %831 = vmatmul.mubr.bf16.gmra.mrb[0].mxu0 %v793
      %v832 = vpop.f32.mrb[0].mxu0
      %v833 = vadd.f32 0.0, %v832
      %v834 = vpop.f32.mrb[0].mxu0
      %v835 = vpop.f32.mrb[0].mxu0
      %v836 = vpop.f32.mrb[0].mxu0
      %837 = vdwg.mxu0
      %v838 = vld [vmem:[#allocation2] sm:$0x1f]
      %v839 = vpack.c.bf16 %v833, %v833
      %s840 = scalar_lea.vmem %s3, 8
      %v841 = vld [vmem:[%s840] sm:$0xf]
      %v843 = vsel %vm403, %v839, 0
      %v846 = vsel %vm520, %v841, 0
      %848 = vmatprep.subr.bf16.mxu0 0
      %849 = vmatpush1.bf16.msra.mxu0 %v846
      %850 = vmatprep.subr.bf16.mxu0 0
      %851 = vmatpush1.bf16.msra.mxu0 0
      %852 = vmatprep.subr.bf16.mxu0 0
      %853 = vmatpush1.bf16.msra.mxu0 0
      %854 = vmatprep.subr.bf16.mxu0 0
      %855 = vmatpush1.bf16.msra.mxu0 0
      %856 = vmatprep.subr.bf16.mxu0 0
      %857 = vmatpush1.bf16.msra.mxu0 0
      %858 = vmatprep.subr.bf16.mxu0 0
      %859 = vmatpush1.bf16.msra.mxu0 0
      %860 = vmatprep.subr.bf16.mxu0 0
      %861 = vmatpush1.bf16.msra.mxu0 0
      %862 = vmatprep.subr.bf16.mxu0 0
      %863 = vmatpush1.bf16.msra.mxu0 0
      %864 = vmatprep.subr.bf16.mxu0 0
      %865 = vmatpush1.bf16.msra.mxu0 0
      %866 = vmatprep.subr.bf16.mxu0 0
      %867 = vmatpush1.bf16.msra.mxu0 0
      %868 = vmatprep.subr.bf16.mxu0 0
      %869 = vmatpush1.bf16.msra.mxu0 0
      %870 = vmatprep.subr.bf16.mxu0 0
      %871 = vmatpush1.bf16.msra.mxu0 0
      %872 = vmatprep.subr.bf16.mxu0 0
      %873 = vmatpush1.bf16.msra.mxu0 0
      %874 = vmatprep.subr.bf16.mxu0 0
      %875 = vmatpush1.bf16.msra.mxu0 0
      %876 = vmatprep.subr.bf16.mxu0 0
      %877 = vmatpush1.bf16.msra.mxu0 0
      %878 = vmatprep.subr.bf16.mxu0 0
      %879 = vmatpush1.bf16.msra.mxu0 0
      %880 = vmatprep.mubr.bf16.mxu0 0
      %881 = vmatmul.mubr.bf16.gmra.mrb[0].mxu0 %v843
      %v882 = vpop.f32.mrb[0].mxu0
      %v883 = vadd.f32 0.0, %v882
      %v884 = vpop.f32.mrb[0].mxu0
      %v885 = vpop.f32.mrb[0].mxu0
      %v886 = vpop.f32.mrb[0].mxu0
      %887 = vdwg.mxu0
      %v888 = vadd.f32 %v838, %v883
      %889 = vst.msk [vmem:[#allocation2] sm:$0x1f] %vm397, %v888
      %s890 = scalar_lea.vmem %s350, 12
      %v891 = vld [vmem:[%s890] sm:$0x7]
      %s892 = scalar_lea.vmem %s368, 12
      %v893 = vld [vmem:[%s892] sm:$0x7]
      %s894 = scalar_lea.vmem %s368, 28
      %v895 = vld [vmem:[%s894] sm:$0x7]
      %v897 = vsel %vm403, %v891, 0
      %v900 = vsel %vm403, %v893, 0
      %902 = vmatprep.subr.bf16.mxu0 0
      %903 = vmatpush1.bf16.xpose.msra.mxu0 %v900
      %904 = vmatprep.subr.bf16.mxu0 0
      %905 = vmatpush1.bf16.xpose.msra.mxu0 0
      %906 = vmatprep.subr.bf16.mxu0 0
      %907 = vmatpush1.bf16.xpose.msra.mxu0 0
      %908 = vmatprep.subr.bf16.mxu0 0
      %909 = vmatpush1.bf16.xpose.msra.mxu0 0
      %910 = vmatprep.subr.bf16.mxu0 0
      %911 = vmatpush1.bf16.xpose.msra.mxu0 0
      %912 = vmatprep.subr.bf16.mxu0 0
      %913 = vmatpush1.bf16.xpose.msra.mxu0 0
      %914 = vmatprep.subr.bf16.mxu0 0
      %915 = vmatpush1.bf16.xpose.msra.mxu0 0
      %916 = vmatprep.subr.bf16.mxu0 0
      %917 = vmatpush1.bf16.xpose.msra.mxu0 0
      %918 = vmatprep.subr.bf16.mxu0 0
      %919 = vmatpush1.bf16.xpose.msra.mxu0 0
      %920 = vmatprep.subr.bf16.mxu0 0
      %921 = vmatpush1.bf16.xpose.msra.mxu0 0
      %922 = vmatprep.subr.bf16.mxu0 0
      %923 = vmatpush1.bf16.xpose.msra.mxu0 0
      %924 = vmatprep.subr.bf16.mxu0 0
      %925 = vmatpush1.bf16.xpose.msra.mxu0 0
      %926 = vmatprep.subr.bf16.mxu0 0
      %927 = vmatpush1.bf16.xpose.msra.mxu0 0
      %928 = vmatprep.subr.bf16.mxu0 0
      %929 = vmatpush1.bf16.xpose.msra.mxu0 0
      %930 = vmatprep.subr.bf16.mxu0 0
      %931 = vmatpush1.bf16.xpose.msra.mxu0 0
      %932 = vmatprep.subr.bf16.mxu0 0
      %933 = vmatpush1.bf16.xpose.msra.mxu0 0
      %934 = vmatprep.mubr.bf16.mxu0 0
      %935 = vmatmul.mubr.bf16.gmra.mrb[0].mxu0 %v897
      %v936 = vpop.f32.mrb[0].mxu0
      %v937 = vadd.f32 0.0, %v936
      %v938 = vpop.f32.mrb[0].mxu0
      %v939 = vpop.f32.mrb[0].mxu0
      %v940 = vpop.f32.mrb[0].mxu0
      %941 = vdwg.mxu0
      %v942 = vsel %vm450, %v937, -inf
      %943 = vmax.xlane.f32.xlu0 %v942
      %v944 = vpop.xlane.xlu0 %943
      %v945 = vsub.f32 %v937, %v944
      %v946 = vmul.f32 %v945, 1.442695
      %v947 = vpow.pop %v946
      %v948 = vsel %vm450, %v947, 0.0
      %949 = vadd.xlane.f32.xlu0 %v948
      %v950 = vpop.xlane.xlu0 %949
      %v951 = vrcp.pop %v950
      %v952 = vmul.f32 %v947, %v951
      %v953 = vpack.c.bf16 %v952, %v952
      %v955 = vsel %vm463, %v953, 0
      %v958 = vand.u32 %v895, %v470
      %960 = vmatprep.subr.bf16.mxu0 0
      %961 = vmatpush1.bf16.msra.mxu0 %v958
      %962 = vmatprep.subr.bf16.mxu0 0
      %963 = vmatpush1.bf16.msra.mxu0 0
      %964 = vmatprep.subr.bf16.mxu0 0
      %965 = vmatpush1.bf16.msra.mxu0 0
      %966 = vmatprep.subr.bf16.mxu0 0
      %967 = vmatpush1.bf16.msra.mxu0 0
      %968 = vmatprep.subr.bf16.mxu0 0
      %969 = vmatpush1.bf16.msra.mxu0 0
      %970 = vmatprep.subr.bf16.mxu0 0
      %971 = vmatpush1.bf16.msra.mxu0 0
      %972 = vmatprep.subr.bf16.mxu0 0
      %973 = vmatpush1.bf16.msra.mxu0 0
      %974 = vmatprep.subr.bf16.mxu0 0
      %975 = vmatpush1.bf16.msra.mxu0 0
      %976 = vmatprep.subr.bf16.mxu0 0
      %977 = vmatpush1.bf16.msra.mxu0 0
      %978 = vmatprep.subr.bf16.mxu0 0
      %979 = vmatpush1.bf16.msra.mxu0 0
      %980 = vmatprep.subr.bf16.mxu0 0
      %981 = vmatpush1.bf16.msra.mxu0 0
      %982 = vmatprep.subr.bf16.mxu0 0
      %983 = vmatpush1.bf16.msra.mxu0 0
      %984 = vmatprep.subr.bf16.mxu0 0
      %985 = vmatpush1.bf16.msra.mxu0 0
      %986 = vmatprep.subr.bf16.mxu0 0
      %987 = vmatpush1.bf16.msra.mxu0 0
      %988 = vmatprep.subr.bf16.mxu0 0
      %989 = vmatpush1.bf16.msra.mxu0 0
      %990 = vmatprep.subr.bf16.mxu0 0
      %991 = vmatpush1.bf16.msra.mxu0 0
      %992 = vmatprep.mubr.bf16.mxu0 0
      %993 = vmatmul.mubr.bf16.gmra.mrb[0].mxu0 %v955
      %v994 = vpop.f32.mrb[0].mxu0
      %v995 = vadd.f32 0.0, %v994
      %v996 = vpop.f32.mrb[0].mxu0
      %v997 = vpop.f32.mrb[0].mxu0
      %v998 = vpop.f32.mrb[0].mxu0
      %999 = vdwg.mxu0
      %v1000 = vld [vmem:[#allocation2] sm:$0x1f]
      %v1001 = vpack.c.bf16 %v995, %v995
      %s1002 = scalar_lea.vmem %s3, 12
      %v1003 = vld [vmem:[%s1002] sm:$0xf]
      %v1005 = vsel %vm403, %v1001, 0
      %v1008 = vsel %vm520, %v1003, 0
      %1010 = vmatprep.subr.bf16.mxu0 0
      %1011 = vmatpush1.bf16.msra.mxu0 %v1008
      %1012 = vmatprep.subr.bf16.mxu0 0
      %1013 = vmatpush1.bf16.msra.mxu0 0
      %1014 = vmatprep.subr.bf16.mxu0 0
      %1015 = vmatpush1.bf16.msra.mxu0 0
      %1016 = vmatprep.subr.bf16.mxu0 0
      %1017 = vmatpush1.bf16.msra.mxu0 0
      %1018 = vmatprep.subr.bf16.mxu0 0
      %1019 = vmatpush1.bf16.msra.mxu0 0
      %1020 = vmatprep.subr.bf16.mxu0 0
      %1021 = vmatpush1.bf16.msra.mxu0 0
      %1022 = vmatprep.subr.bf16.mxu0 0
      %1023 = vmatpush1.bf16.msra.mxu0 0
      %1024 = vmatprep.subr.bf16.mxu0 0
      %1025 = vmatpush1.bf16.msra.mxu0 0
      %1026 = vmatprep.subr.bf16.mxu0 0
      %1027 = vmatpush1.bf16.msra.mxu0 0
      %1028 = vmatprep.subr.bf16.mxu0 0
      %1029 = vmatpush1.bf16.msra.mxu0 0
      %1030 = vmatprep.subr.bf16.mxu0 0
      %1031 = vmatpush1.bf16.msra.mxu0 0
      %1032 = vmatprep.subr.bf16.mxu0 0
      %1033 = vmatpush1.bf16.msra.mxu0 0
      %1034 = vmatprep.subr.bf16.mxu0 0
      %1035 = vmatpush1.bf16.msra.mxu0 0
      %1036 = vmatprep.subr.bf16.mxu0 0
      %1037 = vmatpush1.bf16.msra.mxu0 0
      %1038 = vmatprep.subr.bf16.mxu0 0
      %1039 = vmatpush1.bf16.msra.mxu0 0
      %1040 = vmatprep.subr.bf16.mxu0 0
      %1041 = vmatpush1.bf16.msra.mxu0 0
      %1042 = vmatprep.mubr.bf16.mxu0 0
      %1043 = vmatmul.mubr.bf16.gmra.mrb[0].mxu0 %v1005
      %v1044 = vpop.f32.mrb[0].mxu0
      %v1045 = vadd.f32 0.0, %v1044
      %v1046 = vpop.f32.mrb[0].mxu0
      %v1047 = vpop.f32.mrb[0].mxu0
      %v1048 = vpop.f32.mrb[0].mxu0
      %1049 = vdwg.mxu0
      %v1050 = vadd.f32 %v1000, %v1045
      %1051 = vst.msk [vmem:[#allocation2] sm:$0x1f] %vm397, %v1050
      %v1052 = vld [vmem:[%s388] sm:$0x1f]
      %v1053 = vld [vmem:[#allocation2] sm:$0x1f]
      %v1054 = vadd.f32 %v1052, %v1053
      %v1055 = vld [vmem:[%s4] sm:$0x1]
      %v1057 = vlaneseq
      %v1058 = vshrl.u32 %v1057, 7
      %v1059 = vsub.s32 0, %v1058
      %v1060 = vrot.slane %v1055, %v1059
      %v1062 = vadd.f32 %v1054, %v1060
      %1063 = vst.msk [vmem:[%s395] sm:$0x1f] %vm397, %v1062
      %p1064 = scmp.lt.s32.totalorder %s20, 3
      %s1065 = scalar_select %p1064, %s20, 3
      %p1066 = scmp.lt.s32.totalorder %s21, 0
      %s1067 = scalar_select %p1066, %s21, 0
      %s1068 = sadd.s32 %s1067, %s1065
      %s1069 = smul.addr %s1068, 8
      %s1070 = scalar_lea.vmem %s5, %s1069
      // Predicated region
      $region41: #{model_forward.14} parent=39 // pred_check
        %p1071 = pneg %p198
      $region42: #{model_forward.14} parent=39 // pred_check_branch
        %1073 = sbr.rel (%p1071) target = $region44
      $region43: #{model_forward.14} parent=39 // pred_region
        _
      $region44: #{model_forward.14} parent=39 // pred_fallthru
        _
    $region40: #{model_forward.14} parent=5 // pred_fallthru
      _
    %p1074 = scmp.le.s32.totalorder 2, %s11
    // Predicated region
    $region45: #{model_forward.14} parent=5 // pred_check
      %p1075 = pneg %p1074
    $region46: #{model_forward.14} parent=5 // pred_check_branch
      %1077 = sbr.rel (%p1075) target = $region48
    $region47: #{model_forward.14} parent=5 // pred_region
      %s1078 = ssub.s32 %s11, 2
      // Predicated region
      $region49: #{model_forward.14} parent=47 // pred_check
        %p1079 = pneg %p204
      $region50: #{model_forward.14} parent=47 // pred_check_branch
        %1081 = sbr.rel (%p1079) target = $region52
      $region51: #{model_forward.14} parent=47 // pred_region
        %p1082 = scmp.lt.s32.totalorder %s22, 3
        %s1083 = scalar_select %p1082, %s22, 3
        %p1084 = scmp.lt.s32.totalorder %s23, 0
        %s1085 = scalar_select %p1084, %s23, 0
        %s1086 = sadd.s32 %s1085, %s1083
        %s1087 = smul.addr %s1086, 8
        %s1088 = scalar_lea.vmem %s5, %s1087
      $region52: #{model_forward.14} parent=47 // pred_fallthru
        _
    $region48: #{model_forward.14} parent=5 // pred_fallthru
      _
  $region6: #{model_forward.14} parent=0 // loop_footer
    %s15 = sadd.s32 1, %s11
  $region7: #{model_forward.14} parent=0 // loop_footer_branch
    %10 = sbr.rel target = $region3
  $region8: #{model_forward.14} parent=0 // loop_exit
    _

</llo_original>
